<compile_context>
chip_gen: v5e
topology: v5e:2x2
jax: 0.10.0
libtpu: 0.0.40
codegen_flags: <defaults>
</compile_context>

<pallas_src>
import functools

import jax
import jax.numpy as jnp
from jax.experimental import pallas as pl
from jax.experimental.pallas import tpu as pltpu


# ----------------------------------------------------------------------------
# constants / small helpers
# ----------------------------------------------------------------------------
_TM_TARGET = 1024                 # M-tile rows; ~7 MiB of VMEM at K=1152 bf16


def _round_up(x, m):
    return (x + m - 1) // m * m


@functools.lru_cache(maxsize=1)
def _vmem_limit_bytes():
    """96 MiB on 128-MiB-VMEM chips (v5e/v6e/v5p), 48 MiB otherwise (v7x=64MiB/TC)."""
    try:
        kind = jax.devices()[0].device_kind.lower()
        if ("v5" in kind) or ("v6" in kind):
            return 96 * 1024 * 1024
    except Exception:
        pass
    return 48 * 1024 * 1024


def _compiler_params():
    return pltpu.CompilerParams(
        dimension_semantics=("parallel",),       # shard M tiles across TCs (v7x)
        vmem_limit_bytes=_vmem_limit_bytes(),
    )


def _m_tiling(m):
    """Return (tile_m, padded_M): tile_m % 16 == 0 (bf16 pack), padded_M % tile_m == 0,
    and >=2 tiles whenever M allows it (so the "parallel" axis can use both v7x TCs)."""
    mp = _round_up(max(m, 16), 16)
    ntiles = pl.cdiv(mp, _TM_TARGET)
    if mp >= 32:
        ntiles = max(ntiles, 2)
    if ntiles > 1 and (ntiles % 2) == 1:
        ntiles += 1                               # even split across 2 TCs
    tile = _round_up(pl.cdiv(mp, ntiles), 16)
    mp = tile * ntiles
    return tile, mp


def _stream_spec(block_shape, index_map, nsteps):
    """BlockSpec for a streamed (per-M-tile) operand; 3-deep buffering when useful."""
    if nsteps >= 3 and hasattr(pl, "Buffered"):
        try:
            return pl.BlockSpec(block_shape, index_map, pipeline_mode=pl.Buffered(3))
        except TypeError:
            pass
    return pl.BlockSpec(block_shape, index_map)


# ----------------------------------------------------------------------------
# Pallas kernels
# ----------------------------------------------------------------------------
def _apply_relu(acc, relu_cols):
    """ReLU on the first `relu_cols` output columns (static int); full / none fast paths."""
    n = acc.shape[-1]
    if relu_cols >= n:
        return jnp.maximum(acc, 0.0)
    if relu_cols <= 0:
        return acc
    col = jax.lax.broadcasted_iota(jnp.int32, acc.shape, acc.ndim - 1)
    return jnp.where(col < relu_cols, jnp.maximum(acc, 0.0), acc)


def _mm_bias_kernel(a_ref, w_ref, b_ref, o_ref, *, relu_cols):
    """out = relu?(A @ W + b); A/W bf16 tiles, f32 accumulate + epilogue, bf16 store."""
    acc = jnp.dot(a_ref[...], w_ref[...], preferred_element_type=jnp.float32)
    acc = acc + b_ref[...]
    acc = _apply_relu(acc, relu_cols)
    o_ref[...] = acc.astype(o_ref.dtype)


def _mm_bias_res_kernel(a_ref, w_ref, b_ref, r_ref, o_ref, *, relu_cols):
    """out = relu?(A @ W + b + residual) — BasicBlock tail (residual stored bf16)."""
    acc = jnp.dot(a_ref[...], w_ref[...], preferred_element_type=jnp.float32)
    acc = acc + b_ref[...] + r_ref[...].astype(jnp.float32)
    acc = _apply_relu(acc, relu_cols)
    o_ref[...] = acc.astype(o_ref.dtype)


def _head_kernel(a_ref, w1_ref, b1_ref, w2_ref, b2_ref, o_ref):
    """Fused heads: relu(A @ W1 + b1) @ W2 + b2; the (tm, 128) intermediate stays in VMEM."""
    h = jnp.dot(a_ref[...], w1_ref[...], preferred_element_type=jnp.float32)
    h = jnp.maximum(h + b1_ref[...], 0.0)
    acc = jnp.dot(h.astype(w2_ref.dtype), w2_ref[...],
                  preferred_element_type=jnp.float32)
    o_ref[...] = (acc + b2_ref[...]).astype(o_ref.dtype)


# ----------------------------------------------------------------------------
# im2col patch extraction (plain JAX; jit fuses the slices/pad/cast into the
# bf16 patch buffer).  TODO(synk): replace with halo-tiled direct conv.
# ----------------------------------------------------------------------------
def _extract_patches(x, kh, kw, stride, pad, pad_value):
    """x:(N,H,W,C) -> patches:(N,Ho,Wo,kh*kw*C), window ordering [dy, dx, c]."""
    N, H, W, C = x.shape
    if pad > 0:
        x = jnp.pad(x, ((0, 0), (pad, pad), (pad, pad), (0, 0)),
                    constant_values=pad_value)
    Hp, Wp = H + 2 * pad, W + 2 * pad
    Ho = (Hp - kh) // stride + 1
    Wo = (Wp - kw) // stride + 1
    pieces = []
    for dy in range(kh):
        for dx in range(kw):
            pieces.append(x[:, dy:dy + stride * (Ho - 1) + 1:stride,
                             dx:dx + stride * (Wo - 1) + 1:stride, :])
    return jnp.concatenate(pieces, axis=-1), Ho, Wo


# ----------------------------------------------------------------------------
# Tiled matmul launcher (bf16 MXU inputs, f32 epilogue, bf16 activation store)
# ----------------------------------------------------------------------------
def _launch_matmul(A, Wmat, bias, *, relu_cols, residual=None,
                   out_dtype=jnp.bfloat16):
    """A:(M,K), Wmat:(K,Cout), bias:(Cout,), residual:(M,Cout) or None.
    relu_cols: None = ReLU on all columns, 0 = none, k>0 = first k columns only.
    Returns (M, Np) with Np = round_up(Cout, 128) (lane-dense output)."""
    M, K = A.shape
    _, Cout = Wmat.shape
    Kp = _round_up(K, 16)        # only sublane-pack padding: stem 147 -> 160, not 256
    Np = _round_up(Cout, 128)    # lane-dense, unmasked output stores
    tm, Mp = _m_tiling(M)
    nsteps = Mp // tm
    rc = Np if relu_cols is None else relu_cols

    Ap = jnp.pad(A.astype(jnp.bfloat16), ((0, Mp - M), (0, Kp - K)))
    Wp = jnp.pad(Wmat.astype(jnp.bfloat16), ((0, Kp - K), (0, Np - Cout)))
    bp = jnp.pad(bias.reshape(1, Cout).astype(jnp.float32),
                 ((0, 0), (0, Np - Cout)))

    a_spec = _stream_spec((tm, Kp), lambda i: (i, 0), nsteps)
    w_spec = pl.BlockSpec((Kp, Np), lambda i: (0, 0))    # VMEM-resident across tiles
    b_spec = pl.BlockSpec((1, Np), lambda i: (0, 0))     # VMEM-resident across tiles
    o_spec = pl.BlockSpec((tm, Np), lambda i: (i, 0))
    out_shape = jax.ShapeDtypeStruct((Mp, Np), out_dtype)
    osize = jnp.dtype(out_dtype).itemsize

    flops = 2 * Mp * Kp * Np
    bytes_accessed = Ap.size * 2 + Wp.size * 2 + bp.size * 4 + Mp * Np * osize

    # TODO(synk): add a K grid axis + f32 accumulator scratch if Kp ever exceeds
    # a single-tile VMEM budget; the largest K here (1152) fits comfortably.
    if residual is None:
        kern = functools.partial(_mm_bias_kernel, relu_cols=rc)
        operands, in_specs = (Ap, Wp, bp), [a_spec, w_spec, b_spec]
    else:
        Rp = jnp.pad(residual.astype(jnp.bfloat16), ((0, Mp - M), (0, Np - Cout)))
        r_spec = _stream_spec((tm, Np), lambda i: (i, 0), nsteps)
        kern = functools.partial(_mm_bias_res_kernel, relu_cols=rc)
        operands, in_specs = (Ap, Wp, bp, Rp), [a_spec, w_spec, b_spec, r_spec]
        bytes_accessed += Rp.size * 2

    out = pl.pallas_call(
        kern,
        out_shape=out_shape,
        grid=(nsteps,),
        in_specs=in_specs,
        out_specs=o_spec,
        compiler_params=_compiler_params(),
        cost_estimate=pl.CostEstimate(flops=flops, transcendentals=0,
                                      bytes_accessed=bytes_accessed),
    )(*operands)
    return out[:M]                     # (M, Np); callers slice the real columns


# ----------------------------------------------------------------------------
# Conv2d / fused-l2b0 / MaxPool / fused-heads wrappers
# ----------------------------------------------------------------------------
def conv2d_pallas(x, w, b, *, stride=1, pad=0, relu=False, residual=None):
    """x:(N,H,W,Cin) NHWC bf16, w:(kh,kw,Cin,Cout) HWIO f32, b:(Cout,) f32.
    residual: NHWC with the output's shape (added before the ReLU). Returns NHWC bf16."""
    N, H, W_, Cin = x.shape
    kh, kw, _, Cout = w.shape
    patches, Ho, Wo = _extract_patches(x, kh, kw, stride, pad, 0.0)
    M = N * Ho * Wo
    K = kh * kw * Cin
    R = None if residual is None else residual.reshape(M, Cout)
    out = _launch_matmul(patches.reshape(M, K), w.reshape(K, Cout), b,
                         relu_cols=(None if relu else 0), residual=R)
    return out[:, :Cout].reshape(N, Ho, Wo, Cout)


def l2b0_fused_pallas(x, w1, b1, dw, db):
    """layer2.0 conv1 (3x3/s2/pad1) fused with its 1x1/s2 downsample shortcut.
    The 1x1 weight is embedded into the center-tap rows of the im2col K (the
    stride-2 3x3 window's center pixel is exactly the pixel the 1x1/s2 conv
    reads) and the two Couts are concatenated -> one Np=256 matmul that fills
    the 256-wide MXU on v6e/v7x.  ReLU only on the conv1 column block.
    Returns (relu(conv1) NHWC, downsample NHWC), both bf16."""
    N, H, W_, Cin = x.shape
    C1 = w1.shape[-1]
    Cd = dw.shape[-1]
    patches, Ho, Wo = _extract_patches(x, 3, 3, 2, 1, 0.0)
    M = N * Ho * Wo
    K = 9 * Cin
    ctr = 4 * Cin                               # center tap (dy=1, dx=1)

    Wf = jnp.zeros((K, C1 + Cd), jnp.float32)
    Wf = Wf.at[:, :C1].set(w1.reshape(K, C1).astype(jnp.float32))
    Wf = Wf.at[ctr:ctr + Cin, C1:].set(dw.reshape(Cin, Cd).astype(jnp.float32))
    bf = jnp.concatenate([b1, db]).astype(jnp.float32)

    out = _launch_matmul(patches.reshape(M, K), Wf, bf, relu_cols=C1)
    y = out[:, :C1].reshape(N, Ho, Wo, C1)
    idn = out[:, C1:C1 + Cd].reshape(N, Ho, Wo, Cd)
    return y, idn


def maxpool2d(x, *, ksize=3, stride=2, pad=1):
    """MaxPool2d(kernel=3, stride=2, padding=1), NHWC bf16.
    Per the perf review, the running max over the 9 shifted strided views is
    done in plain JAX: XLA fuses it into a single pass over the padded tensor,
    so no 9x window materialization and no half-empty-lane Pallas stores."""
    # TODO(synk): fold the maxpool into the stem conv's Pallas epilogue (needs
    # stride-2 halos across M tiles); not done here.
    xp = jnp.pad(x, ((0, 0), (pad, pad), (pad, pad), (0, 0)),
                 constant_values=-jnp.inf)
    N, Hp, Wp, C = xp.shape
    Ho = (Hp - ksize) // stride + 1
    Wo = (Wp - ksize) // stride + 1
    out = None
    for dy in range(ksize):
        for dx in range(ksize):
            win = xp[:, dy:dy + stride * (Ho - 1) + 1:stride,
                      dx:dx + stride * (Wo - 1) + 1:stride, :]
            out = win if out is None else jnp.maximum(out, win)
    return out


def heads_pallas(x, w1c, b1c, w2c, b2c, w1o, b1o, w2o, b2o):
    """Both CenterNet heads in one fused Pallas kernel.
    Stage 1: 3x3 conv with the two head_conv weights concatenated (Cout=128,
    lane-dense) + ReLU.  Stage 2: block-diagonal 1x1 conv -> [outc | outo].
    The (tm, 128) intermediate never leaves VMEM.  Output f32."""
    N, H, W_, Cin = x.shape
    hc, ho = w1c.shape[-1], w1o.shape[-1]
    c1, c2 = w2c.shape[-1], w2o.shape[-1]

    patches, Ho, Wo = _extract_patches(x, 3, 3, 1, 1, 0.0)
    M = N * Ho * Wo
    K = 9 * Cin
    Kp = _round_up(K, 16)
    H1 = hc + ho
    H1p = _round_up(H1, 128)
    C2 = c1 + c2
    C2p = _round_up(C2, 128)

    W1 = jnp.concatenate([w1c.reshape(K, hc), w1o.reshape(K, ho)], axis=1)
    W1p = jnp.pad(W1.astype(jnp.bfloat16), ((0, Kp - K), (0, H1p - H1)))
    b1p = jnp.pad(jnp.concatenate([b1c, b1o]).reshape(1, H1).astype(jnp.float32),
                  ((0, 0), (0, H1p - H1)))

    W2 = jnp.zeros((H1, C2), jnp.float32)
    W2 = W2.at[:hc, :c1].set(w2c.reshape(hc, c1))
    W2 = W2.at[hc:, c1:].set(w2o.reshape(ho, c2))
    W2p = jnp.pad(W2.astype(jnp.bfloat16), ((0, H1p - H1), (0, C2p - C2)))
    b2p = jnp.pad(jnp.concatenate([b2c, b2o]).reshape(1, C2).astype(jnp.float32),
                  ((0, 0), (0, C2p - C2)))

    tm, Mp = _m_tiling(M)
    nsteps = Mp // tm
    Ap = jnp.pad(patches.reshape(M, K).astype(jnp.bfloat16),
                 ((0, Mp - M), (0, Kp - K)))

    flops = 2 * Mp * Kp * H1p + 2 * Mp * H1p * C2p
    bytes_accessed = (Ap.size * 2 + W1p.size * 2 + W2p.size * 2
                      + b1p.size * 4 + b2p.size * 4 + Mp * C2p * 4)

    out = pl.pallas_call(
        _head_kernel,
        out_shape=jax.ShapeDtypeStruct((Mp, C2p), jnp.float32),
        grid=(nsteps,),
        in_specs=[_stream_spec((tm, Kp), lambda i: (i, 0), nsteps),
                  pl.BlockSpec((Kp, H1p), lambda i: (0, 0)),
                  pl.BlockSpec((1, H1p), lambda i: (0, 0)),
                  pl.BlockSpec((H1p, C2p), lambda i: (0, 0)),
                  pl.BlockSpec((1, C2p), lambda i: (0, 0))],
        out_specs=pl.BlockSpec((tm, C2p), lambda i: (i, 0)),
        compiler_params=_compiler_params(),
        cost_estimate=pl.CostEstimate(flops=flops, transcendentals=0,
                                      bytes_accessed=bytes_accessed),
    )(Ap, W1p, b1p, W2p, b2p)

    out = out[:M]
    outc = out[:, :c1].reshape(N, Ho, Wo, c1)
    outo = out[:, c1:c1 + c2].reshape(N, Ho, Wo, c2)
    return outc, outo


# ----------------------------------------------------------------------------
# Parameter construction (deterministic, synthetic; BN folded -> inference mode)
# ----------------------------------------------------------------------------
def _fold_bn(w, gamma, beta, mean, var, eps=1e-5):
    scale = gamma / jnp.sqrt(var + eps)
    return w * scale[None, None, None, :], beta - mean * scale


def init_params(key):
    keys = iter(jax.random.split(key, 64))

    def nrm(shape, scale=0.05):
        return scale * jax.random.normal(next(keys), shape, dtype=jnp.float32)

    def bn_params(c):
        gamma = 1.0 + 0.1 * jax.random.normal(next(keys), (c,), jnp.float32)
        beta = 0.1 * jax.random.normal(next(keys), (c,), jnp.float32)
        mean = 0.1 * jax.random.normal(next(keys), (c,), jnp.float32)
        var = 1.0 + 0.1 * jnp.abs(jax.random.normal(next(keys), (c,), jnp.float32))
        return gamma, beta, mean, var

    def conv_bn(kh, kw, cin, cout):
        w = nrm((kh, kw, cin, cout))
        return _fold_bn(w, *bn_params(cout))

    p = {}
    # ResNet-18 stem
    p['conv1_w'], p['conv1_b'] = conv_bn(7, 7, 3, 64)
    # layer1: 2 BasicBlocks (64 -> 64)
    for blk in ('l1b0', 'l1b1'):
        p[blk + '_w1'], p[blk + '_b1'] = conv_bn(3, 3, 64, 64)
        p[blk + '_w2'], p[blk + '_b2'] = conv_bn(3, 3, 64, 64)
    # layer2: BasicBlock(64->128, stride2, downsample) + BasicBlock(128->128)
    p['l2b0_w1'], p['l2b0_b1'] = conv_bn(3, 3, 64, 128)
    p['l2b0_w2'], p['l2b0_b2'] = conv_bn(3, 3, 128, 128)
    p['l2b0_dw'], p['l2b0_db'] = conv_bn(1, 1, 64, 128)
    p['l2b1_w1'], p['l2b1_b1'] = conv_bn(3, 3, 128, 128)
    p['l2b1_w2'], p['l2b1_b2'] = conv_bn(3, 3, 128, 128)
    # heads (Conv2d with bias, no BN)
    p['outc_w1'] = nrm((3, 3, 128, 64)); p['outc_b1'] = nrm((64,))
    p['outc_w2'] = nrm((1, 1, 64, 1));   p['outc_b2'] = nrm((1,))
    p['outo_w1'] = nrm((3, 3, 128, 64)); p['outo_b1'] = nrm((64,))
    p['outo_w2'] = nrm((1, 1, 64, 2));   p['outo_b2'] = nrm((2,))
    return p


# ----------------------------------------------------------------------------
# Forward pass
# ----------------------------------------------------------------------------
def centernet_forward(x_nchw, p):
    # NCHW -> NHWC; bf16 activation storage throughout (f32 math inside kernels)
    x = jnp.transpose(x_nchw, (0, 2, 3, 1)).astype(jnp.bfloat16)

    # stem: conv7x7/s2 + BN + ReLU, maxpool3x3/s2
    x = conv2d_pallas(x, p['conv1_w'], p['conv1_b'], stride=2, pad=3, relu=True)
    x = maxpool2d(x, ksize=3, stride=2, pad=1)

    # layer1: two BasicBlocks, stride 1
    # TODO(synk): conv1+conv2 in-VMEM fusion needs spatial halos across M tiles.
    for blk in ('l1b0', 'l1b1'):
        idn = x
        y = conv2d_pallas(x, p[blk + '_w1'], p[blk + '_b1'],
                          stride=1, pad=1, relu=True)
        x = conv2d_pallas(y, p[blk + '_w2'], p[blk + '_b2'],
                          stride=1, pad=1, relu=True, residual=idn)

    # layer2 block0: conv1 (3x3/s2) fused with the 1x1/s2 downsample (Np=256)
    y, idn = l2b0_fused_pallas(x, p['l2b0_w1'], p['l2b0_b1'],
                               p['l2b0_dw'], p['l2b0_db'])
    x = conv2d_pallas(y, p['l2b0_w2'], p['l2b0_b2'], stride=1, pad=1,
                      relu=True, residual=idn)

    # layer2 block1
    idn = x
    y = conv2d_pallas(x, p['l2b1_w1'], p['l2b1_b1'], stride=1, pad=1, relu=True)
    x = conv2d_pallas(y, p['l2b1_w2'], p['l2b1_b2'], stride=1, pad=1,
                      relu=True, residual=idn)

    # heads: both branches fused into one lane-dense Pallas kernel (f32 out)
    outc, outo = heads_pallas(x,
                              p['outc_w1'], p['outc_b1'],
                              p['outc_w2'], p['outc_b2'],
                              p['outo_w1'], p['outo_b1'],
                              p['outo_w2'], p['outo_b2'])

    # NHWC -> NCHW, matching the PyTorch return convention
    return (jnp.transpose(outc, (0, 3, 1, 2)).astype(jnp.float32),
            jnp.transpose(outo, (0, 3, 1, 2)).astype(jnp.float32))


centernet_forward_jit = jax.jit(centernet_forward)


# ----------------------------------------------------------------------------
if __name__ == "__main__":
    key = jax.random.PRNGKey(0)
    pkey, xkey = jax.random.split(key)
    params = init_params(pkey)

    # Input: NCHW, 3 channels (ResNet stem), 16x16 spatial -> heads at 2x2.
    x = jax.random.normal(xkey, (2, 3, 16, 16), dtype=jnp.float32)

    outc, outo = centernet_forward_jit(x, params)
    outc, outo = jax.block_until_ready((outc, outo))

    assert outc.shape == (2, 1, 2, 2), outc.shape
    assert outo.shape == (2, 2, 2, 2), outo.shape
    assert not bool(jnp.isnan(outc).any())
    assert not bool(jnp.isnan(outo).any())
    print("KERNEL_OK")
</pallas_src>

<mosaic_0001>
module attributes {stable_mosaic.version = 11 : i64} {
  func.func @_mm_bias_kernel(%arg0: i32, %arg1: memref<64x160xbf16, #tpu.memory_space<vmem>>, %arg2: memref<160x128xbf16, #tpu.memory_space<vmem>>, %arg3: memref<1x128xf32, #tpu.memory_space<vmem>>, %arg4: memref<64x128xbf16, #tpu.memory_space<vmem>>) attributes {dimension_semantics = [#tpu.dimension_semantics<parallel>], iteration_bounds = array<i64: 2>, scalar_prefetch = 0 : i64, scratch_operands = 0 : i64, tpu.core_type = #tpu.core_type<tc>, window_params = [{transform_indices = @transform_0, window_bounds = array<i64: 64, 160>}, {pipeline_mode = #tpu.pipeline_mode<synchronous>, transform_indices = @transform_1, window_bounds = array<i64: 160, 128>}, {pipeline_mode = #tpu.pipeline_mode<synchronous>, transform_indices = @transform_2, window_bounds = array<i64: 1, 128>}, {transform_indices = @transform_3, window_bounds = array<i64: 64, 128>}]} {
    %c0 = arith.constant 0 : index
    %c0_0 = arith.constant 0 : index
    %0 = vector.load %arg1[%c0, %c0_0] : memref<64x160xbf16, #tpu.memory_space<vmem>>, vector<64x160xbf16>
    %c0_1 = arith.constant 0 : index
    %c0_2 = arith.constant 0 : index
    %1 = vector.load %arg2[%c0_1, %c0_2] : memref<160x128xbf16, #tpu.memory_space<vmem>>, vector<160x128xbf16>
    %cst = arith.constant dense<0.000000e+00> : vector<64x128xf32>
    %2 = tpu.matmul %0, %1, %cst {dimension_numbers = #tpu.dot_dimension_numbers<[1], [0], [0], [1], [0, 0, 1, 1], [], []>} : vector<64x160xbf16>, vector<160x128xbf16>, vector<64x128xf32> -> vector<64x128xf32>
    %c0_3 = arith.constant 0 : index
    %c0_4 = arith.constant 0 : index
    %3 = vector.load %arg3[%c0_3, %c0_4] : memref<1x128xf32, #tpu.memory_space<vmem>>, vector<1x128xf32>
    %4 = vector.broadcast %3 : vector<1x128xf32> to vector<64x128xf32>
    %5 = arith.addf %2, %4 : vector<64x128xf32>
    %cst_5 = arith.constant 0.000000e+00 : f32
    %6 = vector.broadcast %cst_5 : f32 to vector<64x128xf32>
    %7 = arith.maximumf %5, %6 : vector<64x128xf32>
    %8 = arith.truncf %7 : vector<64x128xf32> to vector<64x128xbf16>
    %c0_6 = arith.constant 0 : index
    %c0_7 = arith.constant 0 : index
    %9 = vector.load %arg4[%c0_6, %c0_7] : memref<64x128xbf16, #tpu.memory_space<vmem>>, vector<64x128xbf16>
    tpu.vector_store %arg4[%c0_6, %c0_7], %8 {strides = array<i32>} : memref<64x128xbf16, #tpu.memory_space<vmem>>, vector<64x128xbf16>,
    return
  }
  func.func @transform_0(%arg0: i32) -> (i32, i32) {
    %c0_i32 = arith.constant 0 : i32
    %c0_i32_0 = arith.constant 0 : i32
    return %arg0, %c0_i32 : i32, i32
  }
  func.func @transform_1(%arg0: i32) -> (i32, i32) {
    %c0_i32 = arith.constant 0 : i32
    %c0_i32_0 = arith.constant 0 : i32
    %c0_i32_1 = arith.constant 0 : i32
    return %c0_i32, %c0_i32_0 : i32, i32
  }
  func.func @transform_2(%arg0: i32) -> (i32, i32) {
    %c0_i32 = arith.constant 0 : i32
    %c0_i32_0 = arith.constant 0 : i32
    %c0_i32_1 = arith.constant 0 : i32
    return %c0_i32, %c0_i32_0 : i32, i32
  }
  func.func @transform_3(%arg0: i32) -> (i32, i32) {
    %c0_i32 = arith.constant 0 : i32
    %c0_i32_0 = arith.constant 0 : i32
    return %arg0, %c0_i32 : i32, i32
  }
}

module attributes {stable_mosaic.version = 11 : i64} {
  func.func @_mm_bias_kernel(%arg0: i32, %arg1: memref<16x576xbf16, #tpu.memory_space<vmem>>, %arg2: memref<576x128xbf16, #tpu.memory_space<vmem>>, %arg3: memref<1x128xf32, #tpu.memory_space<vmem>>, %arg4: memref<16x128xbf16, #tpu.memory_space<vmem>>) attributes {dimension_semantics = [#tpu.dimension_semantics<parallel>], iteration_bounds = array<i64: 2>, scalar_prefetch = 0 : i64, scratch_operands = 0 : i64, tpu.core_type = #tpu.core_type<tc>, window_params = [{transform_indices = @transform_0, window_bounds = array<i64: 16, 576>}, {pipeline_mode = #tpu.pipeline_mode<synchronous>, transform_indices = @transform_1, window_bounds = array<i64: 576, 128>}, {pipeline_mode = #tpu.pipeline_mode<synchronous>, transform_indices = @transform_2, window_bounds = array<i64: 1, 128>}, {transform_indices = @transform_3, window_bounds = array<i64: 16, 128>}]} {
    %c0 = arith.constant 0 : index
    %c0_0 = arith.constant 0 : index
    %0 = vector.load %arg1[%c0, %c0_0] : memref<16x576xbf16, #tpu.memory_space<vmem>>, vector<16x576xbf16>
    %c0_1 = arith.constant 0 : index
    %c0_2 = arith.constant 0 : index
    %1 = vector.load %arg2[%c0_1, %c0_2] : memref<576x128xbf16, #tpu.memory_space<vmem>>, vector<576x128xbf16>
    %cst = arith.constant dense<0.000000e+00> : vector<16x128xf32>
    %2 = tpu.matmul %0, %1, %cst {dimension_numbers = #tpu.dot_dimension_numbers<[1], [0], [0], [1], [0, 0, 1, 1], [], []>} : vector<16x576xbf16>, vector<576x128xbf16>, vector<16x128xf32> -> vector<16x128xf32>
    %c0_3 = arith.constant 0 : index
    %c0_4 = arith.constant 0 : index
    %3 = vector.load %arg3[%c0_3, %c0_4] : memref<1x128xf32, #tpu.memory_space<vmem>>, vector<1x128xf32>
    %4 = vector.broadcast %3 : vector<1x128xf32> to vector<16x128xf32>
    %5 = arith.addf %2, %4 : vector<16x128xf32>
    %cst_5 = arith.constant 0.000000e+00 : f32
    %6 = vector.broadcast %cst_5 : f32 to vector<16x128xf32>
    %7 = arith.maximumf %5, %6 : vector<16x128xf32>
    %8 = arith.truncf %7 : vector<16x128xf32> to vector<16x128xbf16>
    %c0_6 = arith.constant 0 : index
    %c0_7 = arith.constant 0 : index
    %9 = vector.load %arg4[%c0_6, %c0_7] : memref<16x128xbf16, #tpu.memory_space<vmem>>, vector<16x128xbf16>
    tpu.vector_store %arg4[%c0_6, %c0_7], %8 {strides = array<i32>} : memref<16x128xbf16, #tpu.memory_space<vmem>>, vector<16x128xbf16>,
    return
  }
  func.func @transform_0(%arg0: i32) -> (i32, i32) {
    %c0_i32 = arith.constant 0 : i32
    %c0_i32_0 = arith.constant 0 : i32
    return %arg0, %c0_i32 : i32, i32
  }
  func.func @transform_1(%arg0: i32) -> (i32, i32) {
    %c0_i32 = arith.constant 0 : i32
    %c0_i32_0 = arith.constant 0 : i32
    %c0_i32_1 = arith.constant 0 : i32
    return %c0_i32, %c0_i32_0 : i32, i32
  }
  func.func @transform_2(%arg0: i32) -> (i32, i32) {
    %c0_i32 = arith.constant 0 : i32
    %c0_i32_0 = arith.constant 0 : i32
    %c0_i32_1 = arith.constant 0 : i32
    return %c0_i32, %c0_i32_0 : i32, i32
  }
  func.func @transform_3(%arg0: i32) -> (i32, i32) {
    %c0_i32 = arith.constant 0 : i32
    %c0_i32_0 = arith.constant 0 : i32
    return %arg0, %c0_i32 : i32, i32
  }
}

module attributes {stable_mosaic.version = 11 : i64} {
  func.func @_mm_bias_res_kernel(%arg0: i32, %arg1: memref<16x576xbf16, #tpu.memory_space<vmem>>, %arg2: memref<576x128xbf16, #tpu.memory_space<vmem>>, %arg3: memref<1x128xf32, #tpu.memory_space<vmem>>, %arg4: memref<16x128xbf16, #tpu.memory_space<vmem>>, %arg5: memref<16x128xbf16, #tpu.memory_space<vmem>>) attributes {dimension_semantics = [#tpu.dimension_semantics<parallel>], iteration_bounds = array<i64: 2>, scalar_prefetch = 0 : i64, scratch_operands = 0 : i64, tpu.core_type = #tpu.core_type<tc>, window_params = [{transform_indices = @transform_0, window_bounds = array<i64: 16, 576>}, {pipeline_mode = #tpu.pipeline_mode<synchronous>, transform_indices = @transform_1, window_bounds = array<i64: 576, 128>}, {pipeline_mode = #tpu.pipeline_mode<synchronous>, transform_indices = @transform_2, window_bounds = array<i64: 1, 128>}, {transform_indices = @transform_3, window_bounds = array<i64: 16, 128>}, {transform_indices = @transform_4, window_bounds = array<i64: 16, 128>}]} {
    %c0 = arith.constant 0 : index
    %c0_0 = arith.constant 0 : index
    %0 = vector.load %arg1[%c0, %c0_0] : memref<16x576xbf16, #tpu.memory_space<vmem>>, vector<16x576xbf16>
    %c0_1 = arith.constant 0 : index
    %c0_2 = arith.constant 0 : index
    %1 = vector.load %arg2[%c0_1, %c0_2] : memref<576x128xbf16, #tpu.memory_space<vmem>>, vector<576x128xbf16>
    %cst = arith.constant dense<0.000000e+00> : vector<16x128xf32>
    %2 = tpu.matmul %0, %1, %cst {dimension_numbers = #tpu.dot_dimension_numbers<[1], [0], [0], [1], [0, 0, 1, 1], [], []>} : vector<16x576xbf16>, vector<576x128xbf16>, vector<16x128xf32> -> vector<16x128xf32>
    %c0_3 = arith.constant 0 : index
    %c0_4 = arith.constant 0 : index
    %3 = vector.load %arg3[%c0_3, %c0_4] : memref<1x128xf32, #tpu.memory_space<vmem>>, vector<1x128xf32>
    %4 = vector.broadcast %3 : vector<1x128xf32> to vector<16x128xf32>
    %5 = arith.addf %2, %4 : vector<16x128xf32>
    %c0_5 = arith.constant 0 : index
    %c0_6 = arith.constant 0 : index
    %6 = vector.load %arg4[%c0_5, %c0_6] : memref<16x128xbf16, #tpu.memory_space<vmem>>, vector<16x128xbf16>
    %7 = arith.extf %6 : vector<16x128xbf16> to vector<16x128xf32>
    %8 = arith.addf %5, %7 : vector<16x128xf32>
    %cst_7 = arith.constant 0.000000e+00 : f32
    %9 = vector.broadcast %cst_7 : f32 to vector<16x128xf32>
    %10 = arith.maximumf %8, %9 : vector<16x128xf32>
    %11 = arith.truncf %10 : vector<16x128xf32> to vector<16x128xbf16>
    %c0_8 = arith.constant 0 : index
    %c0_9 = arith.constant 0 : index
    %12 = vector.load %arg5[%c0_8, %c0_9] : memref<16x128xbf16, #tpu.memory_space<vmem>>, vector<16x128xbf16>
    tpu.vector_store %arg5[%c0_8, %c0_9], %11 {strides = array<i32>} : memref<16x128xbf16, #tpu.memory_space<vmem>>, vector<16x128xbf16>,
    return
  }
  func.func @transform_0(%arg0: i32) -> (i32, i32) {
    %c0_i32 = arith.constant 0 : i32
    %c0_i32_0 = arith.constant 0 : i32
    return %arg0, %c0_i32 : i32, i32
  }
  func.func @transform_1(%arg0: i32) -> (i32, i32) {
    %c0_i32 = arith.constant 0 : i32
    %c0_i32_0 = arith.constant 0 : i32
    %c0_i32_1 = arith.constant 0 : i32
    return %c0_i32, %c0_i32_0 : i32, i32
  }
  func.func @transform_2(%arg0: i32) -> (i32, i32) {
    %c0_i32 = arith.constant 0 : i32
    %c0_i32_0 = arith.constant 0 : i32
    %c0_i32_1 = arith.constant 0 : i32
    return %c0_i32, %c0_i32_0 : i32, i32
  }
  func.func @transform_3(%arg0: i32) -> (i32, i32) {
    %c0_i32 = arith.constant 0 : i32
    %c0_i32_0 = arith.constant 0 : i32
    return %arg0, %c0_i32 : i32, i32
  }
  func.func @transform_4(%arg0: i32) -> (i32, i32) {
    %c0_i32 = arith.constant 0 : i32
    %c0_i32_0 = arith.constant 0 : i32
    return %arg0, %c0_i32 : i32, i32
  }
}

module attributes {stable_mosaic.version = 11 : i64} {
  func.func @_mm_bias_kernel(%arg0: i32, %arg1: memref<16x576xbf16, #tpu.memory_space<vmem>>, %arg2: memref<576x256xbf16, #tpu.memory_space<vmem>>, %arg3: memref<1x256xf32, #tpu.memory_space<vmem>>, %arg4: memref<16x256xbf16, #tpu.memory_space<vmem>>) attributes {dimension_semantics = [#tpu.dimension_semantics<parallel>], iteration_bounds = array<i64: 1>, scalar_prefetch = 0 : i64, scratch_operands = 0 : i64, tpu.core_type = #tpu.core_type<tc>, window_params = [{transform_indices = @transform_0, window_bounds = array<i64: 16, 576>}, {pipeline_mode = #tpu.pipeline_mode<synchronous>, transform_indices = @transform_1, window_bounds = array<i64: 576, 256>}, {pipeline_mode = #tpu.pipeline_mode<synchronous>, transform_indices = @transform_2, window_bounds = array<i64: 1, 256>}, {transform_indices = @transform_3, window_bounds = array<i64: 16, 256>}]} {
    %c0 = arith.constant 0 : index
    %c0_0 = arith.constant 0 : index
    %0 = vector.load %arg1[%c0, %c0_0] : memref<16x576xbf16, #tpu.memory_space<vmem>>, vector<16x576xbf16>
    %c0_1 = arith.constant 0 : index
    %c0_2 = arith.constant 0 : index
    %1 = vector.load %arg2[%c0_1, %c0_2] : memref<576x256xbf16, #tpu.memory_space<vmem>>, vector<576x256xbf16>
    %cst = arith.constant dense<0.000000e+00> : vector<16x256xf32>
    %2 = tpu.matmul %0, %1, %cst {dimension_numbers = #tpu.dot_dimension_numbers<[1], [0], [0], [1], [0, 0, 1, 1], [], []>} : vector<16x576xbf16>, vector<576x256xbf16>, vector<16x256xf32> -> vector<16x256xf32>
    %c0_3 = arith.constant 0 : index
    %c0_4 = arith.constant 0 : index
    %3 = vector.load %arg3[%c0_3, %c0_4] : memref<1x256xf32, #tpu.memory_space<vmem>>, vector<1x256xf32>
    %4 = vector.broadcast %3 : vector<1x256xf32> to vector<16x256xf32>
    %5 = arith.addf %2, %4 : vector<16x256xf32>
    %6 = tpu.iota {dimensions = array<i32: 1>} : vector<16x256xi32>
    %c128_i32 = arith.constant 128 : i32
    %7 = vector.broadcast %c128_i32 : i32 to vector<16x256xi32>
    %8 = arith.cmpi slt, %6, %7 : vector<16x256xi32>
    %cst_5 = arith.constant 0.000000e+00 : f32
    %9 = vector.broadcast %cst_5 : f32 to vector<16x256xf32>
    %10 = arith.maximumf %5, %9 : vector<16x256xf32>
    %11 = arith.select %8, %10, %5 : vector<16x256xi1>, vector<16x256xf32>
    %12 = arith.truncf %11 : vector<16x256xf32> to vector<16x256xbf16>
    %c0_6 = arith.constant 0 : index
    %c0_7 = arith.constant 0 : index
    %13 = vector.load %arg4[%c0_6, %c0_7] : memref<16x256xbf16, #tpu.memory_space<vmem>>, vector<16x256xbf16>
    tpu.vector_store %arg4[%c0_6, %c0_7], %12 {strides = array<i32>} : memref<16x256xbf16, #tpu.memory_space<vmem>>, vector<16x256xbf16>,
    return
  }
  func.func @transform_0(%arg0: i32) -> (i32, i32) {
    %c0_i32 = arith.constant 0 : i32
    %c0_i32_0 = arith.constant 0 : i32
    return %arg0, %c0_i32 : i32, i32
  }
  func.func @transform_1(%arg0: i32) -> (i32, i32) {
    %c0_i32 = arith.constant 0 : i32
    %c0_i32_0 = arith.constant 0 : i32
    %c0_i32_1 = arith.constant 0 : i32
    return %c0_i32, %c0_i32_0 : i32, i32
  }
  func.func @transform_2(%arg0: i32) -> (i32, i32) {
    %c0_i32 = arith.constant 0 : i32
    %c0_i32_0 = arith.constant 0 : i32
    %c0_i32_1 = arith.constant 0 : i32
    return %c0_i32, %c0_i32_0 : i32, i32
  }
  func.func @transform_3(%arg0: i32) -> (i32, i32) {
    %c0_i32 = arith.constant 0 : i32
    %c0_i32_0 = arith.constant 0 : i32
    return %arg0, %c0_i32 : i32, i32
  }
}

module attributes {stable_mosaic.version = 11 : i64} {
  func.func @_mm_bias_kernel(%arg0: i32, %arg1: memref<16x1152xbf16, #tpu.memory_space<vmem>>, %arg2: memref<1152x128xbf16, #tpu.memory_space<vmem>>, %arg3: memref<1x128xf32, #tpu.memory_space<vmem>>, %arg4: memref<16x128xbf16, #tpu.memory_space<vmem>>) attributes {dimension_semantics = [#tpu.dimension_semantics<parallel>], iteration_bounds = array<i64: 1>, scalar_prefetch = 0 : i64, scratch_operands = 0 : i64, tpu.core_type = #tpu.core_type<tc>, window_params = [{transform_indices = @transform_0, window_bounds = array<i64: 16, 1152>}, {pipeline_mode = #tpu.pipeline_mode<synchronous>, transform_indices = @transform_1, window_bounds = array<i64: 1152, 128>}, {pipeline_mode = #tpu.pipeline_mode<synchronous>, transform_indices = @transform_2, window_bounds = array<i64: 1, 128>}, {transform_indices = @transform_3, window_bounds = array<i64: 16, 128>}]} {
    %c0 = arith.constant 0 : index
    %c0_0 = arith.constant 0 : index
    %0 = vector.load %arg1[%c0, %c0_0] : memref<16x1152xbf16, #tpu.memory_space<vmem>>, vector<16x1152xbf16>
    %c0_1 = arith.constant 0 : index
    %c0_2 = arith.constant 0 : index
    %1 = vector.load %arg2[%c0_1, %c0_2] : memref<1152x128xbf16, #tpu.memory_space<vmem>>, vector<1152x128xbf16>
    %cst = arith.constant dense<0.000000e+00> : vector<16x128xf32>
    %2 = tpu.matmul %0, %1, %cst {dimension_numbers = #tpu.dot_dimension_numbers<[1], [0], [0], [1], [0, 0, 1, 1], [], []>} : vector<16x1152xbf16>, vector<1152x128xbf16>, vector<16x128xf32> -> vector<16x128xf32>
    %c0_3 = arith.constant 0 : index
    %c0_4 = arith.constant 0 : index
    %3 = vector.load %arg3[%c0_3, %c0_4] : memref<1x128xf32, #tpu.memory_space<vmem>>, vector<1x128xf32>
    %4 = vector.broadcast %3 : vector<1x128xf32> to vector<16x128xf32>
    %5 = arith.addf %2, %4 : vector<16x128xf32>
    %cst_5 = arith.constant 0.000000e+00 : f32
    %6 = vector.broadcast %cst_5 : f32 to vector<16x128xf32>
    %7 = arith.maximumf %5, %6 : vector<16x128xf32>
    %8 = arith.truncf %7 : vector<16x128xf32> to vector<16x128xbf16>
    %c0_6 = arith.constant 0 : index
    %c0_7 = arith.constant 0 : index
    %9 = vector.load %arg4[%c0_6, %c0_7] : memref<16x128xbf16, #tpu.memory_space<vmem>>, vector<16x128xbf16>
    tpu.vector_store %arg4[%c0_6, %c0_7], %8 {strides = array<i32>} : memref<16x128xbf16, #tpu.memory_space<vmem>>, vector<16x128xbf16>,
    return
  }
  func.func @transform_0(%arg0: i32) -> (i32, i32) {
    %c0_i32 = arith.constant 0 : i32
    %c0_i32_0 = arith.constant 0 : i32
    return %arg0, %c0_i32 : i32, i32
  }
  func.func @transform_1(%arg0: i32) -> (i32, i32) {
    %c0_i32 = arith.constant 0 : i32
    %c0_i32_0 = arith.constant 0 : i32
    %c0_i32_1 = arith.constant 0 : i32
    return %c0_i32, %c0_i32_0 : i32, i32
  }
  func.func @transform_2(%arg0: i32) -> (i32, i32) {
    %c0_i32 = arith.constant 0 : i32
    %c0_i32_0 = arith.constant 0 : i32
    %c0_i32_1 = arith.constant 0 : i32
    return %c0_i32, %c0_i32_0 : i32, i32
  }
  func.func @transform_3(%arg0: i32) -> (i32, i32) {
    %c0_i32 = arith.constant 0 : i32
    %c0_i32_0 = arith.constant 0 : i32
    return %arg0, %c0_i32 : i32, i32
  }
}

module attributes {stable_mosaic.version = 11 : i64} {
  func.func @_mm_bias_res_kernel(%arg0: i32, %arg1: memref<16x1152xbf16, #tpu.memory_space<vmem>>, %arg2: memref<1152x128xbf16, #tpu.memory_space<vmem>>, %arg3: memref<1x128xf32, #tpu.memory_space<vmem>>, %arg4: memref<16x128xbf16, #tpu.memory_space<vmem>>, %arg5: memref<16x128xbf16, #tpu.memory_space<vmem>>) attributes {dimension_semantics = [#tpu.dimension_semantics<parallel>], iteration_bounds = array<i64: 1>, scalar_prefetch = 0 : i64, scratch_operands = 0 : i64, tpu.core_type = #tpu.core_type<tc>, window_params = [{transform_indices = @transform_0, window_bounds = array<i64: 16, 1152>}, {pipeline_mode = #tpu.pipeline_mode<synchronous>, transform_indices = @transform_1, window_bounds = array<i64: 1152, 128>}, {pipeline_mode = #tpu.pipeline_mode<synchronous>, transform_indices = @transform_2, window_bounds = array<i64: 1, 128>}, {transform_indices = @transform_3, window_bounds = array<i64: 16, 128>}, {transform_indices = @transform_4, window_bounds = array<i64: 16, 128>}]} {
    %c0 = arith.constant 0 : index
    %c0_0 = arith.constant 0 : index
    %0 = vector.load %arg1[%c0, %c0_0] : memref<16x1152xbf16, #tpu.memory_space<vmem>>, vector<16x1152xbf16>
    %c0_1 = arith.constant 0 : index
    %c0_2 = arith.constant 0 : index
    %1 = vector.load %arg2[%c0_1, %c0_2] : memref<1152x128xbf16, #tpu.memory_space<vmem>>, vector<1152x128xbf16>
    %cst = arith.constant dense<0.000000e+00> : vector<16x128xf32>
    %2 = tpu.matmul %0, %1, %cst {dimension_numbers = #tpu.dot_dimension_numbers<[1], [0], [0], [1], [0, 0, 1, 1], [], []>} : vector<16x1152xbf16>, vector<1152x128xbf16>, vector<16x128xf32> -> vector<16x128xf32>
    %c0_3 = arith.constant 0 : index
    %c0_4 = arith.constant 0 : index
    %3 = vector.load %arg3[%c0_3, %c0_4] : memref<1x128xf32, #tpu.memory_space<vmem>>, vector<1x128xf32>
    %4 = vector.broadcast %3 : vector<1x128xf32> to vector<16x128xf32>
    %5 = arith.addf %2, %4 : vector<16x128xf32>
    %c0_5 = arith.constant 0 : index
    %c0_6 = arith.constant 0 : index
    %6 = vector.load %arg4[%c0_5, %c0_6] : memref<16x128xbf16, #tpu.memory_space<vmem>>, vector<16x128xbf16>
    %7 = arith.extf %6 : vector<16x128xbf16> to vector<16x128xf32>
    %8 = arith.addf %5, %7 : vector<16x128xf32>
    %cst_7 = arith.constant 0.000000e+00 : f32
    %9 = vector.broadcast %cst_7 : f32 to vector<16x128xf32>
    %10 = arith.maximumf %8, %9 : vector<16x128xf32>
    %11 = arith.truncf %10 : vector<16x128xf32> to vector<16x128xbf16>
    %c0_8 = arith.constant 0 : index
    %c0_9 = arith.constant 0 : index
    %12 = vector.load %arg5[%c0_8, %c0_9] : memref<16x128xbf16, #tpu.memory_space<vmem>>, vector<16x128xbf16>
    tpu.vector_store %arg5[%c0_8, %c0_9], %11 {strides = array<i32>} : memref<16x128xbf16, #tpu.memory_space<vmem>>, vector<16x128xbf16>,
    return
  }
  func.func @transform_0(%arg0: i32) -> (i32, i32) {
    %c0_i32 = arith.constant 0 : i32
    %c0_i32_0 = arith.constant 0 : i32
    return %arg0, %c0_i32 : i32, i32
  }
  func.func @transform_1(%arg0: i32) -> (i32, i32) {
    %c0_i32 = arith.constant 0 : i32
    %c0_i32_0 = arith.constant 0 : i32
    %c0_i32_1 = arith.constant 0 : i32
    return %c0_i32, %c0_i32_0 : i32, i32
  }
  func.func @transform_2(%arg0: i32) -> (i32, i32) {
    %c0_i32 = arith.constant 0 : i32
    %c0_i32_0 = arith.constant 0 : i32
    %c0_i32_1 = arith.constant 0 : i32
    return %c0_i32, %c0_i32_0 : i32, i32
  }
  func.func @transform_3(%arg0: i32) -> (i32, i32) {
    %c0_i32 = arith.constant 0 : i32
    %c0_i32_0 = arith.constant 0 : i32
    return %arg0, %c0_i32 : i32, i32
  }
  func.func @transform_4(%arg0: i32) -> (i32, i32) {
    %c0_i32 = arith.constant 0 : i32
    %c0_i32_0 = arith.constant 0 : i32
    return %arg0, %c0_i32 : i32, i32
  }
}

module attributes {stable_mosaic.version = 11 : i64} {
  func.func @_head_kernel(%arg0: i32, %arg1: memref<16x1152xbf16, #tpu.memory_space<vmem>>, %arg2: memref<1152x128xbf16, #tpu.memory_space<vmem>>, %arg3: memref<1x128xf32, #tpu.memory_space<vmem>>, %arg4: memref<128x128xbf16, #tpu.memory_space<vmem>>, %arg5: memref<1x128xf32, #tpu.memory_space<vmem>>, %arg6: memref<16x128xf32, #tpu.memory_space<vmem>>) attributes {dimension_semantics = [#tpu.dimension_semantics<parallel>], iteration_bounds = array<i64: 1>, scalar_prefetch = 0 : i64, scratch_operands = 0 : i64, tpu.core_type = #tpu.core_type<tc>, window_params = [{transform_indices = @transform_0, window_bounds = array<i64: 16, 1152>}, {pipeline_mode = #tpu.pipeline_mode<synchronous>, transform_indices = @transform_1, window_bounds = array<i64: 1152, 128>}, {pipeline_mode = #tpu.pipeline_mode<synchronous>, transform_indices = @transform_2, window_bounds = array<i64: 1, 128>}, {pipeline_mode = #tpu.pipeline_mode<synchronous>, transform_indices = @transform_3, window_bounds = array<i64: 128, 128>}, {pipeline_mode = #tpu.pipeline_mode<synchronous>, transform_indices = @transform_4, window_bounds = array<i64: 1, 128>}, {transform_indices = @transform_5, window_bounds = array<i64: 16, 128>}]} {
    %c0 = arith.constant 0 : index
    %c0_0 = arith.constant 0 : index
    %0 = vector.load %arg1[%c0, %c0_0] : memref<16x1152xbf16, #tpu.memory_space<vmem>>, vector<16x1152xbf16>
    %c0_1 = arith.constant 0 : index
    %c0_2 = arith.constant 0 : index
    %1 = vector.load %arg2[%c0_1, %c0_2] : memref<1152x128xbf16, #tpu.memory_space<vmem>>, vector<1152x128xbf16>
    %cst = arith.constant dense<0.000000e+00> : vector<16x128xf32>
    %2 = tpu.matmul %0, %1, %cst {dimension_numbers = #tpu.dot_dimension_numbers<[1], [0], [0], [1], [0, 0, 1, 1], [], []>} : vector<16x1152xbf16>, vector<1152x128xbf16>, vector<16x128xf32> -> vector<16x128xf32>
    %c0_3 = arith.constant 0 : index
    %c0_4 = arith.constant 0 : index
    %3 = vector.load %arg3[%c0_3, %c0_4] : memref<1x128xf32, #tpu.memory_space<vmem>>, vector<1x128xf32>
    %4 = vector.broadcast %3 : vector<1x128xf32> to vector<16x128xf32>
    %5 = arith.addf %2, %4 : vector<16x128xf32>
    %cst_5 = arith.constant 0.000000e+00 : f32
    %6 = vector.broadcast %cst_5 : f32 to vector<16x128xf32>
    %7 = arith.maximumf %5, %6 : vector<16x128xf32>
    %8 = arith.truncf %7 : vector<16x128xf32> to vector<16x128xbf16>
    %c0_6 = arith.constant 0 : index
    %c0_7 = arith.constant 0 : index
    %9 = vector.load %arg4[%c0_6, %c0_7] : memref<128x128xbf16, #tpu.memory_space<vmem>>, vector<128x128xbf16>
    %cst_8 = arith.constant dense<0.000000e+00> : vector<16x128xf32>
    %10 = tpu.matmul %8, %9, %cst_8 {dimension_numbers = #tpu.dot_dimension_numbers<[1], [0], [0], [1], [0, 0, 1, 1], [], []>} : vector<16x128xbf16>, vector<128x128xbf16>, vector<16x128xf32> -> vector<16x128xf32>
    %c0_9 = arith.constant 0 : index
    %c0_10 = arith.constant 0 : index
    %11 = vector.load %arg5[%c0_9, %c0_10] : memref<1x128xf32, #tpu.memory_space<vmem>>, vector<1x128xf32>
    %12 = vector.broadcast %11 : vector<1x128xf32> to vector<16x128xf32>
    %13 = arith.addf %10, %12 : vector<16x128xf32>
    %c0_11 = arith.constant 0 : index
    %c0_12 = arith.constant 0 : index
    %14 = vector.load %arg6[%c0_11, %c0_12] : memref<16x128xf32, #tpu.memory_space<vmem>>, vector<16x128xf32>
    tpu.vector_store %arg6[%c0_11, %c0_12], %13 {strides = array<i32>} : memref<16x128xf32, #tpu.memory_space<vmem>>, vector<16x128xf32>,
    return
  }
  func.func @transform_0(%arg0: i32) -> (i32, i32) {
    %c0_i32 = arith.constant 0 : i32
    %c0_i32_0 = arith.constant 0 : i32
    return %arg0, %c0_i32 : i32, i32
  }
  func.func @transform_1(%arg0: i32) -> (i32, i32) {
    %c0_i32 = arith.constant 0 : i32
    %c0_i32_0 = arith.constant 0 : i32
    %c0_i32_1 = arith.constant 0 : i32
    return %c0_i32, %c0_i32_0 : i32, i32
  }
  func.func @transform_2(%arg0: i32) -> (i32, i32) {
    %c0_i32 = arith.constant 0 : i32
    %c0_i32_0 = arith.constant 0 : i32
    %c0_i32_1 = arith.constant 0 : i32
    return %c0_i32, %c0_i32_0 : i32, i32
  }
  func.func @transform_3(%arg0: i32) -> (i32, i32) {
    %c0_i32 = arith.constant 0 : i32
    %c0_i32_0 = arith.constant 0 : i32
    %c0_i32_1 = arith.constant 0 : i32
    return %c0_i32, %c0_i32_0 : i32, i32
  }
  func.func @transform_4(%arg0: i32) -> (i32, i32) {
    %c0_i32 = arith.constant 0 : i32
    %c0_i32_0 = arith.constant 0 : i32
    %c0_i32_1 = arith.constant 0 : i32
    return %c0_i32, %c0_i32_0 : i32, i32
  }
  func.func @transform_5(%arg0: i32) -> (i32, i32) {
    %c0_i32 = arith.constant 0 : i32
    %c0_i32_0 = arith.constant 0 : i32
    return %arg0, %c0_i32 : i32, i32
  }
}

</mosaic_0001>

<llo_original>
// kernel: centernet_forward.10
$region0: #{centernet_forward.10}
  #allocation0 [shape = 'u32[]', space=smem, size = 0x4, offset = 0x4, fixed_abs, tag = 'smem constant byte address 0x4 - core index']
  #allocation1 [shape = 'u32[72,128]{1,0:T(1,128)}', space=vmem, size = 0x9000, scoped, tag = 'internal scratch']
  %s0 = inlined_call_operand.vmem [shape: bf16[128,160], index: 0, kind: input, shape index: {}]
  %s1 = inlined_call_operand.vmem [shape: bf16[160,128], index: 1, kind: input, shape index: {}]
  %s2 = inlined_call_operand.vmem [shape: f32[1,128], index: 2, kind: input, shape index: {}]
  %s3 = inlined_call_operand.vmem [shape: bf16[128,128], index: 3, kind: output, shape index: {}]
  %s4 = sld [smem:[#allocation0]]
  $region45: #{centernet_forward.10} parent=0
    _
  %s6 = ssub.s32 1, %s4
  %s7 = scalar_select 0, %s6, %s4
  loop: start=0, step=1, limit=4
  $region2: #{centernet_forward.10} parent=0 // loop_pre_header
    _
  $region3: #{centernet_forward.10} parent=0 // loop_header
    %s9 = sphi 0, %s13
    %p10 = scmp.ge.s32.totalorder %s9, 4
    %s19 = sphi 0, %s21
    %s22 = sphi 0, %s19
    %s23 = sphi 0, %s22
    %s39 = sphi 0, %s23
    %s43 = sphi 0, %s43
    %s45 = sphi 0, %s43
    %s46 = sphi 0, %s45
    %s60 = sphi 0, %s46
    %s64 = sphi 0, %s64
    %s66 = sphi 0, %s64
    %s67 = sphi 0, %s66
    %s81 = sphi 0, %s67
    %s87 = sphi 0, %s89
    %s90 = sphi 0, %s87
    %s91 = sphi 0, %s90
    %s107 = sphi 0, %s91
  $region4: #{centernet_forward.10} parent=0 // loop_header_branch
    %12 = sbr.rel (%p10) target = $region8
  $region5: #{centernet_forward.10} parent=0 // loop_body
    %s14 = ssub.s32 %s9, 1
    %s15 = ssub.s32 %s9, 2
    %s16 = sadd.s32 %s9, 1
    %s17 = ssub.s32 %s9, %s16
    %p18 = scmp.eq.s32.totalorder %s17, 0
    %s20 = sadd.s32 %s19, 1
    %s21 = scalar_select %p18, %s19, %s20
    %p24 = pneg %p18
    %p25 = scmp.eq.s32.totalorder %s9, 1
    %p26 = por %p24, %p25
    %p27 = scmp.ne.s32.totalorder %s19, %s22
    %p28 = scmp.eq.s32.totalorder %s9, 0
    %p29 = por %p27, %p28
    %p30 = scmp.ne.s32.totalorder %s19, %s22
    %p31 = scmp.eq.s32.totalorder %s14, 1
    %p32 = por %p30, %p31
    %p33 = scmp.ne.s32.totalorder %s22, %s23
    %p34 = scmp.eq.s32.totalorder %s14, 0
    %p35 = por %p33, %p34
    %p36 = scmp.ne.s32.totalorder %s22, %s23
    %p37 = scmp.eq.s32.totalorder %s15, 1
    %p38 = por %p36, %p37
    %p40 = scmp.ne.s32.totalorder %s23, %s39
    %p41 = scmp.eq.s32.totalorder %s15, 0
    %p42 = por %p40, %p41
    %s44 = sadd.s32 %s43, 1
    %p47 = scmp.eq.s32.totalorder %s9, 1
    %p48 = scmp.ne.s32.totalorder %s43, %s45
    %p49 = scmp.eq.s32.totalorder %s9, 0
    %p50 = por %p48, %p49
    %p51 = scmp.ne.s32.totalorder %s43, %s45
    %p52 = scmp.eq.s32.totalorder %s14, 1
    %p53 = por %p51, %p52
    %p54 = scmp.ne.s32.totalorder %s45, %s46
    %p55 = scmp.eq.s32.totalorder %s14, 0
    %p56 = por %p54, %p55
    %p57 = scmp.ne.s32.totalorder %s45, %s46
    %p58 = scmp.eq.s32.totalorder %s15, 1
    %p59 = por %p57, %p58
    %p61 = scmp.ne.s32.totalorder %s46, %s60
    %p62 = scmp.eq.s32.totalorder %s15, 0
    %p63 = por %p61, %p62
    %s65 = sadd.s32 %s64, 1
    %p68 = scmp.eq.s32.totalorder %s9, 1
    %p69 = scmp.ne.s32.totalorder %s64, %s66
    %p70 = scmp.eq.s32.totalorder %s9, 0
    %p71 = por %p69, %p70
    %p72 = scmp.ne.s32.totalorder %s64, %s66
    %p73 = scmp.eq.s32.totalorder %s14, 1
    %p74 = por %p72, %p73
    %p75 = scmp.ne.s32.totalorder %s66, %s67
    %p76 = scmp.eq.s32.totalorder %s14, 0
    %p77 = por %p75, %p76
    %p78 = scmp.ne.s32.totalorder %s66, %s67
    %p79 = scmp.eq.s32.totalorder %s15, 1
    %p80 = por %p78, %p79
    %p82 = scmp.ne.s32.totalorder %s67, %s81
    %p83 = scmp.eq.s32.totalorder %s15, 0
    %p84 = por %p82, %p83
    %s85 = ssub.s32 %s9, %s16
    %p86 = scmp.eq.s32.totalorder %s85, 0
    %s88 = sadd.s32 %s87, 1
    %s89 = scalar_select %p86, %s87, %s88
    %p92 = pneg %p86
    %p93 = scmp.eq.s32.totalorder %s9, 1
    %p94 = por %p92, %p93
    %p95 = scmp.ne.s32.totalorder %s87, %s90
    %p96 = scmp.eq.s32.totalorder %s9, 0
    %p97 = por %p95, %p96
    %p98 = scmp.ne.s32.totalorder %s87, %s90
    %p99 = scmp.eq.s32.totalorder %s14, 1
    %p100 = por %p98, %p99
    %p101 = scmp.ne.s32.totalorder %s90, %s91
    %p102 = scmp.eq.s32.totalorder %s14, 0
    %p103 = por %p101, %p102
    %p104 = scmp.ne.s32.totalorder %s90, %s91
    %p105 = scmp.eq.s32.totalorder %s15, 1
    %p106 = por %p104, %p105
    %p108 = scmp.ne.s32.totalorder %s91, %s107
    %p109 = scmp.eq.s32.totalorder %s15, 0
    %p110 = por %p108, %p109
    %p111 = scmp.le.s32.totalorder 1, %s9
    %p112 = scmp.lt.s32.totalorder %s9, 3
    %p113 = pnand %p111, %p112
    %p114 = pneg %p113
    // Predicated region
    $region9: #{centernet_forward.10} parent=5 // pred_check
      _
    $region10: #{centernet_forward.10} parent=5 // pred_check_branch
      %116 = sbr.rel (%p113) target = $region12
    $region11: #{centernet_forward.10} parent=5 // pred_region
      %s117 = ssub.s32 %s9, 1
      // Predicated region
      $region13: #{centernet_forward.10} parent=11 // pred_check
        %p118 = pneg %p56
      $region14: #{centernet_forward.10} parent=11 // pred_check_branch
        %120 = sbr.rel (%p118) target = $region16
      $region15: #{centernet_forward.10} parent=11 // pred_region
        _
      $region16: #{centernet_forward.10} parent=11 // pred_fallthru
        _
      // Predicated region
      $region17: #{centernet_forward.10} parent=11 // pred_check
        %p121 = pneg %p77
      $region18: #{centernet_forward.10} parent=11 // pred_check_branch
        %123 = sbr.rel (%p121) target = $region20
      $region19: #{centernet_forward.10} parent=11 // pred_region
        _
      $region20: #{centernet_forward.10} parent=11 // pred_fallthru
        _
    $region12: #{centernet_forward.10} parent=5 // pred_fallthru
      _
    %p124 = scmp.lt.s32.totalorder %s9, 2
    // Predicated region
    $region21: #{centernet_forward.10} parent=5 // pred_check
      %p125 = pneg %p124
    $region22: #{centernet_forward.10} parent=5 // pred_check_branch
      %127 = sbr.rel (%p125) target = $region24
    $region23: #{centernet_forward.10} parent=5 // pred_region
      // Predicated region
      $region25: #{centernet_forward.10} parent=23 // pred_check
        %p128 = pneg %p29
      $region26: #{centernet_forward.10} parent=23 // pred_check_branch
        %130 = sbr.rel (%p128) target = $region28
      $region27: #{centernet_forward.10} parent=23 // pred_region
        %s131 = smul.u32 8, %s9
        %p132 = scmp.lt.s32.totalorder %s131, 15
        %s133 = scalar_select %p132, %s131, 15
        %s134 = smul.addr %s133, 2
        %s135 = smul.addr %s134, 4
        %s136 = scalar_lea.vmem %s0, %s135
        %s137 = smul.u32 8, %s9
      $region28: #{centernet_forward.10} parent=23 // pred_fallthru
        _
    $region24: #{centernet_forward.10} parent=5 // pred_fallthru
      _
    %p138 = scmp.le.s32.totalorder 1, %s9
    %p139 = scmp.lt.s32.totalorder %s9, 3
    %p140 = pnand %p138, %p139
    %p141 = pneg %p140
    // Predicated region
    $region29: #{centernet_forward.10} parent=5 // pred_check
      _
    $region30: #{centernet_forward.10} parent=5 // pred_check_branch
      %143 = sbr.rel (%p140) target = $region32
    $region31: #{centernet_forward.10} parent=5 // pred_region
      %s144 = ssub.s32 %s9, 1
      %s145 = smul.u32 8, %s14
      %p146 = scmp.lt.s32.totalorder %s145, 15
      %s147 = scalar_select %p146, %s145, 15
      %s148 = smul.addr %s147, 2
      %s149 = smul.addr %s148, 4
      %s150 = scalar_lea.vmem %s0, %s149
      %p151 = pneg %p35
      %p152 = pneg %p32
      %p153 = pneg %p56
      %p154 = pneg %p53
      %p155 = pneg %p77
      %p156 = pneg %p74
      %p157 = pneg %p103
      %p158 = pneg %p100
      %s159 = smul.u32 8, %s14
      %p160 = scmp.lt.s32.totalorder %s159, 15
      %s161 = scalar_select %p160, %s159, 15
      %s162 = smul.addr %s161, 4
      %s163 = scalar_lea.vmem %s3, %s162
      %s164 = smul.u32 8, %s14
      %p165 = scmp.lt.s32.totalorder %s164, 15
      %s166 = scalar_select %p165, %s164, 15
      %s167 = smul.addr %s166, 2
      %s168 = smul.addr %s167, 4
      %s169 = scalar_lea.vmem %s0, %s168
      %s170 = smul.u32 8, %s14
      %s171 = smul.u32 8, %s14
      %p172 = scmp.lt.s32.totalorder %s171, 15
      %s173 = scalar_select %p172, %s171, 15
      %s174 = smul.addr %s173, 4
      %s175 = scalar_lea.vmem %s3, %s174
      %s176 = smul.u32 8, %s14
      %v178 = vld [vmem:[%s169] sm:$0xff]
      %v179 = vld [vmem:[%s169 + $0x8] sm:$0xff]
      %v180 = vld [vmem:[%s169 + $0x10] sm:$0xff]
      %v181 = vld [vmem:[%s169 + $0x18] sm:$0xff]
      %v182 = vld [vmem:[%s169 + $0x20] sm:$0xff]
      %v183 = vld [vmem:[%s169 + $0x28] sm:$0xff]
      %v184 = vld [vmem:[%s169 + $0x30] sm:$0xff]
      %v185 = vld [vmem:[%s169 + $0x38] sm:$0xff]
      %v186 = vld [vmem:[%s1] sm:$0xf]
      %v187 = vld [vmem:[%s1 + $0x4] sm:$0xf]
      %v188 = vld [vmem:[%s1 + $0x8] sm:$0xf]
      %v189 = vld [vmem:[%s1 + $0xc] sm:$0xf]
      %v190 = vld [vmem:[%s1 + $0x10] sm:$0xf]
      %v191 = vld [vmem:[%s1 + $0x14] sm:$0xf]
      %v192 = vld [vmem:[%s1 + $0x18] sm:$0xf]
      %v193 = vld [vmem:[%s1 + $0x1c] sm:$0xf]
      %v194 = vld [vmem:[%s1 + $0x20] sm:$0xf]
      %v195 = vld [vmem:[%s1 + $0x24] sm:$0xf]
      %v196 = vld [vmem:[%s1 + $0x28] sm:$0xf]
      %v197 = vld [vmem:[%s1 + $0x2c] sm:$0xf]
      %v198 = vld [vmem:[%s1 + $0x30] sm:$0xf]
      %v199 = vld [vmem:[%s1 + $0x34] sm:$0xf]
      %v200 = vld [vmem:[%s1 + $0x38] sm:$0xf]
      %v201 = vld [vmem:[%s1 + $0x3c] sm:$0xf]
      %v202 = vld [vmem:[%s1 + $0x40] sm:$0xf]
      %v203 = vld [vmem:[%s1 + $0x44] sm:$0xf]
      %v204 = vld [vmem:[%s1 + $0x48] sm:$0xf]
      %v205 = vld [vmem:[%s1 + $0x4c] sm:$0xf]
      %v206 = vld [vmem:[%s2] sm:$0x1]
      %v208 = vperm.slane %v206, 0
      %v218 = vunpack.c.l.b16 %v178
      %v219 = vunpack.c.h.b16 %v178
      %v220 = vunpack.c.l.b16 %v179
      %v221 = vunpack.c.h.b16 %v179
      %v222 = vunpack.c.l.b16 %v180
      %v223 = vunpack.c.h.b16 %v180
      %v224 = vunpack.c.l.b16 %v181
      %v225 = vunpack.c.h.b16 %v181
      %v226 = vunpack.c.l.b16 %v182
      %v227 = vunpack.c.h.b16 %v182
      %v228 = vunpack.c.l.b16 %v183
      %v229 = vunpack.c.h.b16 %v183
      %v230 = vunpack.c.l.b16 %v184
      %v231 = vunpack.c.h.b16 %v184
      %v232 = vunpack.c.l.b16 %v185
      %v233 = vunpack.c.h.b16 %v185
      %v234 = vpack.c.b16 %v220, %v218
      %v235 = vpack.c.b16 %v221, %v219
      %v236 = vpack.c.b16 %v224, %v222
      %v237 = vpack.c.b16 %v225, %v223
      %v238 = vpack.c.b16 %v228, %v226
      %v239 = vpack.c.b16 %v229, %v227
      %v240 = vpack.c.b16 %v232, %v230
      %v241 = vpack.c.b16 %v233, %v231
      %v266 = vunpack.c.l.b16 %v186
      %v267 = vunpack.c.l.b16 %v187
      %v268 = vunpack.c.l.b16 %v188
      %v269 = vunpack.c.l.b16 %v189
      %v270 = vunpack.c.l.b16 %v190
      %v271 = vunpack.c.l.b16 %v191
      %v272 = vunpack.c.l.b16 %v192
      %v273 = vunpack.c.l.b16 %v193
      %v274 = vunpack.c.l.b16 %v194
      %v275 = vunpack.c.l.b16 %v195
      %v276 = vunpack.c.l.b16 %v196
      %v277 = vunpack.c.l.b16 %v197
      %v278 = vunpack.c.l.b16 %v198
      %v279 = vunpack.c.l.b16 %v199
      %v280 = vunpack.c.l.b16 %v200
      %v281 = vunpack.c.l.b16 %v201
      %v282 = vunpack.c.l.b16 %v202
      %v283 = vunpack.c.l.b16 %v203
      %v284 = vunpack.c.l.b16 %v204
      %v285 = vunpack.c.l.b16 %v205
      %v286 = vpack.c.b16 %v267, %v266
      %v287 = vpack.c.b16 %v269, %v268
      %v288 = vpack.c.b16 %v271, %v270
      %v289 = vpack.c.b16 %v273, %v272
      %v290 = vpack.c.b16 %v275, %v274
      %v291 = vpack.c.b16 %v277, %v276
      %v292 = vpack.c.b16 %v279, %v278
      %v293 = vpack.c.b16 %v281, %v280
      %v294 = vpack.c.b16 %v283, %v282
      %v295 = vpack.c.b16 %v285, %v284
      %vm306 = vcmask 261120
      %v308 = vsel %vm306, %v235, 0
      %v311 = vsel %vm306, %v237, 0
      %v314 = vsel %vm306, %v239, 0
      %v317 = vsel %vm306, %v241, 0
      %319 = vmatpush.bf16.msra.mxu0 %v293
      %320 = vmatpush.bf16.msra.mxu0 %v292
      %321 = vmatpush.bf16.msra.mxu0 %v291
      %322 = vmatpush.bf16.msra.mxu0 %v290
      %323 = vmatpush.bf16.msra.mxu0 %v289
      %324 = vmatpush.bf16.msra.mxu0 %v288
      %325 = vmatpush.bf16.msra.mxu0 %v287
      %326 = vmatpush.bf16.msra.mxu0 %v286
      %327 = vmatmul.bf16.gmra.mxu0 %v234
      %v328 = vpop.f32.mrf.mxu0
      %v329 = vadd.f32 %v208, %v328
      %v330 = vpop.f32.mrf.mxu0
      %v331 = vadd.f32 %v208, %v330
      %332 = vmatmul.bf16.gmra.mxu0 %v236
      %v333 = vpop.f32.mrf.mxu0
      %v334 = vadd.f32 %v208, %v333
      %v335 = vpop.f32.mrf.mxu0
      %v336 = vadd.f32 %v208, %v335
      %337 = vmatmul.bf16.gmra.mxu0 %v238
      %v338 = vpop.f32.mrf.mxu0
      %v339 = vadd.f32 %v208, %v338
      %v340 = vpop.f32.mrf.mxu0
      %v341 = vadd.f32 %v208, %v340
      %342 = vmatmul.bf16.gmra.mxu0 %v240
      %v343 = vpop.f32.mrf.mxu0
      %v344 = vadd.f32 %v208, %v343
      %v345 = vpop.f32.mrf.mxu0
      %v346 = vadd.f32 %v208, %v345
      %347 = vdwg.mxu0
      %348 = vmatpush.bf16.msra.mxu0 0
      %349 = vmatpush.bf16.msra.mxu0 0
      %350 = vmatpush.bf16.msra.mxu0 0
      %351 = vmatpush.bf16.msra.mxu0 0
      %352 = vmatpush.bf16.msra.mxu0 0
      %353 = vmatpush.bf16.msra.mxu0 0
      %354 = vmatpush.bf16.msra.mxu0 %v295
      %355 = vmatpush.bf16.msra.mxu0 %v294
      %356 = vmatmul.bf16.gmra.mxu0 %v308
      %v357 = vpop.f32.mrf.mxu0
      %v358 = vadd.f32 %v329, %v357
      %v359 = vpop.f32.mrf.mxu0
      %v360 = vadd.f32 %v331, %v359
      %361 = vmatmul.bf16.gmra.mxu0 %v311
      %v362 = vpop.f32.mrf.mxu0
      %v363 = vadd.f32 %v334, %v362
      %v364 = vpop.f32.mrf.mxu0
      %v365 = vadd.f32 %v336, %v364
      %366 = vmatmul.bf16.gmra.mxu0 %v314
      %v367 = vpop.f32.mrf.mxu0
      %v368 = vadd.f32 %v339, %v367
      %v369 = vpop.f32.mrf.mxu0
      %v370 = vadd.f32 %v341, %v369
      %371 = vmatmul.bf16.gmra.mxu0 %v317
      %v372 = vpop.f32.mrf.mxu0
      %v373 = vadd.f32 %v344, %v372
      %v374 = vpop.f32.mrf.mxu0
      %v375 = vadd.f32 %v346, %v374
      %376 = vdwg.mxu0
      %v377 = vmax.f32 %v358, 0.0
      %v378 = vmax.f32 %v360, 0.0
      %v379 = vmax.f32 %v363, 0.0
      %v380 = vmax.f32 %v365, 0.0
      %v381 = vmax.f32 %v368, 0.0
      %v382 = vmax.f32 %v370, 0.0
      %v383 = vmax.f32 %v373, 0.0
      %v384 = vmax.f32 %v375, 0.0
      %v385 = vpack.c.bf16 %v377, %v377
      %v386 = vpack.c.bf16 %v378, %v378
      %v387 = vpack.c.bf16 %v379, %v379
      %v388 = vpack.c.bf16 %v380, %v380
      %v389 = vpack.c.bf16 %v381, %v381
      %v390 = vpack.c.bf16 %v382, %v382
      %v391 = vpack.c.bf16 %v383, %v383
      %v392 = vpack.c.bf16 %v384, %v384
      %393 = vst [vmem:[%s175] sm:$0xf] %v385
      %394 = vst [vmem:[%s175 + $0x4] sm:$0xf] %v386
      %395 = vst [vmem:[%s175 + $0x8] sm:$0xf] %v387
      %396 = vst [vmem:[%s175 + $0xc] sm:$0xf] %v388
      %397 = vst [vmem:[%s175 + $0x10] sm:$0xf] %v389
      %398 = vst [vmem:[%s175 + $0x14] sm:$0xf] %v390
      %399 = vst [vmem:[%s175 + $0x18] sm:$0xf] %v391
      %400 = vst [vmem:[%s175 + $0x1c] sm:$0xf] %v392
      %s401 = smul.u32 8, %s14
      %p402 = scmp.lt.s32.totalorder %s401, 15
      %s403 = scalar_select %p402, %s401, 15
      %s404 = smul.addr %s403, 4
      %s405 = scalar_lea.vmem %s3, %s404
      // Predicated region
      $region33: #{centernet_forward.10} parent=31 // pred_check
        %p406 = pneg %p100
      $region34: #{centernet_forward.10} parent=31 // pred_check_branch
        %408 = sbr.rel (%p406) target = $region36
      $region35: #{centernet_forward.10} parent=31 // pred_region
        %s409 = smul.u32 8, %s14
      $region36: #{centernet_forward.10} parent=31 // pred_fallthru
        _
    $region32: #{centernet_forward.10} parent=5 // pred_fallthru
      _
    %p410 = scmp.le.s32.totalorder 2, %s9
    // Predicated region
    $region37: #{centernet_forward.10} parent=5 // pred_check
      %p411 = pneg %p410
    $region38: #{centernet_forward.10} parent=5 // pred_check_branch
      %413 = sbr.rel (%p411) target = $region40
    $region39: #{centernet_forward.10} parent=5 // pred_region
      %s414 = ssub.s32 %s9, 2
      // Predicated region
      $region41: #{centernet_forward.10} parent=39 // pred_check
        %p415 = pneg %p106
      $region42: #{centernet_forward.10} parent=39 // pred_check_branch
        %417 = sbr.rel (%p415) target = $region44
      $region43: #{centernet_forward.10} parent=39 // pred_region
        %s418 = smul.u32 8, %s15
        %p419 = scmp.lt.s32.totalorder %s418, 15
        %s420 = scalar_select %p419, %s418, 15
        %s421 = smul.addr %s420, 4
        %s422 = scalar_lea.vmem %s3, %s421
      $region44: #{centernet_forward.10} parent=39 // pred_fallthru
        _
    $region40: #{centernet_forward.10} parent=5 // pred_fallthru
      _
  $region6: #{centernet_forward.10} parent=0 // loop_footer
    %s13 = sadd.s32 1, %s9
  $region7: #{centernet_forward.10} parent=0 // loop_footer_branch
    %8 = sbr.rel target = $region3
  $region8: #{centernet_forward.10} parent=0 // loop_exit
    _

// kernel: centernet_forward.11
$region0: #{centernet_forward.11}
  #allocation0 [shape = 'u32[]', space=smem, size = 0x4, offset = 0x4, fixed_abs, tag = 'smem constant byte address 0x4 - core index']
  #allocation1 [shape = 'u32[72,128]{1,0:T(1,128)}', space=vmem, size = 0x9000, scoped, tag = 'internal scratch']
  %s0 = inlined_call_operand.vmem [shape: bf16[32,576], index: 0, kind: input, shape index: {}]
  %s1 = inlined_call_operand.vmem [shape: bf16[576,128], index: 1, kind: input, shape index: {}]
  %s2 = inlined_call_operand.vmem [shape: f32[1,128], index: 2, kind: input, shape index: {}]
  %s3 = inlined_call_operand.vmem [shape: bf16[32,128], index: 3, kind: output, shape index: {}]
  %s4 = sld [smem:[#allocation0]]
  $region45: #{centernet_forward.11} parent=0
    _
  %s6 = ssub.s32 1, %s4
  %s7 = scalar_select 0, %s6, %s4
  loop: start=0, step=1, limit=4
  $region2: #{centernet_forward.11} parent=0 // loop_pre_header
    _
  $region3: #{centernet_forward.11} parent=0 // loop_header
    %s9 = sphi 0, %s13
    %p10 = scmp.ge.s32.totalorder %s9, 4
    %s19 = sphi 0, %s21
    %s22 = sphi 0, %s19
    %s23 = sphi 0, %s22
    %s39 = sphi 0, %s23
    %s43 = sphi 0, %s43
    %s45 = sphi 0, %s43
    %s46 = sphi 0, %s45
    %s60 = sphi 0, %s46
    %s64 = sphi 0, %s64
    %s66 = sphi 0, %s64
    %s67 = sphi 0, %s66
    %s81 = sphi 0, %s67
    %s87 = sphi 0, %s89
    %s90 = sphi 0, %s87
    %s91 = sphi 0, %s90
    %s107 = sphi 0, %s91
  $region4: #{centernet_forward.11} parent=0 // loop_header_branch
    %12 = sbr.rel (%p10) target = $region8
  $region5: #{centernet_forward.11} parent=0 // loop_body
    %s14 = ssub.s32 %s9, 1
    %s15 = ssub.s32 %s9, 2
    %s16 = sadd.s32 %s9, 1
    %s17 = ssub.s32 %s9, %s16
    %p18 = scmp.eq.s32.totalorder %s17, 0
    %s20 = sadd.s32 %s19, 1
    %s21 = scalar_select %p18, %s19, %s20
    %p24 = pneg %p18
    %p25 = scmp.eq.s32.totalorder %s9, 1
    %p26 = por %p24, %p25
    %p27 = scmp.ne.s32.totalorder %s19, %s22
    %p28 = scmp.eq.s32.totalorder %s9, 0
    %p29 = por %p27, %p28
    %p30 = scmp.ne.s32.totalorder %s19, %s22
    %p31 = scmp.eq.s32.totalorder %s14, 1
    %p32 = por %p30, %p31
    %p33 = scmp.ne.s32.totalorder %s22, %s23
    %p34 = scmp.eq.s32.totalorder %s14, 0
    %p35 = por %p33, %p34
    %p36 = scmp.ne.s32.totalorder %s22, %s23
    %p37 = scmp.eq.s32.totalorder %s15, 1
    %p38 = por %p36, %p37
    %p40 = scmp.ne.s32.totalorder %s23, %s39
    %p41 = scmp.eq.s32.totalorder %s15, 0
    %p42 = por %p40, %p41
    %s44 = sadd.s32 %s43, 1
    %p47 = scmp.eq.s32.totalorder %s9, 1
    %p48 = scmp.ne.s32.totalorder %s43, %s45
    %p49 = scmp.eq.s32.totalorder %s9, 0
    %p50 = por %p48, %p49
    %p51 = scmp.ne.s32.totalorder %s43, %s45
    %p52 = scmp.eq.s32.totalorder %s14, 1
    %p53 = por %p51, %p52
    %p54 = scmp.ne.s32.totalorder %s45, %s46
    %p55 = scmp.eq.s32.totalorder %s14, 0
    %p56 = por %p54, %p55
    %p57 = scmp.ne.s32.totalorder %s45, %s46
    %p58 = scmp.eq.s32.totalorder %s15, 1
    %p59 = por %p57, %p58
    %p61 = scmp.ne.s32.totalorder %s46, %s60
    %p62 = scmp.eq.s32.totalorder %s15, 0
    %p63 = por %p61, %p62
    %s65 = sadd.s32 %s64, 1
    %p68 = scmp.eq.s32.totalorder %s9, 1
    %p69 = scmp.ne.s32.totalorder %s64, %s66
    %p70 = scmp.eq.s32.totalorder %s9, 0
    %p71 = por %p69, %p70
    %p72 = scmp.ne.s32.totalorder %s64, %s66
    %p73 = scmp.eq.s32.totalorder %s14, 1
    %p74 = por %p72, %p73
    %p75 = scmp.ne.s32.totalorder %s66, %s67
    %p76 = scmp.eq.s32.totalorder %s14, 0
    %p77 = por %p75, %p76
    %p78 = scmp.ne.s32.totalorder %s66, %s67
    %p79 = scmp.eq.s32.totalorder %s15, 1
    %p80 = por %p78, %p79
    %p82 = scmp.ne.s32.totalorder %s67, %s81
    %p83 = scmp.eq.s32.totalorder %s15, 0
    %p84 = por %p82, %p83
    %s85 = ssub.s32 %s9, %s16
    %p86 = scmp.eq.s32.totalorder %s85, 0
    %s88 = sadd.s32 %s87, 1
    %s89 = scalar_select %p86, %s87, %s88
    %p92 = pneg %p86
    %p93 = scmp.eq.s32.totalorder %s9, 1
    %p94 = por %p92, %p93
    %p95 = scmp.ne.s32.totalorder %s87, %s90
    %p96 = scmp.eq.s32.totalorder %s9, 0
    %p97 = por %p95, %p96
    %p98 = scmp.ne.s32.totalorder %s87, %s90
    %p99 = scmp.eq.s32.totalorder %s14, 1
    %p100 = por %p98, %p99
    %p101 = scmp.ne.s32.totalorder %s90, %s91
    %p102 = scmp.eq.s32.totalorder %s14, 0
    %p103 = por %p101, %p102
    %p104 = scmp.ne.s32.totalorder %s90, %s91
    %p105 = scmp.eq.s32.totalorder %s15, 1
    %p106 = por %p104, %p105
    %p108 = scmp.ne.s32.totalorder %s91, %s107
    %p109 = scmp.eq.s32.totalorder %s15, 0
    %p110 = por %p108, %p109
    %p111 = scmp.le.s32.totalorder 1, %s9
    %p112 = scmp.lt.s32.totalorder %s9, 3
    %p113 = pnand %p111, %p112
    %p114 = pneg %p113
    // Predicated region
    $region9: #{centernet_forward.11} parent=5 // pred_check
      _
    $region10: #{centernet_forward.11} parent=5 // pred_check_branch
      %116 = sbr.rel (%p113) target = $region12
    $region11: #{centernet_forward.11} parent=5 // pred_region
      %s117 = ssub.s32 %s9, 1
      // Predicated region
      $region13: #{centernet_forward.11} parent=11 // pred_check
        %p118 = pneg %p56
      $region14: #{centernet_forward.11} parent=11 // pred_check_branch
        %120 = sbr.rel (%p118) target = $region16
      $region15: #{centernet_forward.11} parent=11 // pred_region
        _
      $region16: #{centernet_forward.11} parent=11 // pred_fallthru
        _
      // Predicated region
      $region17: #{centernet_forward.11} parent=11 // pred_check
        %p121 = pneg %p77
      $region18: #{centernet_forward.11} parent=11 // pred_check_branch
        %123 = sbr.rel (%p121) target = $region20
      $region19: #{centernet_forward.11} parent=11 // pred_region
        _
      $region20: #{centernet_forward.11} parent=11 // pred_fallthru
        _
    $region12: #{centernet_forward.11} parent=5 // pred_fallthru
      _
    %p124 = scmp.lt.s32.totalorder %s9, 2
    // Predicated region
    $region21: #{centernet_forward.11} parent=5 // pred_check
      %p125 = pneg %p124
    $region22: #{centernet_forward.11} parent=5 // pred_check_branch
      %127 = sbr.rel (%p125) target = $region24
    $region23: #{centernet_forward.11} parent=5 // pred_region
      // Predicated region
      $region25: #{centernet_forward.11} parent=23 // pred_check
        %p128 = pneg %p29
      $region26: #{centernet_forward.11} parent=23 // pred_check_branch
        %130 = sbr.rel (%p128) target = $region28
      $region27: #{centernet_forward.11} parent=23 // pred_region
        %s131 = smul.u32 2, %s9
        %p132 = scmp.lt.s32.totalorder %s131, 3
        %s133 = scalar_select %p132, %s131, 3
        %s134 = smul.addr %s133, 5
        %s135 = smul.addr %s134, 4
        %s136 = scalar_lea.vmem %s0, %s135
        %s137 = smul.u32 2, %s9
      $region28: #{centernet_forward.11} parent=23 // pred_fallthru
        _
    $region24: #{centernet_forward.11} parent=5 // pred_fallthru
      _
    %p138 = scmp.le.s32.totalorder 1, %s9
    %p139 = scmp.lt.s32.totalorder %s9, 3
    %p140 = pnand %p138, %p139
    %p141 = pneg %p140
    // Predicated region
    $region29: #{centernet_forward.11} parent=5 // pred_check
      _
    $region30: #{centernet_forward.11} parent=5 // pred_check_branch
      %143 = sbr.rel (%p140) target = $region32
    $region31: #{centernet_forward.11} parent=5 // pred_region
      %s144 = ssub.s32 %s9, 1
      %s145 = smul.u32 2, %s14
      %p146 = scmp.lt.s32.totalorder %s145, 3
      %s147 = scalar_select %p146, %s145, 3
      %s148 = smul.addr %s147, 5
      %s149 = smul.addr %s148, 4
      %s150 = scalar_lea.vmem %s0, %s149
      %p151 = pneg %p35
      %p152 = pneg %p32
      %p153 = pneg %p56
      %p154 = pneg %p53
      %p155 = pneg %p77
      %p156 = pneg %p74
      %p157 = pneg %p103
      %p158 = pneg %p100
      %s159 = smul.u32 2, %s14
      %p160 = scmp.lt.s32.totalorder %s159, 3
      %s161 = scalar_select %p160, %s159, 3
      %s162 = smul.addr %s161, 4
      %s163 = scalar_lea.vmem %s3, %s162
      %s164 = smul.u32 2, %s14
      %p165 = scmp.lt.s32.totalorder %s164, 3
      %s166 = scalar_select %p165, %s164, 3
      %s167 = smul.addr %s166, 5
      %s168 = smul.addr %s167, 4
      %s169 = scalar_lea.vmem %s0, %s168
      %s170 = smul.u32 2, %s14
      %s171 = smul.u32 2, %s14
      %p172 = scmp.lt.s32.totalorder %s171, 3
      %s173 = scalar_select %p172, %s171, 3
      %s174 = smul.addr %s173, 4
      %s175 = scalar_lea.vmem %s3, %s174
      %s176 = smul.u32 2, %s14
      %v178 = vld [vmem:[%s169] sm:$0xff]
      %v179 = vld [vmem:[%s169 + $0x8] sm:$0xff]
      %v180 = vld [vmem:[%s169 + $0x10] sm:$0xf]
      %v181 = vld [vmem:[%s169 + $0x14] sm:$0xff]
      %v182 = vld [vmem:[%s169 + $0x1c] sm:$0xff]
      %v183 = vld [vmem:[%s169 + $0x24] sm:$0xf]
      %v184 = vld [vmem:[%s1] sm:$0xf]
      %v185 = vld [vmem:[%s1 + $0x4] sm:$0xf]
      %v186 = vld [vmem:[%s1 + $0x8] sm:$0xf]
      %v187 = vld [vmem:[%s1 + $0xc] sm:$0xf]
      %v188 = vld [vmem:[%s1 + $0x10] sm:$0xf]
      %v189 = vld [vmem:[%s1 + $0x14] sm:$0xf]
      %v190 = vld [vmem:[%s1 + $0x18] sm:$0xf]
      %v191 = vld [vmem:[%s1 + $0x1c] sm:$0xf]
      %v192 = vld [vmem:[%s1 + $0x20] sm:$0xf]
      %v193 = vld [vmem:[%s1 + $0x24] sm:$0xf]
      %v194 = vld [vmem:[%s1 + $0x28] sm:$0xf]
      %v195 = vld [vmem:[%s1 + $0x2c] sm:$0xf]
      %v196 = vld [vmem:[%s1 + $0x30] sm:$0xf]
      %v197 = vld [vmem:[%s1 + $0x34] sm:$0xf]
      %v198 = vld [vmem:[%s1 + $0x38] sm:$0xf]
      %v199 = vld [vmem:[%s1 + $0x3c] sm:$0xf]
      %v200 = vld [vmem:[%s1 + $0x40] sm:$0xf]
      %v201 = vld [vmem:[%s1 + $0x44] sm:$0xf]
      %v202 = vld [vmem:[%s1 + $0x48] sm:$0xf]
      %v203 = vld [vmem:[%s1 + $0x4c] sm:$0xf]
      %v204 = vld [vmem:[%s1 + $0x50] sm:$0xf]
      %v205 = vld [vmem:[%s1 + $0x54] sm:$0xf]
      %v206 = vld [vmem:[%s1 + $0x58] sm:$0xf]
      %v207 = vld [vmem:[%s1 + $0x5c] sm:$0xf]
      %v208 = vld [vmem:[%s1 + $0x60] sm:$0xf]
      %v209 = vld [vmem:[%s1 + $0x64] sm:$0xf]
      %v210 = vld [vmem:[%s1 + $0x68] sm:$0xf]
      %v211 = vld [vmem:[%s1 + $0x6c] sm:$0xf]
      %v212 = vld [vmem:[%s1 + $0x70] sm:$0xf]
      %v213 = vld [vmem:[%s1 + $0x74] sm:$0xf]
      %v214 = vld [vmem:[%s1 + $0x78] sm:$0xf]
      %v215 = vld [vmem:[%s1 + $0x7c] sm:$0xf]
      %v216 = vld [vmem:[%s1 + $0x80] sm:$0xf]
      %v217 = vld [vmem:[%s1 + $0x84] sm:$0xf]
      %v218 = vld [vmem:[%s1 + $0x88] sm:$0xf]
      %v219 = vld [vmem:[%s1 + $0x8c] sm:$0xf]
      %v220 = vld [vmem:[%s1 + $0x90] sm:$0xf]
      %v221 = vld [vmem:[%s1 + $0x94] sm:$0xf]
      %v222 = vld [vmem:[%s1 + $0x98] sm:$0xf]
      %v223 = vld [vmem:[%s1 + $0x9c] sm:$0xf]
      %v224 = vld [vmem:[%s1 + $0xa0] sm:$0xf]
      %v225 = vld [vmem:[%s1 + $0xa4] sm:$0xf]
      %v226 = vld [vmem:[%s1 + $0xa8] sm:$0xf]
      %v227 = vld [vmem:[%s1 + $0xac] sm:$0xf]
      %v228 = vld [vmem:[%s1 + $0xb0] sm:$0xf]
      %v229 = vld [vmem:[%s1 + $0xb4] sm:$0xf]
      %v230 = vld [vmem:[%s1 + $0xb8] sm:$0xf]
      %v231 = vld [vmem:[%s1 + $0xbc] sm:$0xf]
      %v232 = vld [vmem:[%s1 + $0xc0] sm:$0xf]
      %v233 = vld [vmem:[%s1 + $0xc4] sm:$0xf]
      %v234 = vld [vmem:[%s1 + $0xc8] sm:$0xf]
      %v235 = vld [vmem:[%s1 + $0xcc] sm:$0xf]
      %v236 = vld [vmem:[%s1 + $0xd0] sm:$0xf]
      %v237 = vld [vmem:[%s1 + $0xd4] sm:$0xf]
      %v238 = vld [vmem:[%s1 + $0xd8] sm:$0xf]
      %v239 = vld [vmem:[%s1 + $0xdc] sm:$0xf]
      %v240 = vld [vmem:[%s1 + $0xe0] sm:$0xf]
      %v241 = vld [vmem:[%s1 + $0xe4] sm:$0xf]
      %v242 = vld [vmem:[%s1 + $0xe8] sm:$0xf]
      %v243 = vld [vmem:[%s1 + $0xec] sm:$0xf]
      %v244 = vld [vmem:[%s1 + $0xf0] sm:$0xf]
      %v245 = vld [vmem:[%s1 + $0xf4] sm:$0xf]
      %v246 = vld [vmem:[%s1 + $0xf8] sm:$0xf]
      %v247 = vld [vmem:[%s1 + $0xfc] sm:$0xf]
      %v248 = vld [vmem:[%s1 + $0x100] sm:$0xf]
      %v249 = vld [vmem:[%s1 + $0x104] sm:$0xf]
      %v250 = vld [vmem:[%s1 + $0x108] sm:$0xf]
      %v251 = vld [vmem:[%s1 + $0x10c] sm:$0xf]
      %v252 = vld [vmem:[%s1 + $0x110] sm:$0xf]
      %v253 = vld [vmem:[%s1 + $0x114] sm:$0xf]
      %v254 = vld [vmem:[%s1 + $0x118] sm:$0xf]
      %v255 = vld [vmem:[%s1 + $0x11c] sm:$0xf]
      %v256 = vld [vmem:[%s2] sm:$0x1]
      %v258 = vperm.slane %v256, 0
      %v266 = vunpack.c.l.b16 %v178
      %v267 = vunpack.c.h.b16 %v178
      %v268 = vunpack.c.l.b16 %v179
      %v269 = vunpack.c.h.b16 %v179
      %v270 = vunpack.c.l.b16 %v180
      %v271 = vunpack.c.l.b16 %v181
      %v272 = vunpack.c.h.b16 %v181
      %v273 = vunpack.c.l.b16 %v182
      %v274 = vunpack.c.h.b16 %v182
      %v275 = vunpack.c.l.b16 %v183
      %v276 = vpack.c.b16 %v271, %v266
      %v277 = vpack.c.b16 %v272, %v267
      %v278 = vpack.c.b16 %v273, %v268
      %v279 = vpack.c.b16 %v274, %v269
      %v280 = vpack.c.b16 %v275, %v270
      %v357 = vunpack.c.l.b16 %v184
      %v358 = vunpack.c.l.b16 %v185
      %v359 = vunpack.c.l.b16 %v186
      %v360 = vunpack.c.l.b16 %v187
      %v361 = vunpack.c.l.b16 %v188
      %v362 = vunpack.c.l.b16 %v189
      %v363 = vunpack.c.l.b16 %v190
      %v364 = vunpack.c.l.b16 %v191
      %v365 = vunpack.c.l.b16 %v192
      %v366 = vunpack.c.l.b16 %v193
      %v367 = vunpack.c.l.b16 %v194
      %v368 = vunpack.c.l.b16 %v195
      %v369 = vunpack.c.l.b16 %v196
      %v370 = vunpack.c.l.b16 %v197
      %v371 = vunpack.c.l.b16 %v198
      %v372 = vunpack.c.l.b16 %v199
      %v373 = vunpack.c.l.b16 %v200
      %v374 = vunpack.c.l.b16 %v201
      %v375 = vunpack.c.l.b16 %v202
      %v376 = vunpack.c.l.b16 %v203
      %v377 = vunpack.c.l.b16 %v204
      %v378 = vunpack.c.l.b16 %v205
      %v379 = vunpack.c.l.b16 %v206
      %v380 = vunpack.c.l.b16 %v207
      %v381 = vunpack.c.l.b16 %v208
      %v382 = vunpack.c.l.b16 %v209
      %v383 = vunpack.c.l.b16 %v210
      %v384 = vunpack.c.l.b16 %v211
      %v385 = vunpack.c.l.b16 %v212
      %v386 = vunpack.c.l.b16 %v213
      %v387 = vunpack.c.l.b16 %v214
      %v388 = vunpack.c.l.b16 %v215
      %v389 = vunpack.c.l.b16 %v216
      %v390 = vunpack.c.l.b16 %v217
      %v391 = vunpack.c.l.b16 %v218
      %v392 = vunpack.c.l.b16 %v219
      %v393 = vunpack.c.l.b16 %v220
      %v394 = vunpack.c.l.b16 %v221
      %v395 = vunpack.c.l.b16 %v222
      %v396 = vunpack.c.l.b16 %v223
      %v397 = vunpack.c.l.b16 %v224
      %v398 = vunpack.c.l.b16 %v225
      %v399 = vunpack.c.l.b16 %v226
      %v400 = vunpack.c.l.b16 %v227
      %v401 = vunpack.c.l.b16 %v228
      %v402 = vunpack.c.l.b16 %v229
      %v403 = vunpack.c.l.b16 %v230
      %v404 = vunpack.c.l.b16 %v231
      %v405 = vunpack.c.l.b16 %v232
      %v406 = vunpack.c.l.b16 %v233
      %v407 = vunpack.c.l.b16 %v234
      %v408 = vunpack.c.l.b16 %v235
      %v409 = vunpack.c.l.b16 %v236
      %v410 = vunpack.c.l.b16 %v237
      %v411 = vunpack.c.l.b16 %v238
      %v412 = vunpack.c.l.b16 %v239
      %v413 = vunpack.c.l.b16 %v240
      %v414 = vunpack.c.l.b16 %v241
      %v415 = vunpack.c.l.b16 %v242
      %v416 = vunpack.c.l.b16 %v243
      %v417 = vunpack.c.l.b16 %v244
      %v418 = vunpack.c.l.b16 %v245
      %v419 = vunpack.c.l.b16 %v246
      %v420 = vunpack.c.l.b16 %v247
      %v421 = vunpack.c.l.b16 %v248
      %v422 = vunpack.c.l.b16 %v249
      %v423 = vunpack.c.l.b16 %v250
      %v424 = vunpack.c.l.b16 %v251
      %v425 = vunpack.c.l.b16 %v252
      %v426 = vunpack.c.l.b16 %v253
      %v427 = vunpack.c.l.b16 %v254
      %v428 = vunpack.c.l.b16 %v255
      %v429 = vpack.c.b16 %v358, %v357
      %v430 = vpack.c.b16 %v360, %v359
      %v431 = vpack.c.b16 %v362, %v361
      %v432 = vpack.c.b16 %v364, %v363
      %v433 = vpack.c.b16 %v366, %v365
      %v434 = vpack.c.b16 %v368, %v367
      %v435 = vpack.c.b16 %v370, %v369
      %v436 = vpack.c.b16 %v372, %v371
      %v437 = vpack.c.b16 %v374, %v373
      %v438 = vpack.c.b16 %v376, %v375
      %v439 = vpack.c.b16 %v378, %v377
      %v440 = vpack.c.b16 %v380, %v379
      %v441 = vpack.c.b16 %v382, %v381
      %v442 = vpack.c.b16 %v384, %v383
      %v443 = vpack.c.b16 %v386, %v385
      %v444 = vpack.c.b16 %v388, %v387
      %v445 = vpack.c.b16 %v390, %v389
      %v446 = vpack.c.b16 %v392, %v391
      %v447 = vpack.c.b16 %v394, %v393
      %v448 = vpack.c.b16 %v396, %v395
      %v449 = vpack.c.b16 %v398, %v397
      %v450 = vpack.c.b16 %v400, %v399
      %v451 = vpack.c.b16 %v402, %v401
      %v452 = vpack.c.b16 %v404, %v403
      %v453 = vpack.c.b16 %v406, %v405
      %v454 = vpack.c.b16 %v408, %v407
      %v455 = vpack.c.b16 %v410, %v409
      %v456 = vpack.c.b16 %v412, %v411
      %v457 = vpack.c.b16 %v414, %v413
      %v458 = vpack.c.b16 %v416, %v415
      %v459 = vpack.c.b16 %v418, %v417
      %v460 = vpack.c.b16 %v420, %v419
      %v461 = vpack.c.b16 %v422, %v421
      %v462 = vpack.c.b16 %v424, %v423
      %v463 = vpack.c.b16 %v426, %v425
      %v464 = vpack.c.b16 %v428, %v427
      %vm501 = vcmask 523264
      %v503 = vsel %vm501, %v280, 0
      %505 = vmatpush.bf16.msra.mxu0 %v436
      %506 = vmatpush.bf16.msra.mxu0 %v435
      %507 = vmatpush.bf16.msra.mxu0 %v434
      %508 = vmatpush.bf16.msra.mxu0 %v433
      %509 = vmatpush.bf16.msra.mxu0 %v432
      %510 = vmatpush.bf16.msra.mxu0 %v431
      %511 = vmatpush.bf16.msra.mxu0 %v430
      %512 = vmatpush.bf16.msra.mxu0 %v429
      %513 = vmatmul.bf16.gmra.mxu0 %v276
      %v514 = vpop.f32.mrf.mxu0
      %v515 = vadd.f32 %v258, %v514
      %v516 = vpop.f32.mrf.mxu0
      %v517 = vadd.f32 %v258, %v516
      %518 = vdwg.mxu0
      %519 = vmatpush.bf16.msra.mxu0 %v444
      %520 = vmatpush.bf16.msra.mxu0 %v443
      %521 = vmatpush.bf16.msra.mxu0 %v442
      %522 = vmatpush.bf16.msra.mxu0 %v441
      %523 = vmatpush.bf16.msra.mxu0 %v440
      %524 = vmatpush.bf16.msra.mxu0 %v439
      %525 = vmatpush.bf16.msra.mxu0 %v438
      %526 = vmatpush.bf16.msra.mxu0 %v437
      %527 = vmatmul.bf16.gmra.mxu0 %v277
      %v528 = vpop.f32.mrf.mxu0
      %v529 = vadd.f32 %v515, %v528
      %v530 = vpop.f32.mrf.mxu0
      %v531 = vadd.f32 %v517, %v530
      %532 = vdwg.mxu0
      %533 = vmatpush.bf16.msra.mxu0 %v452
      %534 = vmatpush.bf16.msra.mxu0 %v451
      %535 = vmatpush.bf16.msra.mxu0 %v450
      %536 = vmatpush.bf16.msra.mxu0 %v449
      %537 = vmatpush.bf16.msra.mxu0 %v448
      %538 = vmatpush.bf16.msra.mxu0 %v447
      %539 = vmatpush.bf16.msra.mxu0 %v446
      %540 = vmatpush.bf16.msra.mxu0 %v445
      %541 = vmatmul.bf16.gmra.mxu0 %v278
      %v542 = vpop.f32.mrf.mxu0
      %v543 = vadd.f32 %v529, %v542
      %v544 = vpop.f32.mrf.mxu0
      %v545 = vadd.f32 %v531, %v544
      %546 = vdwg.mxu0
      %547 = vmatpush.bf16.msra.mxu0 %v460
      %548 = vmatpush.bf16.msra.mxu0 %v459
      %549 = vmatpush.bf16.msra.mxu0 %v458
      %550 = vmatpush.bf16.msra.mxu0 %v457
      %551 = vmatpush.bf16.msra.mxu0 %v456
      %552 = vmatpush.bf16.msra.mxu0 %v455
      %553 = vmatpush.bf16.msra.mxu0 %v454
      %554 = vmatpush.bf16.msra.mxu0 %v453
      %555 = vmatmul.bf16.gmra.mxu0 %v279
      %v556 = vpop.f32.mrf.mxu0
      %v557 = vadd.f32 %v543, %v556
      %v558 = vpop.f32.mrf.mxu0
      %v559 = vadd.f32 %v545, %v558
      %560 = vdwg.mxu0
      %561 = vmatpush.bf16.msra.mxu0 0
      %562 = vmatpush.bf16.msra.mxu0 0
      %563 = vmatpush.bf16.msra.mxu0 0
      %564 = vmatpush.bf16.msra.mxu0 0
      %565 = vmatpush.bf16.msra.mxu0 %v464
      %566 = vmatpush.bf16.msra.mxu0 %v463
      %567 = vmatpush.bf16.msra.mxu0 %v462
      %568 = vmatpush.bf16.msra.mxu0 %v461
      %569 = vmatmul.bf16.gmra.mxu0 %v503
      %v570 = vpop.f32.mrf.mxu0
      %v571 = vadd.f32 %v557, %v570
      %v572 = vpop.f32.mrf.mxu0
      %v573 = vadd.f32 %v559, %v572
      %574 = vdwg.mxu0
      %v575 = vmax.f32 %v571, 0.0
      %v576 = vmax.f32 %v573, 0.0
      %v577 = vpack.c.bf16 %v575, %v575
      %v578 = vpack.c.bf16 %v576, %v576
      %579 = vst [vmem:[%s175] sm:$0xf] %v577
      %580 = vst [vmem:[%s175 + $0x4] sm:$0xf] %v578
      %s581 = smul.u32 2, %s14
      %p582 = scmp.lt.s32.totalorder %s581, 3
      %s583 = scalar_select %p582, %s581, 3
      %s584 = smul.addr %s583, 4
      %s585 = scalar_lea.vmem %s3, %s584
      // Predicated region
      $region33: #{centernet_forward.11} parent=31 // pred_check
        %p586 = pneg %p100
      $region34: #{centernet_forward.11} parent=31 // pred_check_branch
        %588 = sbr.rel (%p586) target = $region36
      $region35: #{centernet_forward.11} parent=31 // pred_region
        %s589 = smul.u32 2, %s14
      $region36: #{centernet_forward.11} parent=31 // pred_fallthru
        _
    $region32: #{centernet_forward.11} parent=5 // pred_fallthru
      _
    %p590 = scmp.le.s32.totalorder 2, %s9
    // Predicated region
    $region37: #{centernet_forward.11} parent=5 // pred_check
      %p591 = pneg %p590
    $region38: #{centernet_forward.11} parent=5 // pred_check_branch
      %593 = sbr.rel (%p591) target = $region40
    $region39: #{centernet_forward.11} parent=5 // pred_region
      %s594 = ssub.s32 %s9, 2
      // Predicated region
      $region41: #{centernet_forward.11} parent=39 // pred_check
        %p595 = pneg %p106
      $region42: #{centernet_forward.11} parent=39 // pred_check_branch
        %597 = sbr.rel (%p595) target = $region44
      $region43: #{centernet_forward.11} parent=39 // pred_region
        %s598 = smul.u32 2, %s15
        %p599 = scmp.lt.s32.totalorder %s598, 3
        %s600 = scalar_select %p599, %s598, 3
        %s601 = smul.addr %s600, 4
        %s602 = scalar_lea.vmem %s3, %s601
      $region44: #{centernet_forward.11} parent=39 // pred_fallthru
        _
    $region40: #{centernet_forward.11} parent=5 // pred_fallthru
      _
  $region6: #{centernet_forward.11} parent=0 // loop_footer
    %s13 = sadd.s32 1, %s9
  $region7: #{centernet_forward.11} parent=0 // loop_footer_branch
    %8 = sbr.rel target = $region3
  $region8: #{centernet_forward.11} parent=0 // loop_exit
    _

// kernel: centernet_forward.12
$region0: #{centernet_forward.12}
  #allocation0 [shape = 'u32[]', space=smem, size = 0x4, offset = 0x4, fixed_abs, tag = 'smem constant byte address 0x4 - core index']
  #allocation1 [shape = 'u32[72,128]{1,0:T(1,128)}', space=vmem, size = 0x9000, scoped, tag = 'internal scratch']
  %s0 = inlined_call_operand.vmem [shape: bf16[32,576], index: 0, kind: input, shape index: {}]
  %s1 = inlined_call_operand.vmem [shape: bf16[576,128], index: 1, kind: input, shape index: {}]
  %s2 = inlined_call_operand.vmem [shape: f32[1,128], index: 2, kind: input, shape index: {}]
  %s3 = inlined_call_operand.vmem [shape: bf16[32,128], index: 3, kind: input, shape index: {}]
  %s4 = inlined_call_operand.vmem [shape: bf16[32,128], index: 4, kind: output, shape index: {}]
  %s5 = sld [smem:[#allocation0]]
  $region49: #{centernet_forward.12} parent=0
    _
  %s7 = ssub.s32 1, %s5
  %s8 = scalar_select 0, %s7, %s5
  loop: start=0, step=1, limit=4
  $region2: #{centernet_forward.12} parent=0 // loop_pre_header
    _
  $region3: #{centernet_forward.12} parent=0 // loop_header
    %s10 = sphi 0, %s14
    %p11 = scmp.ge.s32.totalorder %s10, 4
    %s20 = sphi 0, %s22
    %s23 = sphi 0, %s20
    %s24 = sphi 0, %s23
    %s40 = sphi 0, %s24
    %s44 = sphi 0, %s44
    %s46 = sphi 0, %s44
    %s47 = sphi 0, %s46
    %s61 = sphi 0, %s47
    %s65 = sphi 0, %s65
    %s67 = sphi 0, %s65
    %s68 = sphi 0, %s67
    %s82 = sphi 0, %s68
    %s88 = sphi 0, %s90
    %s91 = sphi 0, %s88
    %s92 = sphi 0, %s91
    %s108 = sphi 0, %s92
    %s114 = sphi 0, %s116
    %s117 = sphi 0, %s114
    %s118 = sphi 0, %s117
    %s134 = sphi 0, %s118
  $region4: #{centernet_forward.12} parent=0 // loop_header_branch
    %13 = sbr.rel (%p11) target = $region8
  $region5: #{centernet_forward.12} parent=0 // loop_body
    %s15 = ssub.s32 %s10, 1
    %s16 = ssub.s32 %s10, 2
    %s17 = sadd.s32 %s10, 1
    %s18 = ssub.s32 %s10, %s17
    %p19 = scmp.eq.s32.totalorder %s18, 0
    %s21 = sadd.s32 %s20, 1
    %s22 = scalar_select %p19, %s20, %s21
    %p25 = pneg %p19
    %p26 = scmp.eq.s32.totalorder %s10, 1
    %p27 = por %p25, %p26
    %p28 = scmp.ne.s32.totalorder %s20, %s23
    %p29 = scmp.eq.s32.totalorder %s10, 0
    %p30 = por %p28, %p29
    %p31 = scmp.ne.s32.totalorder %s20, %s23
    %p32 = scmp.eq.s32.totalorder %s15, 1
    %p33 = por %p31, %p32
    %p34 = scmp.ne.s32.totalorder %s23, %s24
    %p35 = scmp.eq.s32.totalorder %s15, 0
    %p36 = por %p34, %p35
    %p37 = scmp.ne.s32.totalorder %s23, %s24
    %p38 = scmp.eq.s32.totalorder %s16, 1
    %p39 = por %p37, %p38
    %p41 = scmp.ne.s32.totalorder %s24, %s40
    %p42 = scmp.eq.s32.totalorder %s16, 0
    %p43 = por %p41, %p42
    %s45 = sadd.s32 %s44, 1
    %p48 = scmp.eq.s32.totalorder %s10, 1
    %p49 = scmp.ne.s32.totalorder %s44, %s46
    %p50 = scmp.eq.s32.totalorder %s10, 0
    %p51 = por %p49, %p50
    %p52 = scmp.ne.s32.totalorder %s44, %s46
    %p53 = scmp.eq.s32.totalorder %s15, 1
    %p54 = por %p52, %p53
    %p55 = scmp.ne.s32.totalorder %s46, %s47
    %p56 = scmp.eq.s32.totalorder %s15, 0
    %p57 = por %p55, %p56
    %p58 = scmp.ne.s32.totalorder %s46, %s47
    %p59 = scmp.eq.s32.totalorder %s16, 1
    %p60 = por %p58, %p59
    %p62 = scmp.ne.s32.totalorder %s47, %s61
    %p63 = scmp.eq.s32.totalorder %s16, 0
    %p64 = por %p62, %p63
    %s66 = sadd.s32 %s65, 1
    %p69 = scmp.eq.s32.totalorder %s10, 1
    %p70 = scmp.ne.s32.totalorder %s65, %s67
    %p71 = scmp.eq.s32.totalorder %s10, 0
    %p72 = por %p70, %p71
    %p73 = scmp.ne.s32.totalorder %s65, %s67
    %p74 = scmp.eq.s32.totalorder %s15, 1
    %p75 = por %p73, %p74
    %p76 = scmp.ne.s32.totalorder %s67, %s68
    %p77 = scmp.eq.s32.totalorder %s15, 0
    %p78 = por %p76, %p77
    %p79 = scmp.ne.s32.totalorder %s67, %s68
    %p80 = scmp.eq.s32.totalorder %s16, 1
    %p81 = por %p79, %p80
    %p83 = scmp.ne.s32.totalorder %s68, %s82
    %p84 = scmp.eq.s32.totalorder %s16, 0
    %p85 = por %p83, %p84
    %s86 = ssub.s32 %s10, %s17
    %p87 = scmp.eq.s32.totalorder %s86, 0
    %s89 = sadd.s32 %s88, 1
    %s90 = scalar_select %p87, %s88, %s89
    %p93 = pneg %p87
    %p94 = scmp.eq.s32.totalorder %s10, 1
    %p95 = por %p93, %p94
    %p96 = scmp.ne.s32.totalorder %s88, %s91
    %p97 = scmp.eq.s32.totalorder %s10, 0
    %p98 = por %p96, %p97
    %p99 = scmp.ne.s32.totalorder %s88, %s91
    %p100 = scmp.eq.s32.totalorder %s15, 1
    %p101 = por %p99, %p100
    %p102 = scmp.ne.s32.totalorder %s91, %s92
    %p103 = scmp.eq.s32.totalorder %s15, 0
    %p104 = por %p102, %p103
    %p105 = scmp.ne.s32.totalorder %s91, %s92
    %p106 = scmp.eq.s32.totalorder %s16, 1
    %p107 = por %p105, %p106
    %p109 = scmp.ne.s32.totalorder %s92, %s108
    %p110 = scmp.eq.s32.totalorder %s16, 0
    %p111 = por %p109, %p110
    %s112 = ssub.s32 %s10, %s17
    %p113 = scmp.eq.s32.totalorder %s112, 0
    %s115 = sadd.s32 %s114, 1
    %s116 = scalar_select %p113, %s114, %s115
    %p119 = pneg %p113
    %p120 = scmp.eq.s32.totalorder %s10, 1
    %p121 = por %p119, %p120
    %p122 = scmp.ne.s32.totalorder %s114, %s117
    %p123 = scmp.eq.s32.totalorder %s10, 0
    %p124 = por %p122, %p123
    %p125 = scmp.ne.s32.totalorder %s114, %s117
    %p126 = scmp.eq.s32.totalorder %s15, 1
    %p127 = por %p125, %p126
    %p128 = scmp.ne.s32.totalorder %s117, %s118
    %p129 = scmp.eq.s32.totalorder %s15, 0
    %p130 = por %p128, %p129
    %p131 = scmp.ne.s32.totalorder %s117, %s118
    %p132 = scmp.eq.s32.totalorder %s16, 1
    %p133 = por %p131, %p132
    %p135 = scmp.ne.s32.totalorder %s118, %s134
    %p136 = scmp.eq.s32.totalorder %s16, 0
    %p137 = por %p135, %p136
    %p138 = scmp.le.s32.totalorder 1, %s10
    %p139 = scmp.lt.s32.totalorder %s10, 3
    %p140 = pnand %p138, %p139
    %p141 = pneg %p140
    // Predicated region
    $region9: #{centernet_forward.12} parent=5 // pred_check
      _
    $region10: #{centernet_forward.12} parent=5 // pred_check_branch
      %143 = sbr.rel (%p140) target = $region12
    $region11: #{centernet_forward.12} parent=5 // pred_region
      %s144 = ssub.s32 %s10, 1
      // Predicated region
      $region13: #{centernet_forward.12} parent=11 // pred_check
        %p145 = pneg %p57
      $region14: #{centernet_forward.12} parent=11 // pred_check_branch
        %147 = sbr.rel (%p145) target = $region16
      $region15: #{centernet_forward.12} parent=11 // pred_region
        _
      $region16: #{centernet_forward.12} parent=11 // pred_fallthru
        _
      // Predicated region
      $region17: #{centernet_forward.12} parent=11 // pred_check
        %p148 = pneg %p78
      $region18: #{centernet_forward.12} parent=11 // pred_check_branch
        %150 = sbr.rel (%p148) target = $region20
      $region19: #{centernet_forward.12} parent=11 // pred_region
        _
      $region20: #{centernet_forward.12} parent=11 // pred_fallthru
        _
    $region12: #{centernet_forward.12} parent=5 // pred_fallthru
      _
    %p151 = scmp.lt.s32.totalorder %s10, 2
    // Predicated region
    $region21: #{centernet_forward.12} parent=5 // pred_check
      %p152 = pneg %p151
    $region22: #{centernet_forward.12} parent=5 // pred_check_branch
      %154 = sbr.rel (%p152) target = $region24
    $region23: #{centernet_forward.12} parent=5 // pred_region
      // Predicated region
      $region25: #{centernet_forward.12} parent=23 // pred_check
        %p155 = pneg %p30
      $region26: #{centernet_forward.12} parent=23 // pred_check_branch
        %157 = sbr.rel (%p155) target = $region28
      $region27: #{centernet_forward.12} parent=23 // pred_region
        %s158 = smul.u32 2, %s10
        %p159 = scmp.lt.s32.totalorder %s158, 3
        %s160 = scalar_select %p159, %s158, 3
        %s161 = smul.addr %s160, 5
        %s162 = smul.addr %s161, 4
        %s163 = scalar_lea.vmem %s0, %s162
        %s164 = smul.u32 2, %s10
      $region28: #{centernet_forward.12} parent=23 // pred_fallthru
        _
      // Predicated region
      $region29: #{centernet_forward.12} parent=23 // pred_check
        %p165 = pneg %p98
      $region30: #{centernet_forward.12} parent=23 // pred_check_branch
        %167 = sbr.rel (%p165) target = $region32
      $region31: #{centernet_forward.12} parent=23 // pred_region
        %s168 = smul.u32 2, %s10
        %p169 = scmp.lt.s32.totalorder %s168, 3
        %s170 = scalar_select %p169, %s168, 3
        %s171 = smul.addr %s170, 4
        %s172 = scalar_lea.vmem %s3, %s171
        %s173 = smul.u32 2, %s10
      $region32: #{centernet_forward.12} parent=23 // pred_fallthru
        _
    $region24: #{centernet_forward.12} parent=5 // pred_fallthru
      _
    %p174 = scmp.le.s32.totalorder 1, %s10
    %p175 = scmp.lt.s32.totalorder %s10, 3
    %p176 = pnand %p174, %p175
    %p177 = pneg %p176
    // Predicated region
    $region33: #{centernet_forward.12} parent=5 // pred_check
      _
    $region34: #{centernet_forward.12} parent=5 // pred_check_branch
      %179 = sbr.rel (%p176) target = $region36
    $region35: #{centernet_forward.12} parent=5 // pred_region
      %s180 = ssub.s32 %s10, 1
      %s181 = smul.u32 2, %s15
      %p182 = scmp.lt.s32.totalorder %s181, 3
      %s183 = scalar_select %p182, %s181, 3
      %s184 = smul.addr %s183, 5
      %s185 = smul.addr %s184, 4
      %s186 = scalar_lea.vmem %s0, %s185
      %p187 = pneg %p36
      %p188 = pneg %p33
      %p189 = pneg %p57
      %p190 = pneg %p54
      %p191 = pneg %p78
      %p192 = pneg %p75
      %s193 = smul.u32 2, %s15
      %p194 = scmp.lt.s32.totalorder %s193, 3
      %s195 = scalar_select %p194, %s193, 3
      %s196 = smul.addr %s195, 4
      %s197 = scalar_lea.vmem %s3, %s196
      %p198 = pneg %p104
      %p199 = pneg %p101
      %p200 = pneg %p130
      %p201 = pneg %p127
      %s202 = smul.u32 2, %s15
      %p203 = scmp.lt.s32.totalorder %s202, 3
      %s204 = scalar_select %p203, %s202, 3
      %s205 = smul.addr %s204, 4
      %s206 = scalar_lea.vmem %s4, %s205
      %s207 = smul.u32 2, %s15
      %p208 = scmp.lt.s32.totalorder %s207, 3
      %s209 = scalar_select %p208, %s207, 3
      %s210 = smul.addr %s209, 5
      %s211 = smul.addr %s210, 4
      %s212 = scalar_lea.vmem %s0, %s211
      %s213 = smul.u32 2, %s15
      %s214 = smul.u32 2, %s15
      %p215 = scmp.lt.s32.totalorder %s214, 3
      %s216 = scalar_select %p215, %s214, 3
      %s217 = smul.addr %s216, 4
      %s218 = scalar_lea.vmem %s3, %s217
      %s219 = smul.u32 2, %s15
      %s220 = smul.u32 2, %s15
      %p221 = scmp.lt.s32.totalorder %s220, 3
      %s222 = scalar_select %p221, %s220, 3
      %s223 = smul.addr %s222, 4
      %s224 = scalar_lea.vmem %s4, %s223
      %s225 = smul.u32 2, %s15
      %v227 = vld [vmem:[%s212] sm:$0xff]
      %v228 = vld [vmem:[%s212 + $0x8] sm:$0xff]
      %v229 = vld [vmem:[%s212 + $0x10] sm:$0xf]
      %v230 = vld [vmem:[%s212 + $0x14] sm:$0xff]
      %v231 = vld [vmem:[%s212 + $0x1c] sm:$0xff]
      %v232 = vld [vmem:[%s212 + $0x24] sm:$0xf]
      %v233 = vld [vmem:[%s1] sm:$0xf]
      %v234 = vld [vmem:[%s1 + $0x4] sm:$0xf]
      %v235 = vld [vmem:[%s1 + $0x8] sm:$0xf]
      %v236 = vld [vmem:[%s1 + $0xc] sm:$0xf]
      %v237 = vld [vmem:[%s1 + $0x10] sm:$0xf]
      %v238 = vld [vmem:[%s1 + $0x14] sm:$0xf]
      %v239 = vld [vmem:[%s1 + $0x18] sm:$0xf]
      %v240 = vld [vmem:[%s1 + $0x1c] sm:$0xf]
      %v241 = vld [vmem:[%s1 + $0x20] sm:$0xf]
      %v242 = vld [vmem:[%s1 + $0x24] sm:$0xf]
      %v243 = vld [vmem:[%s1 + $0x28] sm:$0xf]
      %v244 = vld [vmem:[%s1 + $0x2c] sm:$0xf]
      %v245 = vld [vmem:[%s1 + $0x30] sm:$0xf]
      %v246 = vld [vmem:[%s1 + $0x34] sm:$0xf]
      %v247 = vld [vmem:[%s1 + $0x38] sm:$0xf]
      %v248 = vld [vmem:[%s1 + $0x3c] sm:$0xf]
      %v249 = vld [vmem:[%s1 + $0x40] sm:$0xf]
      %v250 = vld [vmem:[%s1 + $0x44] sm:$0xf]
      %v251 = vld [vmem:[%s1 + $0x48] sm:$0xf]
      %v252 = vld [vmem:[%s1 + $0x4c] sm:$0xf]
      %v253 = vld [vmem:[%s1 + $0x50] sm:$0xf]
      %v254 = vld [vmem:[%s1 + $0x54] sm:$0xf]
      %v255 = vld [vmem:[%s1 + $0x58] sm:$0xf]
      %v256 = vld [vmem:[%s1 + $0x5c] sm:$0xf]
      %v257 = vld [vmem:[%s1 + $0x60] sm:$0xf]
      %v258 = vld [vmem:[%s1 + $0x64] sm:$0xf]
      %v259 = vld [vmem:[%s1 + $0x68] sm:$0xf]
      %v260 = vld [vmem:[%s1 + $0x6c] sm:$0xf]
      %v261 = vld [vmem:[%s1 + $0x70] sm:$0xf]
      %v262 = vld [vmem:[%s1 + $0x74] sm:$0xf]
      %v263 = vld [vmem:[%s1 + $0x78] sm:$0xf]
      %v264 = vld [vmem:[%s1 + $0x7c] sm:$0xf]
      %v265 = vld [vmem:[%s1 + $0x80] sm:$0xf]
      %v266 = vld [vmem:[%s1 + $0x84] sm:$0xf]
      %v267 = vld [vmem:[%s1 + $0x88] sm:$0xf]
      %v268 = vld [vmem:[%s1 + $0x8c] sm:$0xf]
      %v269 = vld [vmem:[%s1 + $0x90] sm:$0xf]
      %v270 = vld [vmem:[%s1 + $0x94] sm:$0xf]
      %v271 = vld [vmem:[%s1 + $0x98] sm:$0xf]
      %v272 = vld [vmem:[%s1 + $0x9c] sm:$0xf]
      %v273 = vld [vmem:[%s1 + $0xa0] sm:$0xf]
      %v274 = vld [vmem:[%s1 + $0xa4] sm:$0xf]
      %v275 = vld [vmem:[%s1 + $0xa8] sm:$0xf]
      %v276 = vld [vmem:[%s1 + $0xac] sm:$0xf]
      %v277 = vld [vmem:[%s1 + $0xb0] sm:$0xf]
      %v278 = vld [vmem:[%s1 + $0xb4] sm:$0xf]
      %v279 = vld [vmem:[%s1 + $0xb8] sm:$0xf]
      %v280 = vld [vmem:[%s1 + $0xbc] sm:$0xf]
      %v281 = vld [vmem:[%s1 + $0xc0] sm:$0xf]
      %v282 = vld [vmem:[%s1 + $0xc4] sm:$0xf]
      %v283 = vld [vmem:[%s1 + $0xc8] sm:$0xf]
      %v284 = vld [vmem:[%s1 + $0xcc] sm:$0xf]
      %v285 = vld [vmem:[%s1 + $0xd0] sm:$0xf]
      %v286 = vld [vmem:[%s1 + $0xd4] sm:$0xf]
      %v287 = vld [vmem:[%s1 + $0xd8] sm:$0xf]
      %v288 = vld [vmem:[%s1 + $0xdc] sm:$0xf]
      %v289 = vld [vmem:[%s1 + $0xe0] sm:$0xf]
      %v290 = vld [vmem:[%s1 + $0xe4] sm:$0xf]
      %v291 = vld [vmem:[%s1 + $0xe8] sm:$0xf]
      %v292 = vld [vmem:[%s1 + $0xec] sm:$0xf]
      %v293 = vld [vmem:[%s1 + $0xf0] sm:$0xf]
      %v294 = vld [vmem:[%s1 + $0xf4] sm:$0xf]
      %v295 = vld [vmem:[%s1 + $0xf8] sm:$0xf]
      %v296 = vld [vmem:[%s1 + $0xfc] sm:$0xf]
      %v297 = vld [vmem:[%s1 + $0x100] sm:$0xf]
      %v298 = vld [vmem:[%s1 + $0x104] sm:$0xf]
      %v299 = vld [vmem:[%s1 + $0x108] sm:$0xf]
      %v300 = vld [vmem:[%s1 + $0x10c] sm:$0xf]
      %v301 = vld [vmem:[%s1 + $0x110] sm:$0xf]
      %v302 = vld [vmem:[%s1 + $0x114] sm:$0xf]
      %v303 = vld [vmem:[%s1 + $0x118] sm:$0xf]
      %v304 = vld [vmem:[%s1 + $0x11c] sm:$0xf]
      %v305 = vld [vmem:[%s2] sm:$0x1]
      %v307 = vperm.slane %v305, 0
      %v315 = vunpack.c.l.b16 %v227
      %v316 = vunpack.c.h.b16 %v227
      %v317 = vunpack.c.l.b16 %v228
      %v318 = vunpack.c.h.b16 %v228
      %v319 = vunpack.c.l.b16 %v229
      %v320 = vunpack.c.l.b16 %v230
      %v321 = vunpack.c.h.b16 %v230
      %v322 = vunpack.c.l.b16 %v231
      %v323 = vunpack.c.h.b16 %v231
      %v324 = vunpack.c.l.b16 %v232
      %v325 = vpack.c.b16 %v320, %v315
      %v326 = vpack.c.b16 %v321, %v316
      %v327 = vpack.c.b16 %v322, %v317
      %v328 = vpack.c.b16 %v323, %v318
      %v329 = vpack.c.b16 %v324, %v319
      %v406 = vunpack.c.l.b16 %v233
      %v407 = vunpack.c.l.b16 %v234
      %v408 = vunpack.c.l.b16 %v235
      %v409 = vunpack.c.l.b16 %v236
      %v410 = vunpack.c.l.b16 %v237
      %v411 = vunpack.c.l.b16 %v238
      %v412 = vunpack.c.l.b16 %v239
      %v413 = vunpack.c.l.b16 %v240
      %v414 = vunpack.c.l.b16 %v241
      %v415 = vunpack.c.l.b16 %v242
      %v416 = vunpack.c.l.b16 %v243
      %v417 = vunpack.c.l.b16 %v244
      %v418 = vunpack.c.l.b16 %v245
      %v419 = vunpack.c.l.b16 %v246
      %v420 = vunpack.c.l.b16 %v247
      %v421 = vunpack.c.l.b16 %v248
      %v422 = vunpack.c.l.b16 %v249
      %v423 = vunpack.c.l.b16 %v250
      %v424 = vunpack.c.l.b16 %v251
      %v425 = vunpack.c.l.b16 %v252
      %v426 = vunpack.c.l.b16 %v253
      %v427 = vunpack.c.l.b16 %v254
      %v428 = vunpack.c.l.b16 %v255
      %v429 = vunpack.c.l.b16 %v256
      %v430 = vunpack.c.l.b16 %v257
      %v431 = vunpack.c.l.b16 %v258
      %v432 = vunpack.c.l.b16 %v259
      %v433 = vunpack.c.l.b16 %v260
      %v434 = vunpack.c.l.b16 %v261
      %v435 = vunpack.c.l.b16 %v262
      %v436 = vunpack.c.l.b16 %v263
      %v437 = vunpack.c.l.b16 %v264
      %v438 = vunpack.c.l.b16 %v265
      %v439 = vunpack.c.l.b16 %v266
      %v440 = vunpack.c.l.b16 %v267
      %v441 = vunpack.c.l.b16 %v268
      %v442 = vunpack.c.l.b16 %v269
      %v443 = vunpack.c.l.b16 %v270
      %v444 = vunpack.c.l.b16 %v271
      %v445 = vunpack.c.l.b16 %v272
      %v446 = vunpack.c.l.b16 %v273
      %v447 = vunpack.c.l.b16 %v274
      %v448 = vunpack.c.l.b16 %v275
      %v449 = vunpack.c.l.b16 %v276
      %v450 = vunpack.c.l.b16 %v277
      %v451 = vunpack.c.l.b16 %v278
      %v452 = vunpack.c.l.b16 %v279
      %v453 = vunpack.c.l.b16 %v280
      %v454 = vunpack.c.l.b16 %v281
      %v455 = vunpack.c.l.b16 %v282
      %v456 = vunpack.c.l.b16 %v283
      %v457 = vunpack.c.l.b16 %v284
      %v458 = vunpack.c.l.b16 %v285
      %v459 = vunpack.c.l.b16 %v286
      %v460 = vunpack.c.l.b16 %v287
      %v461 = vunpack.c.l.b16 %v288
      %v462 = vunpack.c.l.b16 %v289
      %v463 = vunpack.c.l.b16 %v290
      %v464 = vunpack.c.l.b16 %v291
      %v465 = vunpack.c.l.b16 %v292
      %v466 = vunpack.c.l.b16 %v293
      %v467 = vunpack.c.l.b16 %v294
      %v468 = vunpack.c.l.b16 %v295
      %v469 = vunpack.c.l.b16 %v296
      %v470 = vunpack.c.l.b16 %v297
      %v471 = vunpack.c.l.b16 %v298
      %v472 = vunpack.c.l.b16 %v299
      %v473 = vunpack.c.l.b16 %v300
      %v474 = vunpack.c.l.b16 %v301
      %v475 = vunpack.c.l.b16 %v302
      %v476 = vunpack.c.l.b16 %v303
      %v477 = vunpack.c.l.b16 %v304
      %v478 = vpack.c.b16 %v407, %v406
      %v479 = vpack.c.b16 %v409, %v408
      %v480 = vpack.c.b16 %v411, %v410
      %v481 = vpack.c.b16 %v413, %v412
      %v482 = vpack.c.b16 %v415, %v414
      %v483 = vpack.c.b16 %v417, %v416
      %v484 = vpack.c.b16 %v419, %v418
      %v485 = vpack.c.b16 %v421, %v420
      %v486 = vpack.c.b16 %v423, %v422
      %v487 = vpack.c.b16 %v425, %v424
      %v488 = vpack.c.b16 %v427, %v426
      %v489 = vpack.c.b16 %v429, %v428
      %v490 = vpack.c.b16 %v431, %v430
      %v491 = vpack.c.b16 %v433, %v432
      %v492 = vpack.c.b16 %v435, %v434
      %v493 = vpack.c.b16 %v437, %v436
      %v494 = vpack.c.b16 %v439, %v438
      %v495 = vpack.c.b16 %v441, %v440
      %v496 = vpack.c.b16 %v443, %v442
      %v497 = vpack.c.b16 %v445, %v444
      %v498 = vpack.c.b16 %v447, %v446
      %v499 = vpack.c.b16 %v449, %v448
      %v500 = vpack.c.b16 %v451, %v450
      %v501 = vpack.c.b16 %v453, %v452
      %v502 = vpack.c.b16 %v455, %v454
      %v503 = vpack.c.b16 %v457, %v456
      %v504 = vpack.c.b16 %v459, %v458
      %v505 = vpack.c.b16 %v461, %v460
      %v506 = vpack.c.b16 %v463, %v462
      %v507 = vpack.c.b16 %v465, %v464
      %v508 = vpack.c.b16 %v467, %v466
      %v509 = vpack.c.b16 %v469, %v468
      %v510 = vpack.c.b16 %v471, %v470
      %v511 = vpack.c.b16 %v473, %v472
      %v512 = vpack.c.b16 %v475, %v474
      %v513 = vpack.c.b16 %v477, %v476
      %vm550 = vcmask 523264
      %v552 = vsel %vm550, %v329, 0
      %554 = vmatpush.bf16.msra.mxu0 %v485
      %555 = vmatpush.bf16.msra.mxu0 %v484
      %556 = vmatpush.bf16.msra.mxu0 %v483
      %557 = vmatpush.bf16.msra.mxu0 %v482
      %558 = vmatpush.bf16.msra.mxu0 %v481
      %559 = vmatpush.bf16.msra.mxu0 %v480
      %560 = vmatpush.bf16.msra.mxu0 %v479
      %561 = vmatpush.bf16.msra.mxu0 %v478
      %562 = vmatmul.bf16.gmra.mxu0 %v325
      %v563 = vpop.f32.mrf.mxu0
      %v564 = vadd.f32 %v307, %v563
      %v565 = vpop.f32.mrf.mxu0
      %v566 = vadd.f32 %v307, %v565
      %567 = vdwg.mxu0
      %568 = vmatpush.bf16.msra.mxu0 %v493
      %569 = vmatpush.bf16.msra.mxu0 %v492
      %570 = vmatpush.bf16.msra.mxu0 %v491
      %571 = vmatpush.bf16.msra.mxu0 %v490
      %572 = vmatpush.bf16.msra.mxu0 %v489
      %573 = vmatpush.bf16.msra.mxu0 %v488
      %574 = vmatpush.bf16.msra.mxu0 %v487
      %575 = vmatpush.bf16.msra.mxu0 %v486
      %576 = vmatmul.bf16.gmra.mxu0 %v326
      %v577 = vpop.f32.mrf.mxu0
      %v578 = vadd.f32 %v564, %v577
      %v579 = vpop.f32.mrf.mxu0
      %v580 = vadd.f32 %v566, %v579
      %581 = vdwg.mxu0
      %582 = vmatpush.bf16.msra.mxu0 %v501
      %583 = vmatpush.bf16.msra.mxu0 %v500
      %584 = vmatpush.bf16.msra.mxu0 %v499
      %585 = vmatpush.bf16.msra.mxu0 %v498
      %586 = vmatpush.bf16.msra.mxu0 %v497
      %587 = vmatpush.bf16.msra.mxu0 %v496
      %588 = vmatpush.bf16.msra.mxu0 %v495
      %589 = vmatpush.bf16.msra.mxu0 %v494
      %590 = vmatmul.bf16.gmra.mxu0 %v327
      %v591 = vpop.f32.mrf.mxu0
      %v592 = vadd.f32 %v578, %v591
      %v593 = vpop.f32.mrf.mxu0
      %v594 = vadd.f32 %v580, %v593
      %595 = vdwg.mxu0
      %596 = vmatpush.bf16.msra.mxu0 %v509
      %597 = vmatpush.bf16.msra.mxu0 %v508
      %598 = vmatpush.bf16.msra.mxu0 %v507
      %599 = vmatpush.bf16.msra.mxu0 %v506
      %600 = vmatpush.bf16.msra.mxu0 %v505
      %601 = vmatpush.bf16.msra.mxu0 %v504
      %602 = vmatpush.bf16.msra.mxu0 %v503
      %603 = vmatpush.bf16.msra.mxu0 %v502
      %604 = vmatmul.bf16.gmra.mxu0 %v328
      %v605 = vpop.f32.mrf.mxu0
      %v606 = vadd.f32 %v592, %v605
      %v607 = vpop.f32.mrf.mxu0
      %v608 = vadd.f32 %v594, %v607
      %609 = vdwg.mxu0
      %610 = vmatpush.bf16.msra.mxu0 0
      %611 = vmatpush.bf16.msra.mxu0 0
      %612 = vmatpush.bf16.msra.mxu0 0
      %613 = vmatpush.bf16.msra.mxu0 0
      %614 = vmatpush.bf16.msra.mxu0 %v513
      %615 = vmatpush.bf16.msra.mxu0 %v512
      %616 = vmatpush.bf16.msra.mxu0 %v511
      %617 = vmatpush.bf16.msra.mxu0 %v510
      %618 = vmatmul.bf16.gmra.mxu0 %v552
      %v619 = vpop.f32.mrf.mxu0
      %v620 = vadd.f32 %v606, %v619
      %v621 = vpop.f32.mrf.mxu0
      %v622 = vadd.f32 %v608, %v621
      %623 = vdwg.mxu0
      %v624 = vld [vmem:[%s218] sm:$0xf]
      %v625 = vld [vmem:[%s218 + $0x4] sm:$0xf]
      %v626 = vunpack.c.l.bf16 %v624
      %v627 = vunpack.c.l.bf16 %v625
      %v628 = vadd.f32 %v620, %v626
      %v629 = vadd.f32 %v622, %v627
      %v630 = vmax.f32 %v628, 0.0
      %v631 = vmax.f32 %v629, 0.0
      %v632 = vpack.c.bf16 %v630, %v630
      %v633 = vpack.c.bf16 %v631, %v631
      %634 = vst [vmem:[%s224] sm:$0xf] %v632
      %635 = vst [vmem:[%s224 + $0x4] sm:$0xf] %v633
      %s636 = smul.u32 2, %s15
      %p637 = scmp.lt.s32.totalorder %s636, 3
      %s638 = scalar_select %p637, %s636, 3
      %s639 = smul.addr %s638, 4
      %s640 = scalar_lea.vmem %s4, %s639
      // Predicated region
      $region37: #{centernet_forward.12} parent=35 // pred_check
        %p641 = pneg %p127
      $region38: #{centernet_forward.12} parent=35 // pred_check_branch
        %643 = sbr.rel (%p641) target = $region40
      $region39: #{centernet_forward.12} parent=35 // pred_region
        %s644 = smul.u32 2, %s15
      $region40: #{centernet_forward.12} parent=35 // pred_fallthru
        _
    $region36: #{centernet_forward.12} parent=5 // pred_fallthru
      _
    %p645 = scmp.le.s32.totalorder 2, %s10
    // Predicated region
    $region41: #{centernet_forward.12} parent=5 // pred_check
      %p646 = pneg %p645
    $region42: #{centernet_forward.12} parent=5 // pred_check_branch
      %648 = sbr.rel (%p646) target = $region44
    $region43: #{centernet_forward.12} parent=5 // pred_region
      %s649 = ssub.s32 %s10, 2
      // Predicated region
      $region45: #{centernet_forward.12} parent=43 // pred_check
        %p650 = pneg %p133
      $region46: #{centernet_forward.12} parent=43 // pred_check_branch
        %652 = sbr.rel (%p650) target = $region48
      $region47: #{centernet_forward.12} parent=43 // pred_region
        %s653 = smul.u32 2, %s16
        %p654 = scmp.lt.s32.totalorder %s653, 3
        %s655 = scalar_select %p654, %s653, 3
        %s656 = smul.addr %s655, 4
        %s657 = scalar_lea.vmem %s4, %s656
      $region48: #{centernet_forward.12} parent=43 // pred_fallthru
        _
    $region44: #{centernet_forward.12} parent=5 // pred_fallthru
      _
  $region6: #{centernet_forward.12} parent=0 // loop_footer
    %s14 = sadd.s32 1, %s10
  $region7: #{centernet_forward.12} parent=0 // loop_footer_branch
    %9 = sbr.rel target = $region3
  $region8: #{centernet_forward.12} parent=0 // loop_exit
    _

// kernel: centernet_forward.15
$region0: #{centernet_forward.15}
  #allocation0 [shape = 'u32[]', space=smem, size = 0x4, offset = 0x4, fixed_abs, tag = 'smem constant byte address 0x4 - core index']
  #allocation1 [shape = 'u32[72,128]{1,0:T(1,128)}', space=vmem, size = 0x9000, scoped, tag = 'internal scratch']
  %s0 = inlined_call_operand.vmem [shape: bf16[16,576], index: 0, kind: input, shape index: {}]
  %s1 = inlined_call_operand.vmem [shape: bf16[576,256], index: 1, kind: input, shape index: {}]
  %s2 = inlined_call_operand.vmem [shape: f32[1,256], index: 2, kind: input, shape index: {}]
  %s3 = inlined_call_operand.vmem [shape: bf16[16,256], index: 3, kind: output, shape index: {}]
  %s4 = sld [smem:[#allocation0]]
  $region22: #{centernet_forward.15} parent=0
    _
  %s6 = ssub.s32 1, %s4
  %s7 = scalar_select 0, %s6, %s4
  // Predicated region
  $region2: #{centernet_forward.15} parent=0 // pred_check
    _
  $region3: #{centernet_forward.15} parent=0 // pred_check_branch
    %9 = sbr.rel (0) target = $region5
  $region4: #{centernet_forward.15} parent=0 // pred_region
    _
  $region5: #{centernet_forward.15} parent=0 // pred_fallthru
    _
  // Predicated region
  $region6: #{centernet_forward.15} parent=0 // pred_check
    _
  $region7: #{centernet_forward.15} parent=0 // pred_check_branch
    %11 = sbr.rel (0) target = $region9
  $region8: #{centernet_forward.15} parent=0 // pred_region
    _
  $region9: #{centernet_forward.15} parent=0 // pred_fallthru
    _
  // Predicated region
  $region10: #{centernet_forward.15} parent=0 // pred_check
    _
  $region11: #{centernet_forward.15} parent=0 // pred_check_branch
    %13 = sbr.rel (0) target = $region13
  $region12: #{centernet_forward.15} parent=0 // pred_region
    _
  $region13: #{centernet_forward.15} parent=0 // pred_fallthru
    _
  %v15 = vld [vmem:[%s0] sm:$0xff]
  %v16 = vld [vmem:[%s0 + $0x8] sm:$0xff]
  %v17 = vld [vmem:[%s0 + $0x10] sm:$0xf]
  %v18 = vld [vmem:[%s0 + $0x14] sm:$0xff]
  %v19 = vld [vmem:[%s0 + $0x1c] sm:$0xff]
  %v20 = vld [vmem:[%s0 + $0x24] sm:$0xf]
  %v21 = vld [vmem:[%s1] sm:$0xff]
  %v22 = vld [vmem:[%s1 + $0x8] sm:$0xff]
  %v23 = vld [vmem:[%s1 + $0x10] sm:$0xff]
  %v24 = vld [vmem:[%s1 + $0x18] sm:$0xff]
  %v25 = vld [vmem:[%s1 + $0x20] sm:$0xff]
  %v26 = vld [vmem:[%s1 + $0x28] sm:$0xff]
  %v27 = vld [vmem:[%s1 + $0x30] sm:$0xff]
  %v28 = vld [vmem:[%s1 + $0x38] sm:$0xff]
  %v29 = vld [vmem:[%s1 + $0x40] sm:$0xff]
  %v30 = vld [vmem:[%s1 + $0x48] sm:$0xff]
  %v31 = vld [vmem:[%s1 + $0x50] sm:$0xff]
  %v32 = vld [vmem:[%s1 + $0x58] sm:$0xff]
  %v33 = vld [vmem:[%s1 + $0x60] sm:$0xff]
  %v34 = vld [vmem:[%s1 + $0x68] sm:$0xff]
  %v35 = vld [vmem:[%s1 + $0x70] sm:$0xff]
  %v36 = vld [vmem:[%s1 + $0x78] sm:$0xff]
  %v37 = vld [vmem:[%s1 + $0x80] sm:$0xff]
  %v38 = vld [vmem:[%s1 + $0x88] sm:$0xff]
  %v39 = vld [vmem:[%s1 + $0x90] sm:$0xff]
  %v40 = vld [vmem:[%s1 + $0x98] sm:$0xff]
  %v41 = vld [vmem:[%s1 + $0xa0] sm:$0xff]
  %v42 = vld [vmem:[%s1 + $0xa8] sm:$0xff]
  %v43 = vld [vmem:[%s1 + $0xb0] sm:$0xff]
  %v44 = vld [vmem:[%s1 + $0xb8] sm:$0xff]
  %v45 = vld [vmem:[%s1 + $0xc0] sm:$0xff]
  %v46 = vld [vmem:[%s1 + $0xc8] sm:$0xff]
  %v47 = vld [vmem:[%s1 + $0xd0] sm:$0xff]
  %v48 = vld [vmem:[%s1 + $0xd8] sm:$0xff]
  %v49 = vld [vmem:[%s1 + $0xe0] sm:$0xff]
  %v50 = vld [vmem:[%s1 + $0xe8] sm:$0xff]
  %v51 = vld [vmem:[%s1 + $0xf0] sm:$0xff]
  %v52 = vld [vmem:[%s1 + $0xf8] sm:$0xff]
  %v53 = vld [vmem:[%s1 + $0x100] sm:$0xff]
  %v54 = vld [vmem:[%s1 + $0x108] sm:$0xff]
  %v55 = vld [vmem:[%s1 + $0x110] sm:$0xff]
  %v56 = vld [vmem:[%s1 + $0x118] sm:$0xff]
  %v57 = vld [vmem:[%s1 + $0x120] sm:$0xff]
  %v58 = vld [vmem:[%s1 + $0x128] sm:$0xff]
  %v59 = vld [vmem:[%s1 + $0x130] sm:$0xff]
  %v60 = vld [vmem:[%s1 + $0x138] sm:$0xff]
  %v61 = vld [vmem:[%s1 + $0x140] sm:$0xff]
  %v62 = vld [vmem:[%s1 + $0x148] sm:$0xff]
  %v63 = vld [vmem:[%s1 + $0x150] sm:$0xff]
  %v64 = vld [vmem:[%s1 + $0x158] sm:$0xff]
  %v65 = vld [vmem:[%s1 + $0x160] sm:$0xff]
  %v66 = vld [vmem:[%s1 + $0x168] sm:$0xff]
  %v67 = vld [vmem:[%s1 + $0x170] sm:$0xff]
  %v68 = vld [vmem:[%s1 + $0x178] sm:$0xff]
  %v69 = vld [vmem:[%s1 + $0x180] sm:$0xff]
  %v70 = vld [vmem:[%s1 + $0x188] sm:$0xff]
  %v71 = vld [vmem:[%s1 + $0x190] sm:$0xff]
  %v72 = vld [vmem:[%s1 + $0x198] sm:$0xff]
  %v73 = vld [vmem:[%s1 + $0x1a0] sm:$0xff]
  %v74 = vld [vmem:[%s1 + $0x1a8] sm:$0xff]
  %v75 = vld [vmem:[%s1 + $0x1b0] sm:$0xff]
  %v76 = vld [vmem:[%s1 + $0x1b8] sm:$0xff]
  %v77 = vld [vmem:[%s1 + $0x1c0] sm:$0xff]
  %v78 = vld [vmem:[%s1 + $0x1c8] sm:$0xff]
  %v79 = vld [vmem:[%s1 + $0x1d0] sm:$0xff]
  %v80 = vld [vmem:[%s1 + $0x1d8] sm:$0xff]
  %v81 = vld [vmem:[%s1 + $0x1e0] sm:$0xff]
  %v82 = vld [vmem:[%s1 + $0x1e8] sm:$0xff]
  %v83 = vld [vmem:[%s1 + $0x1f0] sm:$0xff]
  %v84 = vld [vmem:[%s1 + $0x1f8] sm:$0xff]
  %v85 = vld [vmem:[%s1 + $0x200] sm:$0xff]
  %v86 = vld [vmem:[%s1 + $0x208] sm:$0xff]
  %v87 = vld [vmem:[%s1 + $0x210] sm:$0xff]
  %v88 = vld [vmem:[%s1 + $0x218] sm:$0xff]
  %v89 = vld [vmem:[%s1 + $0x220] sm:$0xff]
  %v90 = vld [vmem:[%s1 + $0x228] sm:$0xff]
  %v91 = vld [vmem:[%s1 + $0x230] sm:$0xff]
  %v92 = vld [vmem:[%s1 + $0x238] sm:$0xff]
  %v93 = vld [vmem:[%s2] sm:$0x3]
  %v95 = vperm.slane %v93, 0
  %v96 = vperm.slane %v93, 1
  %v105 = vunpack.c.l.b16 %v15
  %v106 = vunpack.c.h.b16 %v15
  %v107 = vunpack.c.l.b16 %v16
  %v108 = vunpack.c.h.b16 %v16
  %v109 = vunpack.c.l.b16 %v17
  %v110 = vunpack.c.l.b16 %v18
  %v111 = vunpack.c.h.b16 %v18
  %v112 = vunpack.c.l.b16 %v19
  %v113 = vunpack.c.h.b16 %v19
  %v114 = vunpack.c.l.b16 %v20
  %v115 = vpack.c.b16 %v110, %v105
  %v116 = vpack.c.b16 %v111, %v106
  %v117 = vpack.c.b16 %v112, %v107
  %v118 = vpack.c.b16 %v113, %v108
  %v119 = vpack.c.b16 %v114, %v109
  %v196 = vunpack.c.l.b16 %v21
  %v197 = vunpack.c.h.b16 %v21
  %v198 = vunpack.c.l.b16 %v22
  %v199 = vunpack.c.h.b16 %v22
  %v200 = vunpack.c.l.b16 %v23
  %v201 = vunpack.c.h.b16 %v23
  %v202 = vunpack.c.l.b16 %v24
  %v203 = vunpack.c.h.b16 %v24
  %v204 = vunpack.c.l.b16 %v25
  %v205 = vunpack.c.h.b16 %v25
  %v206 = vunpack.c.l.b16 %v26
  %v207 = vunpack.c.h.b16 %v26
  %v208 = vunpack.c.l.b16 %v27
  %v209 = vunpack.c.h.b16 %v27
  %v210 = vunpack.c.l.b16 %v28
  %v211 = vunpack.c.h.b16 %v28
  %v212 = vunpack.c.l.b16 %v29
  %v213 = vunpack.c.h.b16 %v29
  %v214 = vunpack.c.l.b16 %v30
  %v215 = vunpack.c.h.b16 %v30
  %v216 = vunpack.c.l.b16 %v31
  %v217 = vunpack.c.h.b16 %v31
  %v218 = vunpack.c.l.b16 %v32
  %v219 = vunpack.c.h.b16 %v32
  %v220 = vunpack.c.l.b16 %v33
  %v221 = vunpack.c.h.b16 %v33
  %v222 = vunpack.c.l.b16 %v34
  %v223 = vunpack.c.h.b16 %v34
  %v224 = vunpack.c.l.b16 %v35
  %v225 = vunpack.c.h.b16 %v35
  %v226 = vunpack.c.l.b16 %v36
  %v227 = vunpack.c.h.b16 %v36
  %v228 = vunpack.c.l.b16 %v37
  %v229 = vunpack.c.h.b16 %v37
  %v230 = vunpack.c.l.b16 %v38
  %v231 = vunpack.c.h.b16 %v38
  %v232 = vunpack.c.l.b16 %v39
  %v233 = vunpack.c.h.b16 %v39
  %v234 = vunpack.c.l.b16 %v40
  %v235 = vunpack.c.h.b16 %v40
  %v236 = vunpack.c.l.b16 %v41
  %v237 = vunpack.c.h.b16 %v41
  %v238 = vunpack.c.l.b16 %v42
  %v239 = vunpack.c.h.b16 %v42
  %v240 = vunpack.c.l.b16 %v43
  %v241 = vunpack.c.h.b16 %v43
  %v242 = vunpack.c.l.b16 %v44
  %v243 = vunpack.c.h.b16 %v44
  %v244 = vunpack.c.l.b16 %v45
  %v245 = vunpack.c.h.b16 %v45
  %v246 = vunpack.c.l.b16 %v46
  %v247 = vunpack.c.h.b16 %v46
  %v248 = vunpack.c.l.b16 %v47
  %v249 = vunpack.c.h.b16 %v47
  %v250 = vunpack.c.l.b16 %v48
  %v251 = vunpack.c.h.b16 %v48
  %v252 = vunpack.c.l.b16 %v49
  %v253 = vunpack.c.h.b16 %v49
  %v254 = vunpack.c.l.b16 %v50
  %v255 = vunpack.c.h.b16 %v50
  %v256 = vunpack.c.l.b16 %v51
  %v257 = vunpack.c.h.b16 %v51
  %v258 = vunpack.c.l.b16 %v52
  %v259 = vunpack.c.h.b16 %v52
  %v260 = vunpack.c.l.b16 %v53
  %v261 = vunpack.c.h.b16 %v53
  %v262 = vunpack.c.l.b16 %v54
  %v263 = vunpack.c.h.b16 %v54
  %v264 = vunpack.c.l.b16 %v55
  %v265 = vunpack.c.h.b16 %v55
  %v266 = vunpack.c.l.b16 %v56
  %v267 = vunpack.c.h.b16 %v56
  %v268 = vunpack.c.l.b16 %v57
  %v269 = vunpack.c.h.b16 %v57
  %v270 = vunpack.c.l.b16 %v58
  %v271 = vunpack.c.h.b16 %v58
  %v272 = vunpack.c.l.b16 %v59
  %v273 = vunpack.c.h.b16 %v59
  %v274 = vunpack.c.l.b16 %v60
  %v275 = vunpack.c.h.b16 %v60
  %v276 = vunpack.c.l.b16 %v61
  %v277 = vunpack.c.h.b16 %v61
  %v278 = vunpack.c.l.b16 %v62
  %v279 = vunpack.c.h.b16 %v62
  %v280 = vunpack.c.l.b16 %v63
  %v281 = vunpack.c.h.b16 %v63
  %v282 = vunpack.c.l.b16 %v64
  %v283 = vunpack.c.h.b16 %v64
  %v284 = vunpack.c.l.b16 %v65
  %v285 = vunpack.c.h.b16 %v65
  %v286 = vunpack.c.l.b16 %v66
  %v287 = vunpack.c.h.b16 %v66
  %v288 = vunpack.c.l.b16 %v67
  %v289 = vunpack.c.h.b16 %v67
  %v290 = vunpack.c.l.b16 %v68
  %v291 = vunpack.c.h.b16 %v68
  %v292 = vunpack.c.l.b16 %v69
  %v293 = vunpack.c.h.b16 %v69
  %v294 = vunpack.c.l.b16 %v70
  %v295 = vunpack.c.h.b16 %v70
  %v296 = vunpack.c.l.b16 %v71
  %v297 = vunpack.c.h.b16 %v71
  %v298 = vunpack.c.l.b16 %v72
  %v299 = vunpack.c.h.b16 %v72
  %v300 = vunpack.c.l.b16 %v73
  %v301 = vunpack.c.h.b16 %v73
  %v302 = vunpack.c.l.b16 %v74
  %v303 = vunpack.c.h.b16 %v74
  %v304 = vunpack.c.l.b16 %v75
  %v305 = vunpack.c.h.b16 %v75
  %v306 = vunpack.c.l.b16 %v76
  %v307 = vunpack.c.h.b16 %v76
  %v308 = vunpack.c.l.b16 %v77
  %v309 = vunpack.c.h.b16 %v77
  %v310 = vunpack.c.l.b16 %v78
  %v311 = vunpack.c.h.b16 %v78
  %v312 = vunpack.c.l.b16 %v79
  %v313 = vunpack.c.h.b16 %v79
  %v314 = vunpack.c.l.b16 %v80
  %v315 = vunpack.c.h.b16 %v80
  %v316 = vunpack.c.l.b16 %v81
  %v317 = vunpack.c.h.b16 %v81
  %v318 = vunpack.c.l.b16 %v82
  %v319 = vunpack.c.h.b16 %v82
  %v320 = vunpack.c.l.b16 %v83
  %v321 = vunpack.c.h.b16 %v83
  %v322 = vunpack.c.l.b16 %v84
  %v323 = vunpack.c.h.b16 %v84
  %v324 = vunpack.c.l.b16 %v85
  %v325 = vunpack.c.h.b16 %v85
  %v326 = vunpack.c.l.b16 %v86
  %v327 = vunpack.c.h.b16 %v86
  %v328 = vunpack.c.l.b16 %v87
  %v329 = vunpack.c.h.b16 %v87
  %v330 = vunpack.c.l.b16 %v88
  %v331 = vunpack.c.h.b16 %v88
  %v332 = vunpack.c.l.b16 %v89
  %v333 = vunpack.c.h.b16 %v89
  %v334 = vunpack.c.l.b16 %v90
  %v335 = vunpack.c.h.b16 %v90
  %v336 = vunpack.c.l.b16 %v91
  %v337 = vunpack.c.h.b16 %v91
  %v338 = vunpack.c.l.b16 %v92
  %v339 = vunpack.c.h.b16 %v92
  %v340 = vpack.c.b16 %v198, %v196
  %v341 = vpack.c.b16 %v199, %v197
  %v342 = vpack.c.b16 %v202, %v200
  %v343 = vpack.c.b16 %v203, %v201
  %v344 = vpack.c.b16 %v206, %v204
  %v345 = vpack.c.b16 %v207, %v205
  %v346 = vpack.c.b16 %v210, %v208
  %v347 = vpack.c.b16 %v211, %v209
  %v348 = vpack.c.b16 %v214, %v212
  %v349 = vpack.c.b16 %v215, %v213
  %v350 = vpack.c.b16 %v218, %v216
  %v351 = vpack.c.b16 %v219, %v217
  %v352 = vpack.c.b16 %v222, %v220
  %v353 = vpack.c.b16 %v223, %v221
  %v354 = vpack.c.b16 %v226, %v224
  %v355 = vpack.c.b16 %v227, %v225
  %v356 = vpack.c.b16 %v230, %v228
  %v357 = vpack.c.b16 %v231, %v229
  %v358 = vpack.c.b16 %v234, %v232
  %v359 = vpack.c.b16 %v235, %v233
  %v360 = vpack.c.b16 %v238, %v236
  %v361 = vpack.c.b16 %v239, %v237
  %v362 = vpack.c.b16 %v242, %v240
  %v363 = vpack.c.b16 %v243, %v241
  %v364 = vpack.c.b16 %v246, %v244
  %v365 = vpack.c.b16 %v247, %v245
  %v366 = vpack.c.b16 %v250, %v248
  %v367 = vpack.c.b16 %v251, %v249
  %v368 = vpack.c.b16 %v254, %v252
  %v369 = vpack.c.b16 %v255, %v253
  %v370 = vpack.c.b16 %v258, %v256
  %v371 = vpack.c.b16 %v259, %v257
  %v372 = vpack.c.b16 %v262, %v260
  %v373 = vpack.c.b16 %v263, %v261
  %v374 = vpack.c.b16 %v266, %v264
  %v375 = vpack.c.b16 %v267, %v265
  %v376 = vpack.c.b16 %v270, %v268
  %v377 = vpack.c.b16 %v271, %v269
  %v378 = vpack.c.b16 %v274, %v272
  %v379 = vpack.c.b16 %v275, %v273
  %v380 = vpack.c.b16 %v278, %v276
  %v381 = vpack.c.b16 %v279, %v277
  %v382 = vpack.c.b16 %v282, %v280
  %v383 = vpack.c.b16 %v283, %v281
  %v384 = vpack.c.b16 %v286, %v284
  %v385 = vpack.c.b16 %v287, %v285
  %v386 = vpack.c.b16 %v290, %v288
  %v387 = vpack.c.b16 %v291, %v289
  %v388 = vpack.c.b16 %v294, %v292
  %v389 = vpack.c.b16 %v295, %v293
  %v390 = vpack.c.b16 %v298, %v296
  %v391 = vpack.c.b16 %v299, %v297
  %v392 = vpack.c.b16 %v302, %v300
  %v393 = vpack.c.b16 %v303, %v301
  %v394 = vpack.c.b16 %v306, %v304
  %v395 = vpack.c.b16 %v307, %v305
  %v396 = vpack.c.b16 %v310, %v308
  %v397 = vpack.c.b16 %v311, %v309
  %v398 = vpack.c.b16 %v314, %v312
  %v399 = vpack.c.b16 %v315, %v313
  %v400 = vpack.c.b16 %v318, %v316
  %v401 = vpack.c.b16 %v319, %v317
  %v402 = vpack.c.b16 %v322, %v320
  %v403 = vpack.c.b16 %v323, %v321
  %v404 = vpack.c.b16 %v326, %v324
  %v405 = vpack.c.b16 %v327, %v325
  %v406 = vpack.c.b16 %v330, %v328
  %v407 = vpack.c.b16 %v331, %v329
  %v408 = vpack.c.b16 %v334, %v332
  %v409 = vpack.c.b16 %v335, %v333
  %v410 = vpack.c.b16 %v338, %v336
  %v411 = vpack.c.b16 %v339, %v337
  %vm484 = vcmask 523264
  %v486 = vsel %vm484, %v119, 0
  %488 = vmatpush.bf16.msra.mxu0 %v354
  %489 = vmatpush.bf16.msra.mxu0 %v352
  %490 = vmatpush.bf16.msra.mxu0 %v350
  %491 = vmatpush.bf16.msra.mxu0 %v348
  %492 = vmatpush.bf16.msra.mxu0 %v346
  %493 = vmatpush.bf16.msra.mxu0 %v344
  %494 = vmatpush.bf16.msra.mxu0 %v342
  %495 = vmatpush.bf16.msra.mxu0 %v340
  %496 = vmatmul.bf16.gmra.mxu0 %v115
  %v497 = vpop.f32.mrf.mxu0
  %v498 = vadd.f32 %v95, %v497
  %v499 = vpop.f32.mrf.mxu0
  %v500 = vadd.f32 %v95, %v499
  %501 = vdwg.mxu0
  %502 = vmatpush.bf16.msra.mxu0 %v370
  %503 = vmatpush.bf16.msra.mxu0 %v368
  %504 = vmatpush.bf16.msra.mxu0 %v366
  %505 = vmatpush.bf16.msra.mxu0 %v364
  %506 = vmatpush.bf16.msra.mxu0 %v362
  %507 = vmatpush.bf16.msra.mxu0 %v360
  %508 = vmatpush.bf16.msra.mxu0 %v358
  %509 = vmatpush.bf16.msra.mxu0 %v356
  %510 = vmatmul.bf16.gmra.mxu0 %v116
  %v511 = vpop.f32.mrf.mxu0
  %v512 = vadd.f32 %v498, %v511
  %v513 = vpop.f32.mrf.mxu0
  %v514 = vadd.f32 %v500, %v513
  %515 = vdwg.mxu0
  %516 = vmatpush.bf16.msra.mxu0 %v386
  %517 = vmatpush.bf16.msra.mxu0 %v384
  %518 = vmatpush.bf16.msra.mxu0 %v382
  %519 = vmatpush.bf16.msra.mxu0 %v380
  %520 = vmatpush.bf16.msra.mxu0 %v378
  %521 = vmatpush.bf16.msra.mxu0 %v376
  %522 = vmatpush.bf16.msra.mxu0 %v374
  %523 = vmatpush.bf16.msra.mxu0 %v372
  %524 = vmatmul.bf16.gmra.mxu0 %v117
  %v525 = vpop.f32.mrf.mxu0
  %v526 = vadd.f32 %v512, %v525
  %v527 = vpop.f32.mrf.mxu0
  %v528 = vadd.f32 %v514, %v527
  %529 = vdwg.mxu0
  %530 = vmatpush.bf16.msra.mxu0 %v402
  %531 = vmatpush.bf16.msra.mxu0 %v400
  %532 = vmatpush.bf16.msra.mxu0 %v398
  %533 = vmatpush.bf16.msra.mxu0 %v396
  %534 = vmatpush.bf16.msra.mxu0 %v394
  %535 = vmatpush.bf16.msra.mxu0 %v392
  %536 = vmatpush.bf16.msra.mxu0 %v390
  %537 = vmatpush.bf16.msra.mxu0 %v388
  %538 = vmatmul.bf16.gmra.mxu0 %v118
  %v539 = vpop.f32.mrf.mxu0
  %v540 = vadd.f32 %v526, %v539
  %v541 = vpop.f32.mrf.mxu0
  %v542 = vadd.f32 %v528, %v541
  %543 = vdwg.mxu0
  %544 = vmatpush.bf16.msra.mxu0 0
  %545 = vmatpush.bf16.msra.mxu0 0
  %546 = vmatpush.bf16.msra.mxu0 0
  %547 = vmatpush.bf16.msra.mxu0 0
  %548 = vmatpush.bf16.msra.mxu0 %v410
  %549 = vmatpush.bf16.msra.mxu0 %v408
  %550 = vmatpush.bf16.msra.mxu0 %v406
  %551 = vmatpush.bf16.msra.mxu0 %v404
  %552 = vmatmul.bf16.gmra.mxu0 %v486
  %v553 = vpop.f32.mrf.mxu0
  %v554 = vadd.f32 %v540, %v553
  %v555 = vpop.f32.mrf.mxu0
  %v556 = vadd.f32 %v542, %v555
  %557 = vdwg.mxu0
  %558 = vmatpush.bf16.msra.mxu0 %v355
  %559 = vmatpush.bf16.msra.mxu0 %v353
  %560 = vmatpush.bf16.msra.mxu0 %v351
  %561 = vmatpush.bf16.msra.mxu0 %v349
  %562 = vmatpush.bf16.msra.mxu0 %v347
  %563 = vmatpush.bf16.msra.mxu0 %v345
  %564 = vmatpush.bf16.msra.mxu0 %v343
  %565 = vmatpush.bf16.msra.mxu0 %v341
  %566 = vmatmul.bf16.gmra.mxu0 %v115
  %v567 = vpop.f32.mrf.mxu0
  %v568 = vadd.f32 %v96, %v567
  %v569 = vpop.f32.mrf.mxu0
  %v570 = vadd.f32 %v96, %v569
  %571 = vdwg.mxu0
  %572 = vmatpush.bf16.msra.mxu0 %v371
  %573 = vmatpush.bf16.msra.mxu0 %v369
  %574 = vmatpush.bf16.msra.mxu0 %v367
  %575 = vmatpush.bf16.msra.mxu0 %v365
  %576 = vmatpush.bf16.msra.mxu0 %v363
  %577 = vmatpush.bf16.msra.mxu0 %v361
  %578 = vmatpush.bf16.msra.mxu0 %v359
  %579 = vmatpush.bf16.msra.mxu0 %v357
  %580 = vmatmul.bf16.gmra.mxu0 %v116
  %v581 = vpop.f32.mrf.mxu0
  %v582 = vadd.f32 %v568, %v581
  %v583 = vpop.f32.mrf.mxu0
  %v584 = vadd.f32 %v570, %v583
  %585 = vdwg.mxu0
  %586 = vmatpush.bf16.msra.mxu0 %v387
  %587 = vmatpush.bf16.msra.mxu0 %v385
  %588 = vmatpush.bf16.msra.mxu0 %v383
  %589 = vmatpush.bf16.msra.mxu0 %v381
  %590 = vmatpush.bf16.msra.mxu0 %v379
  %591 = vmatpush.bf16.msra.mxu0 %v377
  %592 = vmatpush.bf16.msra.mxu0 %v375
  %593 = vmatpush.bf16.msra.mxu0 %v373
  %594 = vmatmul.bf16.gmra.mxu0 %v117
  %v595 = vpop.f32.mrf.mxu0
  %v596 = vadd.f32 %v582, %v595
  %v597 = vpop.f32.mrf.mxu0
  %v598 = vadd.f32 %v584, %v597
  %599 = vdwg.mxu0
  %600 = vmatpush.bf16.msra.mxu0 %v403
  %601 = vmatpush.bf16.msra.mxu0 %v401
  %602 = vmatpush.bf16.msra.mxu0 %v399
  %603 = vmatpush.bf16.msra.mxu0 %v397
  %604 = vmatpush.bf16.msra.mxu0 %v395
  %605 = vmatpush.bf16.msra.mxu0 %v393
  %606 = vmatpush.bf16.msra.mxu0 %v391
  %607 = vmatpush.bf16.msra.mxu0 %v389
  %608 = vmatmul.bf16.gmra.mxu0 %v118
  %v609 = vpop.f32.mrf.mxu0
  %v610 = vadd.f32 %v596, %v609
  %v611 = vpop.f32.mrf.mxu0
  %v612 = vadd.f32 %v598, %v611
  %613 = vdwg.mxu0
  %614 = vmatpush.bf16.msra.mxu0 0
  %615 = vmatpush.bf16.msra.mxu0 0
  %616 = vmatpush.bf16.msra.mxu0 0
  %617 = vmatpush.bf16.msra.mxu0 0
  %618 = vmatpush.bf16.msra.mxu0 %v411
  %619 = vmatpush.bf16.msra.mxu0 %v409
  %620 = vmatpush.bf16.msra.mxu0 %v407
  %621 = vmatpush.bf16.msra.mxu0 %v405
  %622 = vmatmul.bf16.gmra.mxu0 %v486
  %v623 = vpop.f32.mrf.mxu0
  %v624 = vadd.f32 %v610, %v623
  %v625 = vpop.f32.mrf.mxu0
  %v626 = vadd.f32 %v612, %v625
  %627 = vdwg.mxu0
  %v628 = vlaneseq
  %v629 = vand.u32 %v628, 127
  %v630 = vadd.s32 %v629, 128
  %vm631 = vcmp.lt.s32.totalorder %v629, 128
  %vm632 = vcmp.lt.s32.totalorder %v630, 128
  %v633 = vmax.f32 %v554, 0.0
  %v634 = vmax.f32 %v624, 0.0
  %v635 = vmax.f32 %v556, 0.0
  %v636 = vmax.f32 %v626, 0.0
  %v637 = vsel %vm631, %v633, %v554
  %v638 = vsel %vm632, %v634, %v624
  %v639 = vsel %vm631, %v635, %v556
  %v640 = vsel %vm632, %v636, %v626
  %v641 = vpack.c.bf16 %v638, %v637
  %v642 = vpack.c.bf16 %v640, %v639
  %643 = vst [vmem:[%s3] sm:$0xff] %v641
  %644 = vst [vmem:[%s3 + $0x8] sm:$0xff] %v642
  // Predicated region
  $region14: #{centernet_forward.15} parent=0 // pred_check
    _
  $region15: #{centernet_forward.15} parent=0 // pred_check_branch
    %646 = sbr.rel (0) target = $region17
  $region16: #{centernet_forward.15} parent=0 // pred_region
    _
  $region17: #{centernet_forward.15} parent=0 // pred_fallthru
    _
  // Predicated region
  $region18: #{centernet_forward.15} parent=0 // pred_check
    _
  $region19: #{centernet_forward.15} parent=0 // pred_check_branch
    %648 = sbr.rel (0) target = $region21
  $region20: #{centernet_forward.15} parent=0 // pred_region
    _
  $region21: #{centernet_forward.15} parent=0 // pred_fallthru
    _

// kernel: centernet_forward.17
$region0: #{centernet_forward.17}
  #allocation0 [shape = 'u32[]', space=smem, size = 0x4, offset = 0x4, fixed_abs, tag = 'smem constant byte address 0x4 - core index']
  #allocation1 [shape = 'u32[72,128]{1,0:T(1,128)}', space=vmem, size = 0x9000, scoped, tag = 'internal scratch']
  %s0 = inlined_call_operand.vmem [shape: bf16[16,1152], index: 0, kind: input, shape index: {}]
  %s1 = inlined_call_operand.vmem [shape: bf16[1152,128], index: 1, kind: input, shape index: {}]
  %s2 = inlined_call_operand.vmem [shape: f32[1,128], index: 2, kind: input, shape index: {}]
  %s3 = inlined_call_operand.vmem [shape: bf16[16,128], index: 3, kind: output, shape index: {}]
  %s4 = sld [smem:[#allocation0]]
  $region22: #{centernet_forward.17} parent=0
    _
  %s6 = ssub.s32 1, %s4
  %s7 = scalar_select 0, %s6, %s4
  // Predicated region
  $region2: #{centernet_forward.17} parent=0 // pred_check
    _
  $region3: #{centernet_forward.17} parent=0 // pred_check_branch
    %9 = sbr.rel (0) target = $region5
  $region4: #{centernet_forward.17} parent=0 // pred_region
    _
  $region5: #{centernet_forward.17} parent=0 // pred_fallthru
    _
  // Predicated region
  $region6: #{centernet_forward.17} parent=0 // pred_check
    _
  $region7: #{centernet_forward.17} parent=0 // pred_check_branch
    %11 = sbr.rel (0) target = $region9
  $region8: #{centernet_forward.17} parent=0 // pred_region
    _
  $region9: #{centernet_forward.17} parent=0 // pred_fallthru
    _
  // Predicated region
  $region10: #{centernet_forward.17} parent=0 // pred_check
    _
  $region11: #{centernet_forward.17} parent=0 // pred_check_branch
    %13 = sbr.rel (0) target = $region13
  $region12: #{centernet_forward.17} parent=0 // pred_region
    _
  $region13: #{centernet_forward.17} parent=0 // pred_fallthru
    _
  %v14 = vld [vmem:[%s0] sm:$0xff]
  %v15 = vld [vmem:[%s0 + $0x8] sm:$0xff]
  %v16 = vld [vmem:[%s0 + $0x10] sm:$0xff]
  %v17 = vld [vmem:[%s0 + $0x18] sm:$0xff]
  %v18 = vld [vmem:[%s0 + $0x20] sm:$0xf]
  %v19 = vld [vmem:[%s0 + $0x24] sm:$0xff]
  %v20 = vld [vmem:[%s0 + $0x2c] sm:$0xff]
  %v21 = vld [vmem:[%s0 + $0x34] sm:$0xff]
  %v22 = vld [vmem:[%s0 + $0x3c] sm:$0xff]
  %v23 = vld [vmem:[%s0 + $0x44] sm:$0xf]
  %v24 = vld [vmem:[%s1] sm:$0xf]
  %v25 = vld [vmem:[%s1 + $0x4] sm:$0xf]
  %v26 = vld [vmem:[%s1 + $0x8] sm:$0xf]
  %v27 = vld [vmem:[%s1 + $0xc] sm:$0xf]
  %v28 = vld [vmem:[%s1 + $0x10] sm:$0xf]
  %v29 = vld [vmem:[%s1 + $0x14] sm:$0xf]
  %v30 = vld [vmem:[%s1 + $0x18] sm:$0xf]
  %v31 = vld [vmem:[%s1 + $0x1c] sm:$0xf]
  %v32 = vld [vmem:[%s1 + $0x20] sm:$0xf]
  %v33 = vld [vmem:[%s1 + $0x24] sm:$0xf]
  %v34 = vld [vmem:[%s1 + $0x28] sm:$0xf]
  %v35 = vld [vmem:[%s1 + $0x2c] sm:$0xf]
  %v36 = vld [vmem:[%s1 + $0x30] sm:$0xf]
  %v37 = vld [vmem:[%s1 + $0x34] sm:$0xf]
  %v38 = vld [vmem:[%s1 + $0x38] sm:$0xf]
  %v39 = vld [vmem:[%s1 + $0x3c] sm:$0xf]
  %v40 = vld [vmem:[%s1 + $0x40] sm:$0xf]
  %v41 = vld [vmem:[%s1 + $0x44] sm:$0xf]
  %v42 = vld [vmem:[%s1 + $0x48] sm:$0xf]
  %v43 = vld [vmem:[%s1 + $0x4c] sm:$0xf]
  %v44 = vld [vmem:[%s1 + $0x50] sm:$0xf]
  %v45 = vld [vmem:[%s1 + $0x54] sm:$0xf]
  %v46 = vld [vmem:[%s1 + $0x58] sm:$0xf]
  %v47 = vld [vmem:[%s1 + $0x5c] sm:$0xf]
  %v48 = vld [vmem:[%s1 + $0x60] sm:$0xf]
  %v49 = vld [vmem:[%s1 + $0x64] sm:$0xf]
  %v50 = vld [vmem:[%s1 + $0x68] sm:$0xf]
  %v51 = vld [vmem:[%s1 + $0x6c] sm:$0xf]
  %v52 = vld [vmem:[%s1 + $0x70] sm:$0xf]
  %v53 = vld [vmem:[%s1 + $0x74] sm:$0xf]
  %v54 = vld [vmem:[%s1 + $0x78] sm:$0xf]
  %v55 = vld [vmem:[%s1 + $0x7c] sm:$0xf]
  %v56 = vld [vmem:[%s1 + $0x80] sm:$0xf]
  %v57 = vld [vmem:[%s1 + $0x84] sm:$0xf]
  %v58 = vld [vmem:[%s1 + $0x88] sm:$0xf]
  %v59 = vld [vmem:[%s1 + $0x8c] sm:$0xf]
  %v60 = vld [vmem:[%s1 + $0x90] sm:$0xf]
  %v61 = vld [vmem:[%s1 + $0x94] sm:$0xf]
  %v62 = vld [vmem:[%s1 + $0x98] sm:$0xf]
  %v63 = vld [vmem:[%s1 + $0x9c] sm:$0xf]
  %v64 = vld [vmem:[%s1 + $0xa0] sm:$0xf]
  %v65 = vld [vmem:[%s1 + $0xa4] sm:$0xf]
  %v66 = vld [vmem:[%s1 + $0xa8] sm:$0xf]
  %v67 = vld [vmem:[%s1 + $0xac] sm:$0xf]
  %v68 = vld [vmem:[%s1 + $0xb0] sm:$0xf]
  %v69 = vld [vmem:[%s1 + $0xb4] sm:$0xf]
  %v70 = vld [vmem:[%s1 + $0xb8] sm:$0xf]
  %v71 = vld [vmem:[%s1 + $0xbc] sm:$0xf]
  %v72 = vld [vmem:[%s1 + $0xc0] sm:$0xf]
  %v73 = vld [vmem:[%s1 + $0xc4] sm:$0xf]
  %v74 = vld [vmem:[%s1 + $0xc8] sm:$0xf]
  %v75 = vld [vmem:[%s1 + $0xcc] sm:$0xf]
  %v76 = vld [vmem:[%s1 + $0xd0] sm:$0xf]
  %v77 = vld [vmem:[%s1 + $0xd4] sm:$0xf]
  %v78 = vld [vmem:[%s1 + $0xd8] sm:$0xf]
  %v79 = vld [vmem:[%s1 + $0xdc] sm:$0xf]
  %v80 = vld [vmem:[%s1 + $0xe0] sm:$0xf]
  %v81 = vld [vmem:[%s1 + $0xe4] sm:$0xf]
  %v82 = vld [vmem:[%s1 + $0xe8] sm:$0xf]
  %v83 = vld [vmem:[%s1 + $0xec] sm:$0xf]
  %v84 = vld [vmem:[%s1 + $0xf0] sm:$0xf]
  %v85 = vld [vmem:[%s1 + $0xf4] sm:$0xf]
  %v86 = vld [vmem:[%s1 + $0xf8] sm:$0xf]
  %v87 = vld [vmem:[%s1 + $0xfc] sm:$0xf]
  %v88 = vld [vmem:[%s1 + $0x100] sm:$0xf]
  %v89 = vld [vmem:[%s1 + $0x104] sm:$0xf]
  %v90 = vld [vmem:[%s1 + $0x108] sm:$0xf]
  %v91 = vld [vmem:[%s1 + $0x10c] sm:$0xf]
  %v92 = vld [vmem:[%s1 + $0x110] sm:$0xf]
  %v93 = vld [vmem:[%s1 + $0x114] sm:$0xf]
  %v94 = vld [vmem:[%s1 + $0x118] sm:$0xf]
  %v95 = vld [vmem:[%s1 + $0x11c] sm:$0xf]
  %v96 = vld [vmem:[%s1 + $0x120] sm:$0xf]
  %v97 = vld [vmem:[%s1 + $0x124] sm:$0xf]
  %v98 = vld [vmem:[%s1 + $0x128] sm:$0xf]
  %v99 = vld [vmem:[%s1 + $0x12c] sm:$0xf]
  %v100 = vld [vmem:[%s1 + $0x130] sm:$0xf]
  %v101 = vld [vmem:[%s1 + $0x134] sm:$0xf]
  %v102 = vld [vmem:[%s1 + $0x138] sm:$0xf]
  %v103 = vld [vmem:[%s1 + $0x13c] sm:$0xf]
  %v104 = vld [vmem:[%s1 + $0x140] sm:$0xf]
  %v105 = vld [vmem:[%s1 + $0x144] sm:$0xf]
  %v106 = vld [vmem:[%s1 + $0x148] sm:$0xf]
  %v107 = vld [vmem:[%s1 + $0x14c] sm:$0xf]
  %v108 = vld [vmem:[%s1 + $0x150] sm:$0xf]
  %v109 = vld [vmem:[%s1 + $0x154] sm:$0xf]
  %v110 = vld [vmem:[%s1 + $0x158] sm:$0xf]
  %v111 = vld [vmem:[%s1 + $0x15c] sm:$0xf]
  %v112 = vld [vmem:[%s1 + $0x160] sm:$0xf]
  %v113 = vld [vmem:[%s1 + $0x164] sm:$0xf]
  %v114 = vld [vmem:[%s1 + $0x168] sm:$0xf]
  %v115 = vld [vmem:[%s1 + $0x16c] sm:$0xf]
  %v116 = vld [vmem:[%s1 + $0x170] sm:$0xf]
  %v117 = vld [vmem:[%s1 + $0x174] sm:$0xf]
  %v118 = vld [vmem:[%s1 + $0x178] sm:$0xf]
  %v119 = vld [vmem:[%s1 + $0x17c] sm:$0xf]
  %v120 = vld [vmem:[%s1 + $0x180] sm:$0xf]
  %v121 = vld [vmem:[%s1 + $0x184] sm:$0xf]
  %v122 = vld [vmem:[%s1 + $0x188] sm:$0xf]
  %v123 = vld [vmem:[%s1 + $0x18c] sm:$0xf]
  %v124 = vld [vmem:[%s1 + $0x190] sm:$0xf]
  %v125 = vld [vmem:[%s1 + $0x194] sm:$0xf]
  %v126 = vld [vmem:[%s1 + $0x198] sm:$0xf]
  %v127 = vld [vmem:[%s1 + $0x19c] sm:$0xf]
  %v128 = vld [vmem:[%s1 + $0x1a0] sm:$0xf]
  %v129 = vld [vmem:[%s1 + $0x1a4] sm:$0xf]
  %v130 = vld [vmem:[%s1 + $0x1a8] sm:$0xf]
  %v131 = vld [vmem:[%s1 + $0x1ac] sm:$0xf]
  %v132 = vld [vmem:[%s1 + $0x1b0] sm:$0xf]
  %v133 = vld [vmem:[%s1 + $0x1b4] sm:$0xf]
  %v134 = vld [vmem:[%s1 + $0x1b8] sm:$0xf]
  %v135 = vld [vmem:[%s1 + $0x1bc] sm:$0xf]
  %v136 = vld [vmem:[%s1 + $0x1c0] sm:$0xf]
  %v137 = vld [vmem:[%s1 + $0x1c4] sm:$0xf]
  %v138 = vld [vmem:[%s1 + $0x1c8] sm:$0xf]
  %v139 = vld [vmem:[%s1 + $0x1cc] sm:$0xf]
  %v140 = vld [vmem:[%s1 + $0x1d0] sm:$0xf]
  %v141 = vld [vmem:[%s1 + $0x1d4] sm:$0xf]
  %v142 = vld [vmem:[%s1 + $0x1d8] sm:$0xf]
  %v143 = vld [vmem:[%s1 + $0x1dc] sm:$0xf]
  %v144 = vld [vmem:[%s1 + $0x1e0] sm:$0xf]
  %v145 = vld [vmem:[%s1 + $0x1e4] sm:$0xf]
  %v146 = vld [vmem:[%s1 + $0x1e8] sm:$0xf]
  %v147 = vld [vmem:[%s1 + $0x1ec] sm:$0xf]
  %v148 = vld [vmem:[%s1 + $0x1f0] sm:$0xf]
  %v149 = vld [vmem:[%s1 + $0x1f4] sm:$0xf]
  %v150 = vld [vmem:[%s1 + $0x1f8] sm:$0xf]
  %v151 = vld [vmem:[%s1 + $0x1fc] sm:$0xf]
  %v152 = vld [vmem:[%s1 + $0x200] sm:$0xf]
  %v153 = vld [vmem:[%s1 + $0x204] sm:$0xf]
  %v154 = vld [vmem:[%s1 + $0x208] sm:$0xf]
  %v155 = vld [vmem:[%s1 + $0x20c] sm:$0xf]
  %v156 = vld [vmem:[%s1 + $0x210] sm:$0xf]
  %v157 = vld [vmem:[%s1 + $0x214] sm:$0xf]
  %v158 = vld [vmem:[%s1 + $0x218] sm:$0xf]
  %v159 = vld [vmem:[%s1 + $0x21c] sm:$0xf]
  %v160 = vld [vmem:[%s1 + $0x220] sm:$0xf]
  %v161 = vld [vmem:[%s1 + $0x224] sm:$0xf]
  %v162 = vld [vmem:[%s1 + $0x228] sm:$0xf]
  %v163 = vld [vmem:[%s1 + $0x22c] sm:$0xf]
  %v164 = vld [vmem:[%s1 + $0x230] sm:$0xf]
  %v165 = vld [vmem:[%s1 + $0x234] sm:$0xf]
  %v166 = vld [vmem:[%s1 + $0x238] sm:$0xf]
  %v167 = vld [vmem:[%s1 + $0x23c] sm:$0xf]
  %v168 = vld [vmem:[%s2] sm:$0x1]
  %v170 = vperm.slane %v168, 0
  %v182 = vunpack.c.l.b16 %v14
  %v183 = vunpack.c.h.b16 %v14
  %v184 = vunpack.c.l.b16 %v15
  %v185 = vunpack.c.h.b16 %v15
  %v186 = vunpack.c.l.b16 %v16
  %v187 = vunpack.c.h.b16 %v16
  %v188 = vunpack.c.l.b16 %v17
  %v189 = vunpack.c.h.b16 %v17
  %v190 = vunpack.c.l.b16 %v18
  %v191 = vunpack.c.l.b16 %v19
  %v192 = vunpack.c.h.b16 %v19
  %v193 = vunpack.c.l.b16 %v20
  %v194 = vunpack.c.h.b16 %v20
  %v195 = vunpack.c.l.b16 %v21
  %v196 = vunpack.c.h.b16 %v21
  %v197 = vunpack.c.l.b16 %v22
  %v198 = vunpack.c.h.b16 %v22
  %v199 = vunpack.c.l.b16 %v23
  %v200 = vpack.c.b16 %v191, %v182
  %v201 = vpack.c.b16 %v192, %v183
  %v202 = vpack.c.b16 %v193, %v184
  %v203 = vpack.c.b16 %v194, %v185
  %v204 = vpack.c.b16 %v195, %v186
  %v205 = vpack.c.b16 %v196, %v187
  %v206 = vpack.c.b16 %v197, %v188
  %v207 = vpack.c.b16 %v198, %v189
  %v208 = vpack.c.b16 %v199, %v190
  %v362 = vunpack.c.l.b16 %v24
  %v363 = vunpack.c.l.b16 %v25
  %v364 = vunpack.c.l.b16 %v26
  %v365 = vunpack.c.l.b16 %v27
  %v366 = vunpack.c.l.b16 %v28
  %v367 = vunpack.c.l.b16 %v29
  %v368 = vunpack.c.l.b16 %v30
  %v369 = vunpack.c.l.b16 %v31
  %v370 = vunpack.c.l.b16 %v32
  %v371 = vunpack.c.l.b16 %v33
  %v372 = vunpack.c.l.b16 %v34
  %v373 = vunpack.c.l.b16 %v35
  %v374 = vunpack.c.l.b16 %v36
  %v375 = vunpack.c.l.b16 %v37
  %v376 = vunpack.c.l.b16 %v38
  %v377 = vunpack.c.l.b16 %v39
  %v378 = vunpack.c.l.b16 %v40
  %v379 = vunpack.c.l.b16 %v41
  %v380 = vunpack.c.l.b16 %v42
  %v381 = vunpack.c.l.b16 %v43
  %v382 = vunpack.c.l.b16 %v44
  %v383 = vunpack.c.l.b16 %v45
  %v384 = vunpack.c.l.b16 %v46
  %v385 = vunpack.c.l.b16 %v47
  %v386 = vunpack.c.l.b16 %v48
  %v387 = vunpack.c.l.b16 %v49
  %v388 = vunpack.c.l.b16 %v50
  %v389 = vunpack.c.l.b16 %v51
  %v390 = vunpack.c.l.b16 %v52
  %v391 = vunpack.c.l.b16 %v53
  %v392 = vunpack.c.l.b16 %v54
  %v393 = vunpack.c.l.b16 %v55
  %v394 = vunpack.c.l.b16 %v56
  %v395 = vunpack.c.l.b16 %v57
  %v396 = vunpack.c.l.b16 %v58
  %v397 = vunpack.c.l.b16 %v59
  %v398 = vunpack.c.l.b16 %v60
  %v399 = vunpack.c.l.b16 %v61
  %v400 = vunpack.c.l.b16 %v62
  %v401 = vunpack.c.l.b16 %v63
  %v402 = vunpack.c.l.b16 %v64
  %v403 = vunpack.c.l.b16 %v65
  %v404 = vunpack.c.l.b16 %v66
  %v405 = vunpack.c.l.b16 %v67
  %v406 = vunpack.c.l.b16 %v68
  %v407 = vunpack.c.l.b16 %v69
  %v408 = vunpack.c.l.b16 %v70
  %v409 = vunpack.c.l.b16 %v71
  %v410 = vunpack.c.l.b16 %v72
  %v411 = vunpack.c.l.b16 %v73
  %v412 = vunpack.c.l.b16 %v74
  %v413 = vunpack.c.l.b16 %v75
  %v414 = vunpack.c.l.b16 %v76
  %v415 = vunpack.c.l.b16 %v77
  %v416 = vunpack.c.l.b16 %v78
  %v417 = vunpack.c.l.b16 %v79
  %v418 = vunpack.c.l.b16 %v80
  %v419 = vunpack.c.l.b16 %v81
  %v420 = vunpack.c.l.b16 %v82
  %v421 = vunpack.c.l.b16 %v83
  %v422 = vunpack.c.l.b16 %v84
  %v423 = vunpack.c.l.b16 %v85
  %v424 = vunpack.c.l.b16 %v86
  %v425 = vunpack.c.l.b16 %v87
  %v426 = vunpack.c.l.b16 %v88
  %v427 = vunpack.c.l.b16 %v89
  %v428 = vunpack.c.l.b16 %v90
  %v429 = vunpack.c.l.b16 %v91
  %v430 = vunpack.c.l.b16 %v92
  %v431 = vunpack.c.l.b16 %v93
  %v432 = vunpack.c.l.b16 %v94
  %v433 = vunpack.c.l.b16 %v95
  %v434 = vunpack.c.l.b16 %v96
  %v435 = vunpack.c.l.b16 %v97
  %v436 = vunpack.c.l.b16 %v98
  %v437 = vunpack.c.l.b16 %v99
  %v438 = vunpack.c.l.b16 %v100
  %v439 = vunpack.c.l.b16 %v101
  %v440 = vunpack.c.l.b16 %v102
  %v441 = vunpack.c.l.b16 %v103
  %v442 = vunpack.c.l.b16 %v104
  %v443 = vunpack.c.l.b16 %v105
  %v444 = vunpack.c.l.b16 %v106
  %v445 = vunpack.c.l.b16 %v107
  %v446 = vunpack.c.l.b16 %v108
  %v447 = vunpack.c.l.b16 %v109
  %v448 = vunpack.c.l.b16 %v110
  %v449 = vunpack.c.l.b16 %v111
  %v450 = vunpack.c.l.b16 %v112
  %v451 = vunpack.c.l.b16 %v113
  %v452 = vunpack.c.l.b16 %v114
  %v453 = vunpack.c.l.b16 %v115
  %v454 = vunpack.c.l.b16 %v116
  %v455 = vunpack.c.l.b16 %v117
  %v456 = vunpack.c.l.b16 %v118
  %v457 = vunpack.c.l.b16 %v119
  %v458 = vunpack.c.l.b16 %v120
  %v459 = vunpack.c.l.b16 %v121
  %v460 = vunpack.c.l.b16 %v122
  %v461 = vunpack.c.l.b16 %v123
  %v462 = vunpack.c.l.b16 %v124
  %v463 = vunpack.c.l.b16 %v125
  %v464 = vunpack.c.l.b16 %v126
  %v465 = vunpack.c.l.b16 %v127
  %v466 = vunpack.c.l.b16 %v128
  %v467 = vunpack.c.l.b16 %v129
  %v468 = vunpack.c.l.b16 %v130
  %v469 = vunpack.c.l.b16 %v131
  %v470 = vunpack.c.l.b16 %v132
  %v471 = vunpack.c.l.b16 %v133
  %v472 = vunpack.c.l.b16 %v134
  %v473 = vunpack.c.l.b16 %v135
  %v474 = vunpack.c.l.b16 %v136
  %v475 = vunpack.c.l.b16 %v137
  %v476 = vunpack.c.l.b16 %v138
  %v477 = vunpack.c.l.b16 %v139
  %v478 = vunpack.c.l.b16 %v140
  %v479 = vunpack.c.l.b16 %v141
  %v480 = vunpack.c.l.b16 %v142
  %v481 = vunpack.c.l.b16 %v143
  %v482 = vunpack.c.l.b16 %v144
  %v483 = vunpack.c.l.b16 %v145
  %v484 = vunpack.c.l.b16 %v146
  %v485 = vunpack.c.l.b16 %v147
  %v486 = vunpack.c.l.b16 %v148
  %v487 = vunpack.c.l.b16 %v149
  %v488 = vunpack.c.l.b16 %v150
  %v489 = vunpack.c.l.b16 %v151
  %v490 = vunpack.c.l.b16 %v152
  %v491 = vunpack.c.l.b16 %v153
  %v492 = vunpack.c.l.b16 %v154
  %v493 = vunpack.c.l.b16 %v155
  %v494 = vunpack.c.l.b16 %v156
  %v495 = vunpack.c.l.b16 %v157
  %v496 = vunpack.c.l.b16 %v158
  %v497 = vunpack.c.l.b16 %v159
  %v498 = vunpack.c.l.b16 %v160
  %v499 = vunpack.c.l.b16 %v161
  %v500 = vunpack.c.l.b16 %v162
  %v501 = vunpack.c.l.b16 %v163
  %v502 = vunpack.c.l.b16 %v164
  %v503 = vunpack.c.l.b16 %v165
  %v504 = vunpack.c.l.b16 %v166
  %v505 = vunpack.c.l.b16 %v167
  %v506 = vpack.c.b16 %v363, %v362
  %v507 = vpack.c.b16 %v365, %v364
  %v508 = vpack.c.b16 %v367, %v366
  %v509 = vpack.c.b16 %v369, %v368
  %v510 = vpack.c.b16 %v371, %v370
  %v511 = vpack.c.b16 %v373, %v372
  %v512 = vpack.c.b16 %v375, %v374
  %v513 = vpack.c.b16 %v377, %v376
  %v514 = vpack.c.b16 %v379, %v378
  %v515 = vpack.c.b16 %v381, %v380
  %v516 = vpack.c.b16 %v383, %v382
  %v517 = vpack.c.b16 %v385, %v384
  %v518 = vpack.c.b16 %v387, %v386
  %v519 = vpack.c.b16 %v389, %v388
  %v520 = vpack.c.b16 %v391, %v390
  %v521 = vpack.c.b16 %v393, %v392
  %v522 = vpack.c.b16 %v395, %v394
  %v523 = vpack.c.b16 %v397, %v396
  %v524 = vpack.c.b16 %v399, %v398
  %v525 = vpack.c.b16 %v401, %v400
  %v526 = vpack.c.b16 %v403, %v402
  %v527 = vpack.c.b16 %v405, %v404
  %v528 = vpack.c.b16 %v407, %v406
  %v529 = vpack.c.b16 %v409, %v408
  %v530 = vpack.c.b16 %v411, %v410
  %v531 = vpack.c.b16 %v413, %v412
  %v532 = vpack.c.b16 %v415, %v414
  %v533 = vpack.c.b16 %v417, %v416
  %v534 = vpack.c.b16 %v419, %v418
  %v535 = vpack.c.b16 %v421, %v420
  %v536 = vpack.c.b16 %v423, %v422
  %v537 = vpack.c.b16 %v425, %v424
  %v538 = vpack.c.b16 %v427, %v426
  %v539 = vpack.c.b16 %v429, %v428
  %v540 = vpack.c.b16 %v431, %v430
  %v541 = vpack.c.b16 %v433, %v432
  %v542 = vpack.c.b16 %v435, %v434
  %v543 = vpack.c.b16 %v437, %v436
  %v544 = vpack.c.b16 %v439, %v438
  %v545 = vpack.c.b16 %v441, %v440
  %v546 = vpack.c.b16 %v443, %v442
  %v547 = vpack.c.b16 %v445, %v444
  %v548 = vpack.c.b16 %v447, %v446
  %v549 = vpack.c.b16 %v449, %v448
  %v550 = vpack.c.b16 %v451, %v450
  %v551 = vpack.c.b16 %v453, %v452
  %v552 = vpack.c.b16 %v455, %v454
  %v553 = vpack.c.b16 %v457, %v456
  %v554 = vpack.c.b16 %v459, %v458
  %v555 = vpack.c.b16 %v461, %v460
  %v556 = vpack.c.b16 %v463, %v462
  %v557 = vpack.c.b16 %v465, %v464
  %v558 = vpack.c.b16 %v467, %v466
  %v559 = vpack.c.b16 %v469, %v468
  %v560 = vpack.c.b16 %v471, %v470
  %v561 = vpack.c.b16 %v473, %v472
  %v562 = vpack.c.b16 %v475, %v474
  %v563 = vpack.c.b16 %v477, %v476
  %v564 = vpack.c.b16 %v479, %v478
  %v565 = vpack.c.b16 %v481, %v480
  %v566 = vpack.c.b16 %v483, %v482
  %v567 = vpack.c.b16 %v485, %v484
  %v568 = vpack.c.b16 %v487, %v486
  %v569 = vpack.c.b16 %v489, %v488
  %v570 = vpack.c.b16 %v491, %v490
  %v571 = vpack.c.b16 %v493, %v492
  %v572 = vpack.c.b16 %v495, %v494
  %v573 = vpack.c.b16 %v497, %v496
  %v574 = vpack.c.b16 %v499, %v498
  %v575 = vpack.c.b16 %v501, %v500
  %v576 = vpack.c.b16 %v503, %v502
  %v577 = vpack.c.b16 %v505, %v504
  %650 = vmatpush.bf16.msra.mxu0 %v513
  %651 = vmatpush.bf16.msra.mxu0 %v512
  %652 = vmatpush.bf16.msra.mxu0 %v511
  %653 = vmatpush.bf16.msra.mxu0 %v510
  %654 = vmatpush.bf16.msra.mxu0 %v509
  %655 = vmatpush.bf16.msra.mxu0 %v508
  %656 = vmatpush.bf16.msra.mxu0 %v507
  %657 = vmatpush.bf16.msra.mxu0 %v506
  %658 = vmatmul.bf16.gmra.mxu0 %v200
  %v659 = vpop.f32.mrf.mxu0
  %v660 = vadd.f32 %v170, %v659
  %v661 = vpop.f32.mrf.mxu0
  %v662 = vadd.f32 %v170, %v661
  %663 = vdwg.mxu0
  %664 = vmatpush.bf16.msra.mxu0 %v521
  %665 = vmatpush.bf16.msra.mxu0 %v520
  %666 = vmatpush.bf16.msra.mxu0 %v519
  %667 = vmatpush.bf16.msra.mxu0 %v518
  %668 = vmatpush.bf16.msra.mxu0 %v517
  %669 = vmatpush.bf16.msra.mxu0 %v516
  %670 = vmatpush.bf16.msra.mxu0 %v515
  %671 = vmatpush.bf16.msra.mxu0 %v514
  %672 = vmatmul.bf16.gmra.mxu0 %v201
  %v673 = vpop.f32.mrf.mxu0
  %v674 = vadd.f32 %v660, %v673
  %v675 = vpop.f32.mrf.mxu0
  %v676 = vadd.f32 %v662, %v675
  %677 = vdwg.mxu0
  %678 = vmatpush.bf16.msra.mxu0 %v529
  %679 = vmatpush.bf16.msra.mxu0 %v528
  %680 = vmatpush.bf16.msra.mxu0 %v527
  %681 = vmatpush.bf16.msra.mxu0 %v526
  %682 = vmatpush.bf16.msra.mxu0 %v525
  %683 = vmatpush.bf16.msra.mxu0 %v524
  %684 = vmatpush.bf16.msra.mxu0 %v523
  %685 = vmatpush.bf16.msra.mxu0 %v522
  %686 = vmatmul.bf16.gmra.mxu0 %v202
  %v687 = vpop.f32.mrf.mxu0
  %v688 = vadd.f32 %v674, %v687
  %v689 = vpop.f32.mrf.mxu0
  %v690 = vadd.f32 %v676, %v689
  %691 = vdwg.mxu0
  %692 = vmatpush.bf16.msra.mxu0 %v537
  %693 = vmatpush.bf16.msra.mxu0 %v536
  %694 = vmatpush.bf16.msra.mxu0 %v535
  %695 = vmatpush.bf16.msra.mxu0 %v534
  %696 = vmatpush.bf16.msra.mxu0 %v533
  %697 = vmatpush.bf16.msra.mxu0 %v532
  %698 = vmatpush.bf16.msra.mxu0 %v531
  %699 = vmatpush.bf16.msra.mxu0 %v530
  %700 = vmatmul.bf16.gmra.mxu0 %v203
  %v701 = vpop.f32.mrf.mxu0
  %v702 = vadd.f32 %v688, %v701
  %v703 = vpop.f32.mrf.mxu0
  %v704 = vadd.f32 %v690, %v703
  %705 = vdwg.mxu0
  %706 = vmatpush.bf16.msra.mxu0 %v545
  %707 = vmatpush.bf16.msra.mxu0 %v544
  %708 = vmatpush.bf16.msra.mxu0 %v543
  %709 = vmatpush.bf16.msra.mxu0 %v542
  %710 = vmatpush.bf16.msra.mxu0 %v541
  %711 = vmatpush.bf16.msra.mxu0 %v540
  %712 = vmatpush.bf16.msra.mxu0 %v539
  %713 = vmatpush.bf16.msra.mxu0 %v538
  %714 = vmatmul.bf16.gmra.mxu0 %v204
  %v715 = vpop.f32.mrf.mxu0
  %v716 = vadd.f32 %v702, %v715
  %v717 = vpop.f32.mrf.mxu0
  %v718 = vadd.f32 %v704, %v717
  %719 = vdwg.mxu0
  %720 = vmatpush.bf16.msra.mxu0 %v553
  %721 = vmatpush.bf16.msra.mxu0 %v552
  %722 = vmatpush.bf16.msra.mxu0 %v551
  %723 = vmatpush.bf16.msra.mxu0 %v550
  %724 = vmatpush.bf16.msra.mxu0 %v549
  %725 = vmatpush.bf16.msra.mxu0 %v548
  %726 = vmatpush.bf16.msra.mxu0 %v547
  %727 = vmatpush.bf16.msra.mxu0 %v546
  %728 = vmatmul.bf16.gmra.mxu0 %v205
  %v729 = vpop.f32.mrf.mxu0
  %v730 = vadd.f32 %v716, %v729
  %v731 = vpop.f32.mrf.mxu0
  %v732 = vadd.f32 %v718, %v731
  %733 = vdwg.mxu0
  %734 = vmatpush.bf16.msra.mxu0 %v561
  %735 = vmatpush.bf16.msra.mxu0 %v560
  %736 = vmatpush.bf16.msra.mxu0 %v559
  %737 = vmatpush.bf16.msra.mxu0 %v558
  %738 = vmatpush.bf16.msra.mxu0 %v557
  %739 = vmatpush.bf16.msra.mxu0 %v556
  %740 = vmatpush.bf16.msra.mxu0 %v555
  %741 = vmatpush.bf16.msra.mxu0 %v554
  %742 = vmatmul.bf16.gmra.mxu0 %v206
  %v743 = vpop.f32.mrf.mxu0
  %v744 = vadd.f32 %v730, %v743
  %v745 = vpop.f32.mrf.mxu0
  %v746 = vadd.f32 %v732, %v745
  %747 = vdwg.mxu0
  %748 = vmatpush.bf16.msra.mxu0 %v569
  %749 = vmatpush.bf16.msra.mxu0 %v568
  %750 = vmatpush.bf16.msra.mxu0 %v567
  %751 = vmatpush.bf16.msra.mxu0 %v566
  %752 = vmatpush.bf16.msra.mxu0 %v565
  %753 = vmatpush.bf16.msra.mxu0 %v564
  %754 = vmatpush.bf16.msra.mxu0 %v563
  %755 = vmatpush.bf16.msra.mxu0 %v562
  %756 = vmatmul.bf16.gmra.mxu0 %v207
  %v757 = vpop.f32.mrf.mxu0
  %v758 = vadd.f32 %v744, %v757
  %v759 = vpop.f32.mrf.mxu0
  %v760 = vadd.f32 %v746, %v759
  %761 = vdwg.mxu0
  %762 = vmatpush.bf16.msra.mxu0 %v577
  %763 = vmatpush.bf16.msra.mxu0 %v576
  %764 = vmatpush.bf16.msra.mxu0 %v575
  %765 = vmatpush.bf16.msra.mxu0 %v574
  %766 = vmatpush.bf16.msra.mxu0 %v573
  %767 = vmatpush.bf16.msra.mxu0 %v572
  %768 = vmatpush.bf16.msra.mxu0 %v571
  %769 = vmatpush.bf16.msra.mxu0 %v570
  %770 = vmatmul.bf16.gmra.mxu0 %v208
  %v771 = vpop.f32.mrf.mxu0
  %v772 = vadd.f32 %v758, %v771
  %v773 = vpop.f32.mrf.mxu0
  %v774 = vadd.f32 %v760, %v773
  %775 = vdwg.mxu0
  %v776 = vmax.f32 %v772, 0.0
  %v777 = vmax.f32 %v774, 0.0
  %v778 = vpack.c.bf16 %v776, %v776
  %v779 = vpack.c.bf16 %v777, %v777
  %780 = vst [vmem:[%s3] sm:$0xf] %v778
  %781 = vst [vmem:[%s3 + $0x4] sm:$0xf] %v779
  // Predicated region
  $region14: #{centernet_forward.17} parent=0 // pred_check
    _
  $region15: #{centernet_forward.17} parent=0 // pred_check_branch
    %783 = sbr.rel (0) target = $region17
  $region16: #{centernet_forward.17} parent=0 // pred_region
    _
  $region17: #{centernet_forward.17} parent=0 // pred_fallthru
    _
  // Predicated region
  $region18: #{centernet_forward.17} parent=0 // pred_check
    _
  $region19: #{centernet_forward.17} parent=0 // pred_check_branch
    %785 = sbr.rel (0) target = $region21
  $region20: #{centernet_forward.17} parent=0 // pred_region
    _
  $region21: #{centernet_forward.17} parent=0 // pred_fallthru
    _

// kernel: centernet_forward.16
$region0: #{centernet_forward.16}
  #allocation0 [shape = 'u32[]', space=smem, size = 0x4, offset = 0x4, fixed_abs, tag = 'smem constant byte address 0x4 - core index']
  #allocation1 [shape = 'u32[72,128]{1,0:T(1,128)}', space=vmem, size = 0x9000, scoped, tag = 'internal scratch']
  %s0 = inlined_call_operand.vmem [shape: bf16[16,1152], index: 0, kind: input, shape index: {}]
  %s1 = inlined_call_operand.vmem [shape: bf16[1152,128], index: 1, kind: input, shape index: {}]
  %s2 = inlined_call_operand.vmem [shape: f32[1,128], index: 2, kind: input, shape index: {}]
  %s3 = inlined_call_operand.vmem [shape: bf16[16,128], index: 3, kind: input, shape index: {}]
  %s4 = inlined_call_operand.vmem [shape: bf16[16,128], index: 4, kind: output, shape index: {}]
  %s5 = sld [smem:[#allocation0]]
  $region26: #{centernet_forward.16} parent=0
    _
  %s7 = ssub.s32 1, %s5
  %s8 = scalar_select 0, %s7, %s5
  // Predicated region
  $region2: #{centernet_forward.16} parent=0 // pred_check
    _
  $region3: #{centernet_forward.16} parent=0 // pred_check_branch
    %10 = sbr.rel (0) target = $region5
  $region4: #{centernet_forward.16} parent=0 // pred_region
    _
  $region5: #{centernet_forward.16} parent=0 // pred_fallthru
    _
  // Predicated region
  $region6: #{centernet_forward.16} parent=0 // pred_check
    _
  $region7: #{centernet_forward.16} parent=0 // pred_check_branch
    %12 = sbr.rel (0) target = $region9
  $region8: #{centernet_forward.16} parent=0 // pred_region
    _
  $region9: #{centernet_forward.16} parent=0 // pred_fallthru
    _
  // Predicated region
  $region10: #{centernet_forward.16} parent=0 // pred_check
    _
  $region11: #{centernet_forward.16} parent=0 // pred_check_branch
    %14 = sbr.rel (0) target = $region13
  $region12: #{centernet_forward.16} parent=0 // pred_region
    _
  $region13: #{centernet_forward.16} parent=0 // pred_fallthru
    _
  // Predicated region
  $region14: #{centernet_forward.16} parent=0 // pred_check
    _
  $region15: #{centernet_forward.16} parent=0 // pred_check_branch
    %16 = sbr.rel (0) target = $region17
  $region16: #{centernet_forward.16} parent=0 // pred_region
    _
  $region17: #{centernet_forward.16} parent=0 // pred_fallthru
    _
  %v17 = vld [vmem:[%s0] sm:$0xff]
  %v18 = vld [vmem:[%s0 + $0x8] sm:$0xff]
  %v19 = vld [vmem:[%s0 + $0x10] sm:$0xff]
  %v20 = vld [vmem:[%s0 + $0x18] sm:$0xff]
  %v21 = vld [vmem:[%s0 + $0x20] sm:$0xf]
  %v22 = vld [vmem:[%s0 + $0x24] sm:$0xff]
  %v23 = vld [vmem:[%s0 + $0x2c] sm:$0xff]
  %v24 = vld [vmem:[%s0 + $0x34] sm:$0xff]
  %v25 = vld [vmem:[%s0 + $0x3c] sm:$0xff]
  %v26 = vld [vmem:[%s0 + $0x44] sm:$0xf]
  %v27 = vld [vmem:[%s1] sm:$0xf]
  %v28 = vld [vmem:[%s1 + $0x4] sm:$0xf]
  %v29 = vld [vmem:[%s1 + $0x8] sm:$0xf]
  %v30 = vld [vmem:[%s1 + $0xc] sm:$0xf]
  %v31 = vld [vmem:[%s1 + $0x10] sm:$0xf]
  %v32 = vld [vmem:[%s1 + $0x14] sm:$0xf]
  %v33 = vld [vmem:[%s1 + $0x18] sm:$0xf]
  %v34 = vld [vmem:[%s1 + $0x1c] sm:$0xf]
  %v35 = vld [vmem:[%s1 + $0x20] sm:$0xf]
  %v36 = vld [vmem:[%s1 + $0x24] sm:$0xf]
  %v37 = vld [vmem:[%s1 + $0x28] sm:$0xf]
  %v38 = vld [vmem:[%s1 + $0x2c] sm:$0xf]
  %v39 = vld [vmem:[%s1 + $0x30] sm:$0xf]
  %v40 = vld [vmem:[%s1 + $0x34] sm:$0xf]
  %v41 = vld [vmem:[%s1 + $0x38] sm:$0xf]
  %v42 = vld [vmem:[%s1 + $0x3c] sm:$0xf]
  %v43 = vld [vmem:[%s1 + $0x40] sm:$0xf]
  %v44 = vld [vmem:[%s1 + $0x44] sm:$0xf]
  %v45 = vld [vmem:[%s1 + $0x48] sm:$0xf]
  %v46 = vld [vmem:[%s1 + $0x4c] sm:$0xf]
  %v47 = vld [vmem:[%s1 + $0x50] sm:$0xf]
  %v48 = vld [vmem:[%s1 + $0x54] sm:$0xf]
  %v49 = vld [vmem:[%s1 + $0x58] sm:$0xf]
  %v50 = vld [vmem:[%s1 + $0x5c] sm:$0xf]
  %v51 = vld [vmem:[%s1 + $0x60] sm:$0xf]
  %v52 = vld [vmem:[%s1 + $0x64] sm:$0xf]
  %v53 = vld [vmem:[%s1 + $0x68] sm:$0xf]
  %v54 = vld [vmem:[%s1 + $0x6c] sm:$0xf]
  %v55 = vld [vmem:[%s1 + $0x70] sm:$0xf]
  %v56 = vld [vmem:[%s1 + $0x74] sm:$0xf]
  %v57 = vld [vmem:[%s1 + $0x78] sm:$0xf]
  %v58 = vld [vmem:[%s1 + $0x7c] sm:$0xf]
  %v59 = vld [vmem:[%s1 + $0x80] sm:$0xf]
  %v60 = vld [vmem:[%s1 + $0x84] sm:$0xf]
  %v61 = vld [vmem:[%s1 + $0x88] sm:$0xf]
  %v62 = vld [vmem:[%s1 + $0x8c] sm:$0xf]
  %v63 = vld [vmem:[%s1 + $0x90] sm:$0xf]
  %v64 = vld [vmem:[%s1 + $0x94] sm:$0xf]
  %v65 = vld [vmem:[%s1 + $0x98] sm:$0xf]
  %v66 = vld [vmem:[%s1 + $0x9c] sm:$0xf]
  %v67 = vld [vmem:[%s1 + $0xa0] sm:$0xf]
  %v68 = vld [vmem:[%s1 + $0xa4] sm:$0xf]
  %v69 = vld [vmem:[%s1 + $0xa8] sm:$0xf]
  %v70 = vld [vmem:[%s1 + $0xac] sm:$0xf]
  %v71 = vld [vmem:[%s1 + $0xb0] sm:$0xf]
  %v72 = vld [vmem:[%s1 + $0xb4] sm:$0xf]
  %v73 = vld [vmem:[%s1 + $0xb8] sm:$0xf]
  %v74 = vld [vmem:[%s1 + $0xbc] sm:$0xf]
  %v75 = vld [vmem:[%s1 + $0xc0] sm:$0xf]
  %v76 = vld [vmem:[%s1 + $0xc4] sm:$0xf]
  %v77 = vld [vmem:[%s1 + $0xc8] sm:$0xf]
  %v78 = vld [vmem:[%s1 + $0xcc] sm:$0xf]
  %v79 = vld [vmem:[%s1 + $0xd0] sm:$0xf]
  %v80 = vld [vmem:[%s1 + $0xd4] sm:$0xf]
  %v81 = vld [vmem:[%s1 + $0xd8] sm:$0xf]
  %v82 = vld [vmem:[%s1 + $0xdc] sm:$0xf]
  %v83 = vld [vmem:[%s1 + $0xe0] sm:$0xf]
  %v84 = vld [vmem:[%s1 + $0xe4] sm:$0xf]
  %v85 = vld [vmem:[%s1 + $0xe8] sm:$0xf]
  %v86 = vld [vmem:[%s1 + $0xec] sm:$0xf]
  %v87 = vld [vmem:[%s1 + $0xf0] sm:$0xf]
  %v88 = vld [vmem:[%s1 + $0xf4] sm:$0xf]
  %v89 = vld [vmem:[%s1 + $0xf8] sm:$0xf]
  %v90 = vld [vmem:[%s1 + $0xfc] sm:$0xf]
  %v91 = vld [vmem:[%s1 + $0x100] sm:$0xf]
  %v92 = vld [vmem:[%s1 + $0x104] sm:$0xf]
  %v93 = vld [vmem:[%s1 + $0x108] sm:$0xf]
  %v94 = vld [vmem:[%s1 + $0x10c] sm:$0xf]
  %v95 = vld [vmem:[%s1 + $0x110] sm:$0xf]
  %v96 = vld [vmem:[%s1 + $0x114] sm:$0xf]
  %v97 = vld [vmem:[%s1 + $0x118] sm:$0xf]
  %v98 = vld [vmem:[%s1 + $0x11c] sm:$0xf]
  %v99 = vld [vmem:[%s1 + $0x120] sm:$0xf]
  %v100 = vld [vmem:[%s1 + $0x124] sm:$0xf]
  %v101 = vld [vmem:[%s1 + $0x128] sm:$0xf]
  %v102 = vld [vmem:[%s1 + $0x12c] sm:$0xf]
  %v103 = vld [vmem:[%s1 + $0x130] sm:$0xf]
  %v104 = vld [vmem:[%s1 + $0x134] sm:$0xf]
  %v105 = vld [vmem:[%s1 + $0x138] sm:$0xf]
  %v106 = vld [vmem:[%s1 + $0x13c] sm:$0xf]
  %v107 = vld [vmem:[%s1 + $0x140] sm:$0xf]
  %v108 = vld [vmem:[%s1 + $0x144] sm:$0xf]
  %v109 = vld [vmem:[%s1 + $0x148] sm:$0xf]
  %v110 = vld [vmem:[%s1 + $0x14c] sm:$0xf]
  %v111 = vld [vmem:[%s1 + $0x150] sm:$0xf]
  %v112 = vld [vmem:[%s1 + $0x154] sm:$0xf]
  %v113 = vld [vmem:[%s1 + $0x158] sm:$0xf]
  %v114 = vld [vmem:[%s1 + $0x15c] sm:$0xf]
  %v115 = vld [vmem:[%s1 + $0x160] sm:$0xf]
  %v116 = vld [vmem:[%s1 + $0x164] sm:$0xf]
  %v117 = vld [vmem:[%s1 + $0x168] sm:$0xf]
  %v118 = vld [vmem:[%s1 + $0x16c] sm:$0xf]
  %v119 = vld [vmem:[%s1 + $0x170] sm:$0xf]
  %v120 = vld [vmem:[%s1 + $0x174] sm:$0xf]
  %v121 = vld [vmem:[%s1 + $0x178] sm:$0xf]
  %v122 = vld [vmem:[%s1 + $0x17c] sm:$0xf]
  %v123 = vld [vmem:[%s1 + $0x180] sm:$0xf]
  %v124 = vld [vmem:[%s1 + $0x184] sm:$0xf]
  %v125 = vld [vmem:[%s1 + $0x188] sm:$0xf]
  %v126 = vld [vmem:[%s1 + $0x18c] sm:$0xf]
  %v127 = vld [vmem:[%s1 + $0x190] sm:$0xf]
  %v128 = vld [vmem:[%s1 + $0x194] sm:$0xf]
  %v129 = vld [vmem:[%s1 + $0x198] sm:$0xf]
  %v130 = vld [vmem:[%s1 + $0x19c] sm:$0xf]
  %v131 = vld [vmem:[%s1 + $0x1a0] sm:$0xf]
  %v132 = vld [vmem:[%s1 + $0x1a4] sm:$0xf]
  %v133 = vld [vmem:[%s1 + $0x1a8] sm:$0xf]
  %v134 = vld [vmem:[%s1 + $0x1ac] sm:$0xf]
  %v135 = vld [vmem:[%s1 + $0x1b0] sm:$0xf]
  %v136 = vld [vmem:[%s1 + $0x1b4] sm:$0xf]
  %v137 = vld [vmem:[%s1 + $0x1b8] sm:$0xf]
  %v138 = vld [vmem:[%s1 + $0x1bc] sm:$0xf]
  %v139 = vld [vmem:[%s1 + $0x1c0] sm:$0xf]
  %v140 = vld [vmem:[%s1 + $0x1c4] sm:$0xf]
  %v141 = vld [vmem:[%s1 + $0x1c8] sm:$0xf]
  %v142 = vld [vmem:[%s1 + $0x1cc] sm:$0xf]
  %v143 = vld [vmem:[%s1 + $0x1d0] sm:$0xf]
  %v144 = vld [vmem:[%s1 + $0x1d4] sm:$0xf]
  %v145 = vld [vmem:[%s1 + $0x1d8] sm:$0xf]
  %v146 = vld [vmem:[%s1 + $0x1dc] sm:$0xf]
  %v147 = vld [vmem:[%s1 + $0x1e0] sm:$0xf]
  %v148 = vld [vmem:[%s1 + $0x1e4] sm:$0xf]
  %v149 = vld [vmem:[%s1 + $0x1e8] sm:$0xf]
  %v150 = vld [vmem:[%s1 + $0x1ec] sm:$0xf]
  %v151 = vld [vmem:[%s1 + $0x1f0] sm:$0xf]
  %v152 = vld [vmem:[%s1 + $0x1f4] sm:$0xf]
  %v153 = vld [vmem:[%s1 + $0x1f8] sm:$0xf]
  %v154 = vld [vmem:[%s1 + $0x1fc] sm:$0xf]
  %v155 = vld [vmem:[%s1 + $0x200] sm:$0xf]
  %v156 = vld [vmem:[%s1 + $0x204] sm:$0xf]
  %v157 = vld [vmem:[%s1 + $0x208] sm:$0xf]
  %v158 = vld [vmem:[%s1 + $0x20c] sm:$0xf]
  %v159 = vld [vmem:[%s1 + $0x210] sm:$0xf]
  %v160 = vld [vmem:[%s1 + $0x214] sm:$0xf]
  %v161 = vld [vmem:[%s1 + $0x218] sm:$0xf]
  %v162 = vld [vmem:[%s1 + $0x21c] sm:$0xf]
  %v163 = vld [vmem:[%s1 + $0x220] sm:$0xf]
  %v164 = vld [vmem:[%s1 + $0x224] sm:$0xf]
  %v165 = vld [vmem:[%s1 + $0x228] sm:$0xf]
  %v166 = vld [vmem:[%s1 + $0x22c] sm:$0xf]
  %v167 = vld [vmem:[%s1 + $0x230] sm:$0xf]
  %v168 = vld [vmem:[%s1 + $0x234] sm:$0xf]
  %v169 = vld [vmem:[%s1 + $0x238] sm:$0xf]
  %v170 = vld [vmem:[%s1 + $0x23c] sm:$0xf]
  %v171 = vld [vmem:[%s2] sm:$0x1]
  %v173 = vperm.slane %v171, 0
  %v185 = vunpack.c.l.b16 %v17
  %v186 = vunpack.c.h.b16 %v17
  %v187 = vunpack.c.l.b16 %v18
  %v188 = vunpack.c.h.b16 %v18
  %v189 = vunpack.c.l.b16 %v19
  %v190 = vunpack.c.h.b16 %v19
  %v191 = vunpack.c.l.b16 %v20
  %v192 = vunpack.c.h.b16 %v20
  %v193 = vunpack.c.l.b16 %v21
  %v194 = vunpack.c.l.b16 %v22
  %v195 = vunpack.c.h.b16 %v22
  %v196 = vunpack.c.l.b16 %v23
  %v197 = vunpack.c.h.b16 %v23
  %v198 = vunpack.c.l.b16 %v24
  %v199 = vunpack.c.h.b16 %v24
  %v200 = vunpack.c.l.b16 %v25
  %v201 = vunpack.c.h.b16 %v25
  %v202 = vunpack.c.l.b16 %v26
  %v203 = vpack.c.b16 %v194, %v185
  %v204 = vpack.c.b16 %v195, %v186
  %v205 = vpack.c.b16 %v196, %v187
  %v206 = vpack.c.b16 %v197, %v188
  %v207 = vpack.c.b16 %v198, %v189
  %v208 = vpack.c.b16 %v199, %v190
  %v209 = vpack.c.b16 %v200, %v191
  %v210 = vpack.c.b16 %v201, %v192
  %v211 = vpack.c.b16 %v202, %v193
  %v365 = vunpack.c.l.b16 %v27
  %v366 = vunpack.c.l.b16 %v28
  %v367 = vunpack.c.l.b16 %v29
  %v368 = vunpack.c.l.b16 %v30
  %v369 = vunpack.c.l.b16 %v31
  %v370 = vunpack.c.l.b16 %v32
  %v371 = vunpack.c.l.b16 %v33
  %v372 = vunpack.c.l.b16 %v34
  %v373 = vunpack.c.l.b16 %v35
  %v374 = vunpack.c.l.b16 %v36
  %v375 = vunpack.c.l.b16 %v37
  %v376 = vunpack.c.l.b16 %v38
  %v377 = vunpack.c.l.b16 %v39
  %v378 = vunpack.c.l.b16 %v40
  %v379 = vunpack.c.l.b16 %v41
  %v380 = vunpack.c.l.b16 %v42
  %v381 = vunpack.c.l.b16 %v43
  %v382 = vunpack.c.l.b16 %v44
  %v383 = vunpack.c.l.b16 %v45
  %v384 = vunpack.c.l.b16 %v46
  %v385 = vunpack.c.l.b16 %v47
  %v386 = vunpack.c.l.b16 %v48
  %v387 = vunpack.c.l.b16 %v49
  %v388 = vunpack.c.l.b16 %v50
  %v389 = vunpack.c.l.b16 %v51
  %v390 = vunpack.c.l.b16 %v52
  %v391 = vunpack.c.l.b16 %v53
  %v392 = vunpack.c.l.b16 %v54
  %v393 = vunpack.c.l.b16 %v55
  %v394 = vunpack.c.l.b16 %v56
  %v395 = vunpack.c.l.b16 %v57
  %v396 = vunpack.c.l.b16 %v58
  %v397 = vunpack.c.l.b16 %v59
  %v398 = vunpack.c.l.b16 %v60
  %v399 = vunpack.c.l.b16 %v61
  %v400 = vunpack.c.l.b16 %v62
  %v401 = vunpack.c.l.b16 %v63
  %v402 = vunpack.c.l.b16 %v64
  %v403 = vunpack.c.l.b16 %v65
  %v404 = vunpack.c.l.b16 %v66
  %v405 = vunpack.c.l.b16 %v67
  %v406 = vunpack.c.l.b16 %v68
  %v407 = vunpack.c.l.b16 %v69
  %v408 = vunpack.c.l.b16 %v70
  %v409 = vunpack.c.l.b16 %v71
  %v410 = vunpack.c.l.b16 %v72
  %v411 = vunpack.c.l.b16 %v73
  %v412 = vunpack.c.l.b16 %v74
  %v413 = vunpack.c.l.b16 %v75
  %v414 = vunpack.c.l.b16 %v76
  %v415 = vunpack.c.l.b16 %v77
  %v416 = vunpack.c.l.b16 %v78
  %v417 = vunpack.c.l.b16 %v79
  %v418 = vunpack.c.l.b16 %v80
  %v419 = vunpack.c.l.b16 %v81
  %v420 = vunpack.c.l.b16 %v82
  %v421 = vunpack.c.l.b16 %v83
  %v422 = vunpack.c.l.b16 %v84
  %v423 = vunpack.c.l.b16 %v85
  %v424 = vunpack.c.l.b16 %v86
  %v425 = vunpack.c.l.b16 %v87
  %v426 = vunpack.c.l.b16 %v88
  %v427 = vunpack.c.l.b16 %v89
  %v428 = vunpack.c.l.b16 %v90
  %v429 = vunpack.c.l.b16 %v91
  %v430 = vunpack.c.l.b16 %v92
  %v431 = vunpack.c.l.b16 %v93
  %v432 = vunpack.c.l.b16 %v94
  %v433 = vunpack.c.l.b16 %v95
  %v434 = vunpack.c.l.b16 %v96
  %v435 = vunpack.c.l.b16 %v97
  %v436 = vunpack.c.l.b16 %v98
  %v437 = vunpack.c.l.b16 %v99
  %v438 = vunpack.c.l.b16 %v100
  %v439 = vunpack.c.l.b16 %v101
  %v440 = vunpack.c.l.b16 %v102
  %v441 = vunpack.c.l.b16 %v103
  %v442 = vunpack.c.l.b16 %v104
  %v443 = vunpack.c.l.b16 %v105
  %v444 = vunpack.c.l.b16 %v106
  %v445 = vunpack.c.l.b16 %v107
  %v446 = vunpack.c.l.b16 %v108
  %v447 = vunpack.c.l.b16 %v109
  %v448 = vunpack.c.l.b16 %v110
  %v449 = vunpack.c.l.b16 %v111
  %v450 = vunpack.c.l.b16 %v112
  %v451 = vunpack.c.l.b16 %v113
  %v452 = vunpack.c.l.b16 %v114
  %v453 = vunpack.c.l.b16 %v115
  %v454 = vunpack.c.l.b16 %v116
  %v455 = vunpack.c.l.b16 %v117
  %v456 = vunpack.c.l.b16 %v118
  %v457 = vunpack.c.l.b16 %v119
  %v458 = vunpack.c.l.b16 %v120
  %v459 = vunpack.c.l.b16 %v121
  %v460 = vunpack.c.l.b16 %v122
  %v461 = vunpack.c.l.b16 %v123
  %v462 = vunpack.c.l.b16 %v124
  %v463 = vunpack.c.l.b16 %v125
  %v464 = vunpack.c.l.b16 %v126
  %v465 = vunpack.c.l.b16 %v127
  %v466 = vunpack.c.l.b16 %v128
  %v467 = vunpack.c.l.b16 %v129
  %v468 = vunpack.c.l.b16 %v130
  %v469 = vunpack.c.l.b16 %v131
  %v470 = vunpack.c.l.b16 %v132
  %v471 = vunpack.c.l.b16 %v133
  %v472 = vunpack.c.l.b16 %v134
  %v473 = vunpack.c.l.b16 %v135
  %v474 = vunpack.c.l.b16 %v136
  %v475 = vunpack.c.l.b16 %v137
  %v476 = vunpack.c.l.b16 %v138
  %v477 = vunpack.c.l.b16 %v139
  %v478 = vunpack.c.l.b16 %v140
  %v479 = vunpack.c.l.b16 %v141
  %v480 = vunpack.c.l.b16 %v142
  %v481 = vunpack.c.l.b16 %v143
  %v482 = vunpack.c.l.b16 %v144
  %v483 = vunpack.c.l.b16 %v145
  %v484 = vunpack.c.l.b16 %v146
  %v485 = vunpack.c.l.b16 %v147
  %v486 = vunpack.c.l.b16 %v148
  %v487 = vunpack.c.l.b16 %v149
  %v488 = vunpack.c.l.b16 %v150
  %v489 = vunpack.c.l.b16 %v151
  %v490 = vunpack.c.l.b16 %v152
  %v491 = vunpack.c.l.b16 %v153
  %v492 = vunpack.c.l.b16 %v154
  %v493 = vunpack.c.l.b16 %v155
  %v494 = vunpack.c.l.b16 %v156
  %v495 = vunpack.c.l.b16 %v157
  %v496 = vunpack.c.l.b16 %v158
  %v497 = vunpack.c.l.b16 %v159
  %v498 = vunpack.c.l.b16 %v160
  %v499 = vunpack.c.l.b16 %v161
  %v500 = vunpack.c.l.b16 %v162
  %v501 = vunpack.c.l.b16 %v163
  %v502 = vunpack.c.l.b16 %v164
  %v503 = vunpack.c.l.b16 %v165
  %v504 = vunpack.c.l.b16 %v166
  %v505 = vunpack.c.l.b16 %v167
  %v506 = vunpack.c.l.b16 %v168
  %v507 = vunpack.c.l.b16 %v169
  %v508 = vunpack.c.l.b16 %v170
  %v509 = vpack.c.b16 %v366, %v365
  %v510 = vpack.c.b16 %v368, %v367
  %v511 = vpack.c.b16 %v370, %v369
  %v512 = vpack.c.b16 %v372, %v371
  %v513 = vpack.c.b16 %v374, %v373
  %v514 = vpack.c.b16 %v376, %v375
  %v515 = vpack.c.b16 %v378, %v377
  %v516 = vpack.c.b16 %v380, %v379
  %v517 = vpack.c.b16 %v382, %v381
  %v518 = vpack.c.b16 %v384, %v383
  %v519 = vpack.c.b16 %v386, %v385
  %v520 = vpack.c.b16 %v388, %v387
  %v521 = vpack.c.b16 %v390, %v389
  %v522 = vpack.c.b16 %v392, %v391
  %v523 = vpack.c.b16 %v394, %v393
  %v524 = vpack.c.b16 %v396, %v395
  %v525 = vpack.c.b16 %v398, %v397
  %v526 = vpack.c.b16 %v400, %v399
  %v527 = vpack.c.b16 %v402, %v401
  %v528 = vpack.c.b16 %v404, %v403
  %v529 = vpack.c.b16 %v406, %v405
  %v530 = vpack.c.b16 %v408, %v407
  %v531 = vpack.c.b16 %v410, %v409
  %v532 = vpack.c.b16 %v412, %v411
  %v533 = vpack.c.b16 %v414, %v413
  %v534 = vpack.c.b16 %v416, %v415
  %v535 = vpack.c.b16 %v418, %v417
  %v536 = vpack.c.b16 %v420, %v419
  %v537 = vpack.c.b16 %v422, %v421
  %v538 = vpack.c.b16 %v424, %v423
  %v539 = vpack.c.b16 %v426, %v425
  %v540 = vpack.c.b16 %v428, %v427
  %v541 = vpack.c.b16 %v430, %v429
  %v542 = vpack.c.b16 %v432, %v431
  %v543 = vpack.c.b16 %v434, %v433
  %v544 = vpack.c.b16 %v436, %v435
  %v545 = vpack.c.b16 %v438, %v437
  %v546 = vpack.c.b16 %v440, %v439
  %v547 = vpack.c.b16 %v442, %v441
  %v548 = vpack.c.b16 %v444, %v443
  %v549 = vpack.c.b16 %v446, %v445
  %v550 = vpack.c.b16 %v448, %v447
  %v551 = vpack.c.b16 %v450, %v449
  %v552 = vpack.c.b16 %v452, %v451
  %v553 = vpack.c.b16 %v454, %v453
  %v554 = vpack.c.b16 %v456, %v455
  %v555 = vpack.c.b16 %v458, %v457
  %v556 = vpack.c.b16 %v460, %v459
  %v557 = vpack.c.b16 %v462, %v461
  %v558 = vpack.c.b16 %v464, %v463
  %v559 = vpack.c.b16 %v466, %v465
  %v560 = vpack.c.b16 %v468, %v467
  %v561 = vpack.c.b16 %v470, %v469
  %v562 = vpack.c.b16 %v472, %v471
  %v563 = vpack.c.b16 %v474, %v473
  %v564 = vpack.c.b16 %v476, %v475
  %v565 = vpack.c.b16 %v478, %v477
  %v566 = vpack.c.b16 %v480, %v479
  %v567 = vpack.c.b16 %v482, %v481
  %v568 = vpack.c.b16 %v484, %v483
  %v569 = vpack.c.b16 %v486, %v485
  %v570 = vpack.c.b16 %v488, %v487
  %v571 = vpack.c.b16 %v490, %v489
  %v572 = vpack.c.b16 %v492, %v491
  %v573 = vpack.c.b16 %v494, %v493
  %v574 = vpack.c.b16 %v496, %v495
  %v575 = vpack.c.b16 %v498, %v497
  %v576 = vpack.c.b16 %v500, %v499
  %v577 = vpack.c.b16 %v502, %v501
  %v578 = vpack.c.b16 %v504, %v503
  %v579 = vpack.c.b16 %v506, %v505
  %v580 = vpack.c.b16 %v508, %v507
  %653 = vmatpush.bf16.msra.mxu0 %v516
  %654 = vmatpush.bf16.msra.mxu0 %v515
  %655 = vmatpush.bf16.msra.mxu0 %v514
  %656 = vmatpush.bf16.msra.mxu0 %v513
  %657 = vmatpush.bf16.msra.mxu0 %v512
  %658 = vmatpush.bf16.msra.mxu0 %v511
  %659 = vmatpush.bf16.msra.mxu0 %v510
  %660 = vmatpush.bf16.msra.mxu0 %v509
  %661 = vmatmul.bf16.gmra.mxu0 %v203
  %v662 = vpop.f32.mrf.mxu0
  %v663 = vadd.f32 %v173, %v662
  %v664 = vpop.f32.mrf.mxu0
  %v665 = vadd.f32 %v173, %v664
  %666 = vdwg.mxu0
  %667 = vmatpush.bf16.msra.mxu0 %v524
  %668 = vmatpush.bf16.msra.mxu0 %v523
  %669 = vmatpush.bf16.msra.mxu0 %v522
  %670 = vmatpush.bf16.msra.mxu0 %v521
  %671 = vmatpush.bf16.msra.mxu0 %v520
  %672 = vmatpush.bf16.msra.mxu0 %v519
  %673 = vmatpush.bf16.msra.mxu0 %v518
  %674 = vmatpush.bf16.msra.mxu0 %v517
  %675 = vmatmul.bf16.gmra.mxu0 %v204
  %v676 = vpop.f32.mrf.mxu0
  %v677 = vadd.f32 %v663, %v676
  %v678 = vpop.f32.mrf.mxu0
  %v679 = vadd.f32 %v665, %v678
  %680 = vdwg.mxu0
  %681 = vmatpush.bf16.msra.mxu0 %v532
  %682 = vmatpush.bf16.msra.mxu0 %v531
  %683 = vmatpush.bf16.msra.mxu0 %v530
  %684 = vmatpush.bf16.msra.mxu0 %v529
  %685 = vmatpush.bf16.msra.mxu0 %v528
  %686 = vmatpush.bf16.msra.mxu0 %v527
  %687 = vmatpush.bf16.msra.mxu0 %v526
  %688 = vmatpush.bf16.msra.mxu0 %v525
  %689 = vmatmul.bf16.gmra.mxu0 %v205
  %v690 = vpop.f32.mrf.mxu0
  %v691 = vadd.f32 %v677, %v690
  %v692 = vpop.f32.mrf.mxu0
  %v693 = vadd.f32 %v679, %v692
  %694 = vdwg.mxu0
  %695 = vmatpush.bf16.msra.mxu0 %v540
  %696 = vmatpush.bf16.msra.mxu0 %v539
  %697 = vmatpush.bf16.msra.mxu0 %v538
  %698 = vmatpush.bf16.msra.mxu0 %v537
  %699 = vmatpush.bf16.msra.mxu0 %v536
  %700 = vmatpush.bf16.msra.mxu0 %v535
  %701 = vmatpush.bf16.msra.mxu0 %v534
  %702 = vmatpush.bf16.msra.mxu0 %v533
  %703 = vmatmul.bf16.gmra.mxu0 %v206
  %v704 = vpop.f32.mrf.mxu0
  %v705 = vadd.f32 %v691, %v704
  %v706 = vpop.f32.mrf.mxu0
  %v707 = vadd.f32 %v693, %v706
  %708 = vdwg.mxu0
  %709 = vmatpush.bf16.msra.mxu0 %v548
  %710 = vmatpush.bf16.msra.mxu0 %v547
  %711 = vmatpush.bf16.msra.mxu0 %v546
  %712 = vmatpush.bf16.msra.mxu0 %v545
  %713 = vmatpush.bf16.msra.mxu0 %v544
  %714 = vmatpush.bf16.msra.mxu0 %v543
  %715 = vmatpush.bf16.msra.mxu0 %v542
  %716 = vmatpush.bf16.msra.mxu0 %v541
  %717 = vmatmul.bf16.gmra.mxu0 %v207
  %v718 = vpop.f32.mrf.mxu0
  %v719 = vadd.f32 %v705, %v718
  %v720 = vpop.f32.mrf.mxu0
  %v721 = vadd.f32 %v707, %v720
  %722 = vdwg.mxu0
  %723 = vmatpush.bf16.msra.mxu0 %v556
  %724 = vmatpush.bf16.msra.mxu0 %v555
  %725 = vmatpush.bf16.msra.mxu0 %v554
  %726 = vmatpush.bf16.msra.mxu0 %v553
  %727 = vmatpush.bf16.msra.mxu0 %v552
  %728 = vmatpush.bf16.msra.mxu0 %v551
  %729 = vmatpush.bf16.msra.mxu0 %v550
  %730 = vmatpush.bf16.msra.mxu0 %v549
  %731 = vmatmul.bf16.gmra.mxu0 %v208
  %v732 = vpop.f32.mrf.mxu0
  %v733 = vadd.f32 %v719, %v732
  %v734 = vpop.f32.mrf.mxu0
  %v735 = vadd.f32 %v721, %v734
  %736 = vdwg.mxu0
  %737 = vmatpush.bf16.msra.mxu0 %v564
  %738 = vmatpush.bf16.msra.mxu0 %v563
  %739 = vmatpush.bf16.msra.mxu0 %v562
  %740 = vmatpush.bf16.msra.mxu0 %v561
  %741 = vmatpush.bf16.msra.mxu0 %v560
  %742 = vmatpush.bf16.msra.mxu0 %v559
  %743 = vmatpush.bf16.msra.mxu0 %v558
  %744 = vmatpush.bf16.msra.mxu0 %v557
  %745 = vmatmul.bf16.gmra.mxu0 %v209
  %v746 = vpop.f32.mrf.mxu0
  %v747 = vadd.f32 %v733, %v746
  %v748 = vpop.f32.mrf.mxu0
  %v749 = vadd.f32 %v735, %v748
  %750 = vdwg.mxu0
  %751 = vmatpush.bf16.msra.mxu0 %v572
  %752 = vmatpush.bf16.msra.mxu0 %v571
  %753 = vmatpush.bf16.msra.mxu0 %v570
  %754 = vmatpush.bf16.msra.mxu0 %v569
  %755 = vmatpush.bf16.msra.mxu0 %v568
  %756 = vmatpush.bf16.msra.mxu0 %v567
  %757 = vmatpush.bf16.msra.mxu0 %v566
  %758 = vmatpush.bf16.msra.mxu0 %v565
  %759 = vmatmul.bf16.gmra.mxu0 %v210
  %v760 = vpop.f32.mrf.mxu0
  %v761 = vadd.f32 %v747, %v760
  %v762 = vpop.f32.mrf.mxu0
  %v763 = vadd.f32 %v749, %v762
  %764 = vdwg.mxu0
  %765 = vmatpush.bf16.msra.mxu0 %v580
  %766 = vmatpush.bf16.msra.mxu0 %v579
  %767 = vmatpush.bf16.msra.mxu0 %v578
  %768 = vmatpush.bf16.msra.mxu0 %v577
  %769 = vmatpush.bf16.msra.mxu0 %v576
  %770 = vmatpush.bf16.msra.mxu0 %v575
  %771 = vmatpush.bf16.msra.mxu0 %v574
  %772 = vmatpush.bf16.msra.mxu0 %v573
  %773 = vmatmul.bf16.gmra.mxu0 %v211
  %v774 = vpop.f32.mrf.mxu0
  %v775 = vadd.f32 %v761, %v774
  %v776 = vpop.f32.mrf.mxu0
  %v777 = vadd.f32 %v763, %v776
  %778 = vdwg.mxu0
  %v779 = vld [vmem:[%s3] sm:$0xf]
  %v780 = vld [vmem:[%s3 + $0x4] sm:$0xf]
  %v781 = vunpack.c.l.bf16 %v779
  %v782 = vunpack.c.l.bf16 %v780
  %v783 = vadd.f32 %v775, %v781
  %v784 = vadd.f32 %v777, %v782
  %v785 = vmax.f32 %v783, 0.0
  %v786 = vmax.f32 %v784, 0.0
  %v787 = vpack.c.bf16 %v785, %v785
  %v788 = vpack.c.bf16 %v786, %v786
  %789 = vst [vmem:[%s4] sm:$0xf] %v787
  %790 = vst [vmem:[%s4 + $0x4] sm:$0xf] %v788
  // Predicated region
  $region18: #{centernet_forward.16} parent=0 // pred_check
    _
  $region19: #{centernet_forward.16} parent=0 // pred_check_branch
    %792 = sbr.rel (0) target = $region21
  $region20: #{centernet_forward.16} parent=0 // pred_region
    _
  $region21: #{centernet_forward.16} parent=0 // pred_fallthru
    _
  // Predicated region
  $region22: #{centernet_forward.16} parent=0 // pred_check
    _
  $region23: #{centernet_forward.16} parent=0 // pred_check_branch
    %794 = sbr.rel (0) target = $region25
  $region24: #{centernet_forward.16} parent=0 // pred_region
    _
  $region25: #{centernet_forward.16} parent=0 // pred_fallthru
    _

// kernel: centernet_forward.19
$region0: #{centernet_forward.19}
  #allocation0 [shape = 'u32[]', space=smem, size = 0x4, offset = 0x4, fixed_abs, tag = 'smem constant byte address 0x4 - core index']
  #allocation1 [shape = 'u32[72,128]{1,0:T(1,128)}', space=vmem, size = 0x9000, scoped, tag = 'internal scratch']
  %s0 = inlined_call_operand.vmem [shape: bf16[16,1152], index: 0, kind: input, shape index: {}]
  %s1 = inlined_call_operand.vmem [shape: bf16[1152,128], index: 1, kind: input, shape index: {}]
  %s2 = inlined_call_operand.vmem [shape: f32[1,128], index: 2, kind: input, shape index: {}]
  %s3 = inlined_call_operand.vmem [shape: bf16[128,128], index: 3, kind: input, shape index: {}]
  %s4 = inlined_call_operand.vmem [shape: f32[1,128], index: 4, kind: input, shape index: {}]
  %s5 = inlined_call_operand.vmem [shape: f32[16,128], index: 5, kind: output, shape index: {}]
  %s6 = sld [smem:[#allocation0]]
  $region30: #{centernet_forward.19} parent=0
    _
  %s8 = ssub.s32 1, %s6
  %s9 = scalar_select 0, %s8, %s6
  // Predicated region
  $region2: #{centernet_forward.19} parent=0 // pred_check
    _
  $region3: #{centernet_forward.19} parent=0 // pred_check_branch
    %11 = sbr.rel (0) target = $region5
  $region4: #{centernet_forward.19} parent=0 // pred_region
    _
  $region5: #{centernet_forward.19} parent=0 // pred_fallthru
    _
  // Predicated region
  $region6: #{centernet_forward.19} parent=0 // pred_check
    _
  $region7: #{centernet_forward.19} parent=0 // pred_check_branch
    %13 = sbr.rel (0) target = $region9
  $region8: #{centernet_forward.19} parent=0 // pred_region
    _
  $region9: #{centernet_forward.19} parent=0 // pred_fallthru
    _
  // Predicated region
  $region10: #{centernet_forward.19} parent=0 // pred_check
    _
  $region11: #{centernet_forward.19} parent=0 // pred_check_branch
    %15 = sbr.rel (0) target = $region13
  $region12: #{centernet_forward.19} parent=0 // pred_region
    _
  $region13: #{centernet_forward.19} parent=0 // pred_fallthru
    _
  // Predicated region
  $region14: #{centernet_forward.19} parent=0 // pred_check
    _
  $region15: #{centernet_forward.19} parent=0 // pred_check_branch
    %17 = sbr.rel (0) target = $region17
  $region16: #{centernet_forward.19} parent=0 // pred_region
    _
  $region17: #{centernet_forward.19} parent=0 // pred_fallthru
    _
  // Predicated region
  $region18: #{centernet_forward.19} parent=0 // pred_check
    _
  $region19: #{centernet_forward.19} parent=0 // pred_check_branch
    %19 = sbr.rel (0) target = $region21
  $region20: #{centernet_forward.19} parent=0 // pred_region
    _
  $region21: #{centernet_forward.19} parent=0 // pred_fallthru
    _
  %v20 = vld [vmem:[%s0] sm:$0xff]
  %v21 = vld [vmem:[%s0 + $0x8] sm:$0xff]
  %v22 = vld [vmem:[%s0 + $0x10] sm:$0xff]
  %v23 = vld [vmem:[%s0 + $0x18] sm:$0xff]
  %v24 = vld [vmem:[%s0 + $0x20] sm:$0xf]
  %v25 = vld [vmem:[%s0 + $0x24] sm:$0xff]
  %v26 = vld [vmem:[%s0 + $0x2c] sm:$0xff]
  %v27 = vld [vmem:[%s0 + $0x34] sm:$0xff]
  %v28 = vld [vmem:[%s0 + $0x3c] sm:$0xff]
  %v29 = vld [vmem:[%s0 + $0x44] sm:$0xf]
  %v30 = vld [vmem:[%s1] sm:$0xf]
  %v31 = vld [vmem:[%s1 + $0x4] sm:$0xf]
  %v32 = vld [vmem:[%s1 + $0x8] sm:$0xf]
  %v33 = vld [vmem:[%s1 + $0xc] sm:$0xf]
  %v34 = vld [vmem:[%s1 + $0x10] sm:$0xf]
  %v35 = vld [vmem:[%s1 + $0x14] sm:$0xf]
  %v36 = vld [vmem:[%s1 + $0x18] sm:$0xf]
  %v37 = vld [vmem:[%s1 + $0x1c] sm:$0xf]
  %v38 = vld [vmem:[%s1 + $0x20] sm:$0xf]
  %v39 = vld [vmem:[%s1 + $0x24] sm:$0xf]
  %v40 = vld [vmem:[%s1 + $0x28] sm:$0xf]
  %v41 = vld [vmem:[%s1 + $0x2c] sm:$0xf]
  %v42 = vld [vmem:[%s1 + $0x30] sm:$0xf]
  %v43 = vld [vmem:[%s1 + $0x34] sm:$0xf]
  %v44 = vld [vmem:[%s1 + $0x38] sm:$0xf]
  %v45 = vld [vmem:[%s1 + $0x3c] sm:$0xf]
  %v46 = vld [vmem:[%s1 + $0x40] sm:$0xf]
  %v47 = vld [vmem:[%s1 + $0x44] sm:$0xf]
  %v48 = vld [vmem:[%s1 + $0x48] sm:$0xf]
  %v49 = vld [vmem:[%s1 + $0x4c] sm:$0xf]
  %v50 = vld [vmem:[%s1 + $0x50] sm:$0xf]
  %v51 = vld [vmem:[%s1 + $0x54] sm:$0xf]
  %v52 = vld [vmem:[%s1 + $0x58] sm:$0xf]
  %v53 = vld [vmem:[%s1 + $0x5c] sm:$0xf]
  %v54 = vld [vmem:[%s1 + $0x60] sm:$0xf]
  %v55 = vld [vmem:[%s1 + $0x64] sm:$0xf]
  %v56 = vld [vmem:[%s1 + $0x68] sm:$0xf]
  %v57 = vld [vmem:[%s1 + $0x6c] sm:$0xf]
  %v58 = vld [vmem:[%s1 + $0x70] sm:$0xf]
  %v59 = vld [vmem:[%s1 + $0x74] sm:$0xf]
  %v60 = vld [vmem:[%s1 + $0x78] sm:$0xf]
  %v61 = vld [vmem:[%s1 + $0x7c] sm:$0xf]
  %v62 = vld [vmem:[%s1 + $0x80] sm:$0xf]
  %v63 = vld [vmem:[%s1 + $0x84] sm:$0xf]
  %v64 = vld [vmem:[%s1 + $0x88] sm:$0xf]
  %v65 = vld [vmem:[%s1 + $0x8c] sm:$0xf]
  %v66 = vld [vmem:[%s1 + $0x90] sm:$0xf]
  %v67 = vld [vmem:[%s1 + $0x94] sm:$0xf]
  %v68 = vld [vmem:[%s1 + $0x98] sm:$0xf]
  %v69 = vld [vmem:[%s1 + $0x9c] sm:$0xf]
  %v70 = vld [vmem:[%s1 + $0xa0] sm:$0xf]
  %v71 = vld [vmem:[%s1 + $0xa4] sm:$0xf]
  %v72 = vld [vmem:[%s1 + $0xa8] sm:$0xf]
  %v73 = vld [vmem:[%s1 + $0xac] sm:$0xf]
  %v74 = vld [vmem:[%s1 + $0xb0] sm:$0xf]
  %v75 = vld [vmem:[%s1 + $0xb4] sm:$0xf]
  %v76 = vld [vmem:[%s1 + $0xb8] sm:$0xf]
  %v77 = vld [vmem:[%s1 + $0xbc] sm:$0xf]
  %v78 = vld [vmem:[%s1 + $0xc0] sm:$0xf]
  %v79 = vld [vmem:[%s1 + $0xc4] sm:$0xf]
  %v80 = vld [vmem:[%s1 + $0xc8] sm:$0xf]
  %v81 = vld [vmem:[%s1 + $0xcc] sm:$0xf]
  %v82 = vld [vmem:[%s1 + $0xd0] sm:$0xf]
  %v83 = vld [vmem:[%s1 + $0xd4] sm:$0xf]
  %v84 = vld [vmem:[%s1 + $0xd8] sm:$0xf]
  %v85 = vld [vmem:[%s1 + $0xdc] sm:$0xf]
  %v86 = vld [vmem:[%s1 + $0xe0] sm:$0xf]
  %v87 = vld [vmem:[%s1 + $0xe4] sm:$0xf]
  %v88 = vld [vmem:[%s1 + $0xe8] sm:$0xf]
  %v89 = vld [vmem:[%s1 + $0xec] sm:$0xf]
  %v90 = vld [vmem:[%s1 + $0xf0] sm:$0xf]
  %v91 = vld [vmem:[%s1 + $0xf4] sm:$0xf]
  %v92 = vld [vmem:[%s1 + $0xf8] sm:$0xf]
  %v93 = vld [vmem:[%s1 + $0xfc] sm:$0xf]
  %v94 = vld [vmem:[%s1 + $0x100] sm:$0xf]
  %v95 = vld [vmem:[%s1 + $0x104] sm:$0xf]
  %v96 = vld [vmem:[%s1 + $0x108] sm:$0xf]
  %v97 = vld [vmem:[%s1 + $0x10c] sm:$0xf]
  %v98 = vld [vmem:[%s1 + $0x110] sm:$0xf]
  %v99 = vld [vmem:[%s1 + $0x114] sm:$0xf]
  %v100 = vld [vmem:[%s1 + $0x118] sm:$0xf]
  %v101 = vld [vmem:[%s1 + $0x11c] sm:$0xf]
  %v102 = vld [vmem:[%s1 + $0x120] sm:$0xf]
  %v103 = vld [vmem:[%s1 + $0x124] sm:$0xf]
  %v104 = vld [vmem:[%s1 + $0x128] sm:$0xf]
  %v105 = vld [vmem:[%s1 + $0x12c] sm:$0xf]
  %v106 = vld [vmem:[%s1 + $0x130] sm:$0xf]
  %v107 = vld [vmem:[%s1 + $0x134] sm:$0xf]
  %v108 = vld [vmem:[%s1 + $0x138] sm:$0xf]
  %v109 = vld [vmem:[%s1 + $0x13c] sm:$0xf]
  %v110 = vld [vmem:[%s1 + $0x140] sm:$0xf]
  %v111 = vld [vmem:[%s1 + $0x144] sm:$0xf]
  %v112 = vld [vmem:[%s1 + $0x148] sm:$0xf]
  %v113 = vld [vmem:[%s1 + $0x14c] sm:$0xf]
  %v114 = vld [vmem:[%s1 + $0x150] sm:$0xf]
  %v115 = vld [vmem:[%s1 + $0x154] sm:$0xf]
  %v116 = vld [vmem:[%s1 + $0x158] sm:$0xf]
  %v117 = vld [vmem:[%s1 + $0x15c] sm:$0xf]
  %v118 = vld [vmem:[%s1 + $0x160] sm:$0xf]
  %v119 = vld [vmem:[%s1 + $0x164] sm:$0xf]
  %v120 = vld [vmem:[%s1 + $0x168] sm:$0xf]
  %v121 = vld [vmem:[%s1 + $0x16c] sm:$0xf]
  %v122 = vld [vmem:[%s1 + $0x170] sm:$0xf]
  %v123 = vld [vmem:[%s1 + $0x174] sm:$0xf]
  %v124 = vld [vmem:[%s1 + $0x178] sm:$0xf]
  %v125 = vld [vmem:[%s1 + $0x17c] sm:$0xf]
  %v126 = vld [vmem:[%s1 + $0x180] sm:$0xf]
  %v127 = vld [vmem:[%s1 + $0x184] sm:$0xf]
  %v128 = vld [vmem:[%s1 + $0x188] sm:$0xf]
  %v129 = vld [vmem:[%s1 + $0x18c] sm:$0xf]
  %v130 = vld [vmem:[%s1 + $0x190] sm:$0xf]
  %v131 = vld [vmem:[%s1 + $0x194] sm:$0xf]
  %v132 = vld [vmem:[%s1 + $0x198] sm:$0xf]
  %v133 = vld [vmem:[%s1 + $0x19c] sm:$0xf]
  %v134 = vld [vmem:[%s1 + $0x1a0] sm:$0xf]
  %v135 = vld [vmem:[%s1 + $0x1a4] sm:$0xf]
  %v136 = vld [vmem:[%s1 + $0x1a8] sm:$0xf]
  %v137 = vld [vmem:[%s1 + $0x1ac] sm:$0xf]
  %v138 = vld [vmem:[%s1 + $0x1b0] sm:$0xf]
  %v139 = vld [vmem:[%s1 + $0x1b4] sm:$0xf]
  %v140 = vld [vmem:[%s1 + $0x1b8] sm:$0xf]
  %v141 = vld [vmem:[%s1 + $0x1bc] sm:$0xf]
  %v142 = vld [vmem:[%s1 + $0x1c0] sm:$0xf]
  %v143 = vld [vmem:[%s1 + $0x1c4] sm:$0xf]
  %v144 = vld [vmem:[%s1 + $0x1c8] sm:$0xf]
  %v145 = vld [vmem:[%s1 + $0x1cc] sm:$0xf]
  %v146 = vld [vmem:[%s1 + $0x1d0] sm:$0xf]
  %v147 = vld [vmem:[%s1 + $0x1d4] sm:$0xf]
  %v148 = vld [vmem:[%s1 + $0x1d8] sm:$0xf]
  %v149 = vld [vmem:[%s1 + $0x1dc] sm:$0xf]
  %v150 = vld [vmem:[%s1 + $0x1e0] sm:$0xf]
  %v151 = vld [vmem:[%s1 + $0x1e4] sm:$0xf]
  %v152 = vld [vmem:[%s1 + $0x1e8] sm:$0xf]
  %v153 = vld [vmem:[%s1 + $0x1ec] sm:$0xf]
  %v154 = vld [vmem:[%s1 + $0x1f0] sm:$0xf]
  %v155 = vld [vmem:[%s1 + $0x1f4] sm:$0xf]
  %v156 = vld [vmem:[%s1 + $0x1f8] sm:$0xf]
  %v157 = vld [vmem:[%s1 + $0x1fc] sm:$0xf]
  %v158 = vld [vmem:[%s1 + $0x200] sm:$0xf]
  %v159 = vld [vmem:[%s1 + $0x204] sm:$0xf]
  %v160 = vld [vmem:[%s1 + $0x208] sm:$0xf]
  %v161 = vld [vmem:[%s1 + $0x20c] sm:$0xf]
  %v162 = vld [vmem:[%s1 + $0x210] sm:$0xf]
  %v163 = vld [vmem:[%s1 + $0x214] sm:$0xf]
  %v164 = vld [vmem:[%s1 + $0x218] sm:$0xf]
  %v165 = vld [vmem:[%s1 + $0x21c] sm:$0xf]
  %v166 = vld [vmem:[%s1 + $0x220] sm:$0xf]
  %v167 = vld [vmem:[%s1 + $0x224] sm:$0xf]
  %v168 = vld [vmem:[%s1 + $0x228] sm:$0xf]
  %v169 = vld [vmem:[%s1 + $0x22c] sm:$0xf]
  %v170 = vld [vmem:[%s1 + $0x230] sm:$0xf]
  %v171 = vld [vmem:[%s1 + $0x234] sm:$0xf]
  %v172 = vld [vmem:[%s1 + $0x238] sm:$0xf]
  %v173 = vld [vmem:[%s1 + $0x23c] sm:$0xf]
  %v174 = vld [vmem:[%s2] sm:$0x1]
  %v176 = vperm.slane %v174, 0
  %v188 = vunpack.c.l.b16 %v20
  %v189 = vunpack.c.h.b16 %v20
  %v190 = vunpack.c.l.b16 %v21
  %v191 = vunpack.c.h.b16 %v21
  %v192 = vunpack.c.l.b16 %v22
  %v193 = vunpack.c.h.b16 %v22
  %v194 = vunpack.c.l.b16 %v23
  %v195 = vunpack.c.h.b16 %v23
  %v196 = vunpack.c.l.b16 %v24
  %v197 = vunpack.c.l.b16 %v25
  %v198 = vunpack.c.h.b16 %v25
  %v199 = vunpack.c.l.b16 %v26
  %v200 = vunpack.c.h.b16 %v26
  %v201 = vunpack.c.l.b16 %v27
  %v202 = vunpack.c.h.b16 %v27
  %v203 = vunpack.c.l.b16 %v28
  %v204 = vunpack.c.h.b16 %v28
  %v205 = vunpack.c.l.b16 %v29
  %v206 = vpack.c.b16 %v197, %v188
  %v207 = vpack.c.b16 %v198, %v189
  %v208 = vpack.c.b16 %v199, %v190
  %v209 = vpack.c.b16 %v200, %v191
  %v210 = vpack.c.b16 %v201, %v192
  %v211 = vpack.c.b16 %v202, %v193
  %v212 = vpack.c.b16 %v203, %v194
  %v213 = vpack.c.b16 %v204, %v195
  %v214 = vpack.c.b16 %v205, %v196
  %v368 = vunpack.c.l.b16 %v30
  %v369 = vunpack.c.l.b16 %v31
  %v370 = vunpack.c.l.b16 %v32
  %v371 = vunpack.c.l.b16 %v33
  %v372 = vunpack.c.l.b16 %v34
  %v373 = vunpack.c.l.b16 %v35
  %v374 = vunpack.c.l.b16 %v36
  %v375 = vunpack.c.l.b16 %v37
  %v376 = vunpack.c.l.b16 %v38
  %v377 = vunpack.c.l.b16 %v39
  %v378 = vunpack.c.l.b16 %v40
  %v379 = vunpack.c.l.b16 %v41
  %v380 = vunpack.c.l.b16 %v42
  %v381 = vunpack.c.l.b16 %v43
  %v382 = vunpack.c.l.b16 %v44
  %v383 = vunpack.c.l.b16 %v45
  %v384 = vunpack.c.l.b16 %v46
  %v385 = vunpack.c.l.b16 %v47
  %v386 = vunpack.c.l.b16 %v48
  %v387 = vunpack.c.l.b16 %v49
  %v388 = vunpack.c.l.b16 %v50
  %v389 = vunpack.c.l.b16 %v51
  %v390 = vunpack.c.l.b16 %v52
  %v391 = vunpack.c.l.b16 %v53
  %v392 = vunpack.c.l.b16 %v54
  %v393 = vunpack.c.l.b16 %v55
  %v394 = vunpack.c.l.b16 %v56
  %v395 = vunpack.c.l.b16 %v57
  %v396 = vunpack.c.l.b16 %v58
  %v397 = vunpack.c.l.b16 %v59
  %v398 = vunpack.c.l.b16 %v60
  %v399 = vunpack.c.l.b16 %v61
  %v400 = vunpack.c.l.b16 %v62
  %v401 = vunpack.c.l.b16 %v63
  %v402 = vunpack.c.l.b16 %v64
  %v403 = vunpack.c.l.b16 %v65
  %v404 = vunpack.c.l.b16 %v66
  %v405 = vunpack.c.l.b16 %v67
  %v406 = vunpack.c.l.b16 %v68
  %v407 = vunpack.c.l.b16 %v69
  %v408 = vunpack.c.l.b16 %v70
  %v409 = vunpack.c.l.b16 %v71
  %v410 = vunpack.c.l.b16 %v72
  %v411 = vunpack.c.l.b16 %v73
  %v412 = vunpack.c.l.b16 %v74
  %v413 = vunpack.c.l.b16 %v75
  %v414 = vunpack.c.l.b16 %v76
  %v415 = vunpack.c.l.b16 %v77
  %v416 = vunpack.c.l.b16 %v78
  %v417 = vunpack.c.l.b16 %v79
  %v418 = vunpack.c.l.b16 %v80
  %v419 = vunpack.c.l.b16 %v81
  %v420 = vunpack.c.l.b16 %v82
  %v421 = vunpack.c.l.b16 %v83
  %v422 = vunpack.c.l.b16 %v84
  %v423 = vunpack.c.l.b16 %v85
  %v424 = vunpack.c.l.b16 %v86
  %v425 = vunpack.c.l.b16 %v87
  %v426 = vunpack.c.l.b16 %v88
  %v427 = vunpack.c.l.b16 %v89
  %v428 = vunpack.c.l.b16 %v90
  %v429 = vunpack.c.l.b16 %v91
  %v430 = vunpack.c.l.b16 %v92
  %v431 = vunpack.c.l.b16 %v93
  %v432 = vunpack.c.l.b16 %v94
  %v433 = vunpack.c.l.b16 %v95
  %v434 = vunpack.c.l.b16 %v96
  %v435 = vunpack.c.l.b16 %v97
  %v436 = vunpack.c.l.b16 %v98
  %v437 = vunpack.c.l.b16 %v99
  %v438 = vunpack.c.l.b16 %v100
  %v439 = vunpack.c.l.b16 %v101
  %v440 = vunpack.c.l.b16 %v102
  %v441 = vunpack.c.l.b16 %v103
  %v442 = vunpack.c.l.b16 %v104
  %v443 = vunpack.c.l.b16 %v105
  %v444 = vunpack.c.l.b16 %v106
  %v445 = vunpack.c.l.b16 %v107
  %v446 = vunpack.c.l.b16 %v108
  %v447 = vunpack.c.l.b16 %v109
  %v448 = vunpack.c.l.b16 %v110
  %v449 = vunpack.c.l.b16 %v111
  %v450 = vunpack.c.l.b16 %v112
  %v451 = vunpack.c.l.b16 %v113
  %v452 = vunpack.c.l.b16 %v114
  %v453 = vunpack.c.l.b16 %v115
  %v454 = vunpack.c.l.b16 %v116
  %v455 = vunpack.c.l.b16 %v117
  %v456 = vunpack.c.l.b16 %v118
  %v457 = vunpack.c.l.b16 %v119
  %v458 = vunpack.c.l.b16 %v120
  %v459 = vunpack.c.l.b16 %v121
  %v460 = vunpack.c.l.b16 %v122
  %v461 = vunpack.c.l.b16 %v123
  %v462 = vunpack.c.l.b16 %v124
  %v463 = vunpack.c.l.b16 %v125
  %v464 = vunpack.c.l.b16 %v126
  %v465 = vunpack.c.l.b16 %v127
  %v466 = vunpack.c.l.b16 %v128
  %v467 = vunpack.c.l.b16 %v129
  %v468 = vunpack.c.l.b16 %v130
  %v469 = vunpack.c.l.b16 %v131
  %v470 = vunpack.c.l.b16 %v132
  %v471 = vunpack.c.l.b16 %v133
  %v472 = vunpack.c.l.b16 %v134
  %v473 = vunpack.c.l.b16 %v135
  %v474 = vunpack.c.l.b16 %v136
  %v475 = vunpack.c.l.b16 %v137
  %v476 = vunpack.c.l.b16 %v138
  %v477 = vunpack.c.l.b16 %v139
  %v478 = vunpack.c.l.b16 %v140
  %v479 = vunpack.c.l.b16 %v141
  %v480 = vunpack.c.l.b16 %v142
  %v481 = vunpack.c.l.b16 %v143
  %v482 = vunpack.c.l.b16 %v144
  %v483 = vunpack.c.l.b16 %v145
  %v484 = vunpack.c.l.b16 %v146
  %v485 = vunpack.c.l.b16 %v147
  %v486 = vunpack.c.l.b16 %v148
  %v487 = vunpack.c.l.b16 %v149
  %v488 = vunpack.c.l.b16 %v150
  %v489 = vunpack.c.l.b16 %v151
  %v490 = vunpack.c.l.b16 %v152
  %v491 = vunpack.c.l.b16 %v153
  %v492 = vunpack.c.l.b16 %v154
  %v493 = vunpack.c.l.b16 %v155
  %v494 = vunpack.c.l.b16 %v156
  %v495 = vunpack.c.l.b16 %v157
  %v496 = vunpack.c.l.b16 %v158
  %v497 = vunpack.c.l.b16 %v159
  %v498 = vunpack.c.l.b16 %v160
  %v499 = vunpack.c.l.b16 %v161
  %v500 = vunpack.c.l.b16 %v162
  %v501 = vunpack.c.l.b16 %v163
  %v502 = vunpack.c.l.b16 %v164
  %v503 = vunpack.c.l.b16 %v165
  %v504 = vunpack.c.l.b16 %v166
  %v505 = vunpack.c.l.b16 %v167
  %v506 = vunpack.c.l.b16 %v168
  %v507 = vunpack.c.l.b16 %v169
  %v508 = vunpack.c.l.b16 %v170
  %v509 = vunpack.c.l.b16 %v171
  %v510 = vunpack.c.l.b16 %v172
  %v511 = vunpack.c.l.b16 %v173
  %v512 = vpack.c.b16 %v369, %v368
  %v513 = vpack.c.b16 %v371, %v370
  %v514 = vpack.c.b16 %v373, %v372
  %v515 = vpack.c.b16 %v375, %v374
  %v516 = vpack.c.b16 %v377, %v376
  %v517 = vpack.c.b16 %v379, %v378
  %v518 = vpack.c.b16 %v381, %v380
  %v519 = vpack.c.b16 %v383, %v382
  %v520 = vpack.c.b16 %v385, %v384
  %v521 = vpack.c.b16 %v387, %v386
  %v522 = vpack.c.b16 %v389, %v388
  %v523 = vpack.c.b16 %v391, %v390
  %v524 = vpack.c.b16 %v393, %v392
  %v525 = vpack.c.b16 %v395, %v394
  %v526 = vpack.c.b16 %v397, %v396
  %v527 = vpack.c.b16 %v399, %v398
  %v528 = vpack.c.b16 %v401, %v400
  %v529 = vpack.c.b16 %v403, %v402
  %v530 = vpack.c.b16 %v405, %v404
  %v531 = vpack.c.b16 %v407, %v406
  %v532 = vpack.c.b16 %v409, %v408
  %v533 = vpack.c.b16 %v411, %v410
  %v534 = vpack.c.b16 %v413, %v412
  %v535 = vpack.c.b16 %v415, %v414
  %v536 = vpack.c.b16 %v417, %v416
  %v537 = vpack.c.b16 %v419, %v418
  %v538 = vpack.c.b16 %v421, %v420
  %v539 = vpack.c.b16 %v423, %v422
  %v540 = vpack.c.b16 %v425, %v424
  %v541 = vpack.c.b16 %v427, %v426
  %v542 = vpack.c.b16 %v429, %v428
  %v543 = vpack.c.b16 %v431, %v430
  %v544 = vpack.c.b16 %v433, %v432
  %v545 = vpack.c.b16 %v435, %v434
  %v546 = vpack.c.b16 %v437, %v436
  %v547 = vpack.c.b16 %v439, %v438
  %v548 = vpack.c.b16 %v441, %v440
  %v549 = vpack.c.b16 %v443, %v442
  %v550 = vpack.c.b16 %v445, %v444
  %v551 = vpack.c.b16 %v447, %v446
  %v552 = vpack.c.b16 %v449, %v448
  %v553 = vpack.c.b16 %v451, %v450
  %v554 = vpack.c.b16 %v453, %v452
  %v555 = vpack.c.b16 %v455, %v454
  %v556 = vpack.c.b16 %v457, %v456
  %v557 = vpack.c.b16 %v459, %v458
  %v558 = vpack.c.b16 %v461, %v460
  %v559 = vpack.c.b16 %v463, %v462
  %v560 = vpack.c.b16 %v465, %v464
  %v561 = vpack.c.b16 %v467, %v466
  %v562 = vpack.c.b16 %v469, %v468
  %v563 = vpack.c.b16 %v471, %v470
  %v564 = vpack.c.b16 %v473, %v472
  %v565 = vpack.c.b16 %v475, %v474
  %v566 = vpack.c.b16 %v477, %v476
  %v567 = vpack.c.b16 %v479, %v478
  %v568 = vpack.c.b16 %v481, %v480
  %v569 = vpack.c.b16 %v483, %v482
  %v570 = vpack.c.b16 %v485, %v484
  %v571 = vpack.c.b16 %v487, %v486
  %v572 = vpack.c.b16 %v489, %v488
  %v573 = vpack.c.b16 %v491, %v490
  %v574 = vpack.c.b16 %v493, %v492
  %v575 = vpack.c.b16 %v495, %v494
  %v576 = vpack.c.b16 %v497, %v496
  %v577 = vpack.c.b16 %v499, %v498
  %v578 = vpack.c.b16 %v501, %v500
  %v579 = vpack.c.b16 %v503, %v502
  %v580 = vpack.c.b16 %v505, %v504
  %v581 = vpack.c.b16 %v507, %v506
  %v582 = vpack.c.b16 %v509, %v508
  %v583 = vpack.c.b16 %v511, %v510
  %656 = vmatpush.bf16.msra.mxu0 %v519
  %657 = vmatpush.bf16.msra.mxu0 %v518
  %658 = vmatpush.bf16.msra.mxu0 %v517
  %659 = vmatpush.bf16.msra.mxu0 %v516
  %660 = vmatpush.bf16.msra.mxu0 %v515
  %661 = vmatpush.bf16.msra.mxu0 %v514
  %662 = vmatpush.bf16.msra.mxu0 %v513
  %663 = vmatpush.bf16.msra.mxu0 %v512
  %664 = vmatmul.bf16.gmra.mxu0 %v206
  %v665 = vpop.f32.mrf.mxu0
  %v666 = vadd.f32 %v176, %v665
  %v667 = vpop.f32.mrf.mxu0
  %v668 = vadd.f32 %v176, %v667
  %669 = vdwg.mxu0
  %670 = vmatpush.bf16.msra.mxu0 %v527
  %671 = vmatpush.bf16.msra.mxu0 %v526
  %672 = vmatpush.bf16.msra.mxu0 %v525
  %673 = vmatpush.bf16.msra.mxu0 %v524
  %674 = vmatpush.bf16.msra.mxu0 %v523
  %675 = vmatpush.bf16.msra.mxu0 %v522
  %676 = vmatpush.bf16.msra.mxu0 %v521
  %677 = vmatpush.bf16.msra.mxu0 %v520
  %678 = vmatmul.bf16.gmra.mxu0 %v207
  %v679 = vpop.f32.mrf.mxu0
  %v680 = vadd.f32 %v666, %v679
  %v681 = vpop.f32.mrf.mxu0
  %v682 = vadd.f32 %v668, %v681
  %683 = vdwg.mxu0
  %684 = vmatpush.bf16.msra.mxu0 %v535
  %685 = vmatpush.bf16.msra.mxu0 %v534
  %686 = vmatpush.bf16.msra.mxu0 %v533
  %687 = vmatpush.bf16.msra.mxu0 %v532
  %688 = vmatpush.bf16.msra.mxu0 %v531
  %689 = vmatpush.bf16.msra.mxu0 %v530
  %690 = vmatpush.bf16.msra.mxu0 %v529
  %691 = vmatpush.bf16.msra.mxu0 %v528
  %692 = vmatmul.bf16.gmra.mxu0 %v208
  %v693 = vpop.f32.mrf.mxu0
  %v694 = vadd.f32 %v680, %v693
  %v695 = vpop.f32.mrf.mxu0
  %v696 = vadd.f32 %v682, %v695
  %697 = vdwg.mxu0
  %698 = vmatpush.bf16.msra.mxu0 %v543
  %699 = vmatpush.bf16.msra.mxu0 %v542
  %700 = vmatpush.bf16.msra.mxu0 %v541
  %701 = vmatpush.bf16.msra.mxu0 %v540
  %702 = vmatpush.bf16.msra.mxu0 %v539
  %703 = vmatpush.bf16.msra.mxu0 %v538
  %704 = vmatpush.bf16.msra.mxu0 %v537
  %705 = vmatpush.bf16.msra.mxu0 %v536
  %706 = vmatmul.bf16.gmra.mxu0 %v209
  %v707 = vpop.f32.mrf.mxu0
  %v708 = vadd.f32 %v694, %v707
  %v709 = vpop.f32.mrf.mxu0
  %v710 = vadd.f32 %v696, %v709
  %711 = vdwg.mxu0
  %712 = vmatpush.bf16.msra.mxu0 %v551
  %713 = vmatpush.bf16.msra.mxu0 %v550
  %714 = vmatpush.bf16.msra.mxu0 %v549
  %715 = vmatpush.bf16.msra.mxu0 %v548
  %716 = vmatpush.bf16.msra.mxu0 %v547
  %717 = vmatpush.bf16.msra.mxu0 %v546
  %718 = vmatpush.bf16.msra.mxu0 %v545
  %719 = vmatpush.bf16.msra.mxu0 %v544
  %720 = vmatmul.bf16.gmra.mxu0 %v210
  %v721 = vpop.f32.mrf.mxu0
  %v722 = vadd.f32 %v708, %v721
  %v723 = vpop.f32.mrf.mxu0
  %v724 = vadd.f32 %v710, %v723
  %725 = vdwg.mxu0
  %726 = vmatpush.bf16.msra.mxu0 %v559
  %727 = vmatpush.bf16.msra.mxu0 %v558
  %728 = vmatpush.bf16.msra.mxu0 %v557
  %729 = vmatpush.bf16.msra.mxu0 %v556
  %730 = vmatpush.bf16.msra.mxu0 %v555
  %731 = vmatpush.bf16.msra.mxu0 %v554
  %732 = vmatpush.bf16.msra.mxu0 %v553
  %733 = vmatpush.bf16.msra.mxu0 %v552
  %734 = vmatmul.bf16.gmra.mxu0 %v211
  %v735 = vpop.f32.mrf.mxu0
  %v736 = vadd.f32 %v722, %v735
  %v737 = vpop.f32.mrf.mxu0
  %v738 = vadd.f32 %v724, %v737
  %739 = vdwg.mxu0
  %740 = vmatpush.bf16.msra.mxu0 %v567
  %741 = vmatpush.bf16.msra.mxu0 %v566
  %742 = vmatpush.bf16.msra.mxu0 %v565
  %743 = vmatpush.bf16.msra.mxu0 %v564
  %744 = vmatpush.bf16.msra.mxu0 %v563
  %745 = vmatpush.bf16.msra.mxu0 %v562
  %746 = vmatpush.bf16.msra.mxu0 %v561
  %747 = vmatpush.bf16.msra.mxu0 %v560
  %748 = vmatmul.bf16.gmra.mxu0 %v212
  %v749 = vpop.f32.mrf.mxu0
  %v750 = vadd.f32 %v736, %v749
  %v751 = vpop.f32.mrf.mxu0
  %v752 = vadd.f32 %v738, %v751
  %753 = vdwg.mxu0
  %754 = vmatpush.bf16.msra.mxu0 %v575
  %755 = vmatpush.bf16.msra.mxu0 %v574
  %756 = vmatpush.bf16.msra.mxu0 %v573
  %757 = vmatpush.bf16.msra.mxu0 %v572
  %758 = vmatpush.bf16.msra.mxu0 %v571
  %759 = vmatpush.bf16.msra.mxu0 %v570
  %760 = vmatpush.bf16.msra.mxu0 %v569
  %761 = vmatpush.bf16.msra.mxu0 %v568
  %762 = vmatmul.bf16.gmra.mxu0 %v213
  %v763 = vpop.f32.mrf.mxu0
  %v764 = vadd.f32 %v750, %v763
  %v765 = vpop.f32.mrf.mxu0
  %v766 = vadd.f32 %v752, %v765
  %767 = vdwg.mxu0
  %768 = vmatpush.bf16.msra.mxu0 %v583
  %769 = vmatpush.bf16.msra.mxu0 %v582
  %770 = vmatpush.bf16.msra.mxu0 %v581
  %771 = vmatpush.bf16.msra.mxu0 %v580
  %772 = vmatpush.bf16.msra.mxu0 %v579
  %773 = vmatpush.bf16.msra.mxu0 %v578
  %774 = vmatpush.bf16.msra.mxu0 %v577
  %775 = vmatpush.bf16.msra.mxu0 %v576
  %776 = vmatmul.bf16.gmra.mxu0 %v214
  %v777 = vpop.f32.mrf.mxu0
  %v778 = vadd.f32 %v764, %v777
  %v779 = vpop.f32.mrf.mxu0
  %v780 = vadd.f32 %v766, %v779
  %781 = vdwg.mxu0
  %v782 = vmax.f32 %v778, 0.0
  %v783 = vmax.f32 %v780, 0.0
  %v784 = vpack.c.bf16 %v783, %v782
  %v785 = vld [vmem:[%s3] sm:$0xf]
  %v786 = vld [vmem:[%s3 + $0x4] sm:$0xf]
  %v787 = vld [vmem:[%s3 + $0x8] sm:$0xf]
  %v788 = vld [vmem:[%s3 + $0xc] sm:$0xf]
  %v789 = vld [vmem:[%s3 + $0x10] sm:$0xf]
  %v790 = vld [vmem:[%s3 + $0x14] sm:$0xf]
  %v791 = vld [vmem:[%s3 + $0x18] sm:$0xf]
  %v792 = vld [vmem:[%s3 + $0x1c] sm:$0xf]
  %v793 = vld [vmem:[%s3 + $0x20] sm:$0xf]
  %v794 = vld [vmem:[%s3 + $0x24] sm:$0xf]
  %v795 = vld [vmem:[%s3 + $0x28] sm:$0xf]
  %v796 = vld [vmem:[%s3 + $0x2c] sm:$0xf]
  %v797 = vld [vmem:[%s3 + $0x30] sm:$0xf]
  %v798 = vld [vmem:[%s3 + $0x34] sm:$0xf]
  %v799 = vld [vmem:[%s3 + $0x38] sm:$0xf]
  %v800 = vld [vmem:[%s3 + $0x3c] sm:$0xf]
  %v801 = vld [vmem:[%s4] sm:$0x1]
  %v803 = vperm.slane %v801, 0
  %v821 = vunpack.c.l.b16 %v785
  %v822 = vunpack.c.l.b16 %v786
  %v823 = vunpack.c.l.b16 %v787
  %v824 = vunpack.c.l.b16 %v788
  %v825 = vunpack.c.l.b16 %v789
  %v826 = vunpack.c.l.b16 %v790
  %v827 = vunpack.c.l.b16 %v791
  %v828 = vunpack.c.l.b16 %v792
  %v829 = vunpack.c.l.b16 %v793
  %v830 = vunpack.c.l.b16 %v794
  %v831 = vunpack.c.l.b16 %v795
  %v832 = vunpack.c.l.b16 %v796
  %v833 = vunpack.c.l.b16 %v797
  %v834 = vunpack.c.l.b16 %v798
  %v835 = vunpack.c.l.b16 %v799
  %v836 = vunpack.c.l.b16 %v800
  %v837 = vpack.c.b16 %v822, %v821
  %v838 = vpack.c.b16 %v824, %v823
  %v839 = vpack.c.b16 %v826, %v825
  %v840 = vpack.c.b16 %v828, %v827
  %v841 = vpack.c.b16 %v830, %v829
  %v842 = vpack.c.b16 %v832, %v831
  %v843 = vpack.c.b16 %v834, %v833
  %v844 = vpack.c.b16 %v836, %v835
  %853 = vmatpush.bf16.msra.mxu0 %v844
  %854 = vmatpush.bf16.msra.mxu0 %v843
  %855 = vmatpush.bf16.msra.mxu0 %v842
  %856 = vmatpush.bf16.msra.mxu0 %v841
  %857 = vmatpush.bf16.msra.mxu0 %v840
  %858 = vmatpush.bf16.msra.mxu0 %v839
  %859 = vmatpush.bf16.msra.mxu0 %v838
  %860 = vmatpush.bf16.msra.mxu0 %v837
  %861 = vmatmul.bf16.gmra.mxu0 %v784
  %v862 = vpop.f32.mrf.mxu0
  %v863 = vadd.f32 %v803, %v862
  %v864 = vpop.f32.mrf.mxu0
  %v865 = vadd.f32 %v803, %v864
  %866 = vdwg.mxu0
  %867 = vst [vmem:[%s5] sm:$0xff] %v863
  %868 = vst [vmem:[%s5 + $0x8] sm:$0xff] %v865
  // Predicated region
  $region22: #{centernet_forward.19} parent=0 // pred_check
    _
  $region23: #{centernet_forward.19} parent=0 // pred_check_branch
    %870 = sbr.rel (0) target = $region25
  $region24: #{centernet_forward.19} parent=0 // pred_region
    _
  $region25: #{centernet_forward.19} parent=0 // pred_fallthru
    _
  // Predicated region
  $region26: #{centernet_forward.19} parent=0 // pred_check
    _
  $region27: #{centernet_forward.19} parent=0 // pred_check_branch
    %872 = sbr.rel (0) target = $region29
  $region28: #{centernet_forward.19} parent=0 // pred_region
    _
  $region29: #{centernet_forward.19} parent=0 // pred_fallthru
    _

</llo_original>
